<compile_context>
chip_gen: v5e
topology: v5e:2x2
jax: 0.10.0
libtpu: 0.0.40
codegen_flags: <defaults>
</compile_context>

<pallas_src>
import functools

import jax
import jax.numpy as jnp
from jax.experimental import pallas as pl
from jax.experimental.pallas import tpu as pltpu


def _round_up(x, m):
    return (x + m - 1) // m * m


# ----------------------------- Pallas kernels -----------------------------

def _stem_kernel(p_ref, w_ref, s_ref, b_ref, o_ref):
    # im2col patches @ conv weight (bf16 in / f32 acc on MXU)
    #   -> folded BatchNorm -> SiLU (swish)
    y = jnp.dot(p_ref[...], w_ref[...], preferred_element_type=jnp.float32)
    y = y * s_ref[...] + b_ref[...]
    o_ref[...] = (y * jax.nn.sigmoid(y)).astype(o_ref.dtype)


def _tail_kernel(feat_ref, wc_ref, bc_ref, w1_ref, b1_ref, w2_ref, b2_ref,
                 o_ref, *, inv_s):
    # Fused: global-average-pool -> base FC(1024) -> l1 -> ReLU
    #        -> Dropout(0.1)==identity (eval) -> l2.
    # GAP as sum * (precomputed 1/S): divide stays off the VPU critical path.
    pooled = jnp.sum(feat_ref[...].astype(jnp.float32), axis=1) * inv_s     # [8, C]
    base = jnp.dot(pooled.astype(wc_ref.dtype), wc_ref[...],
                   preferred_element_type=jnp.float32) + bc_ref[...]        # [8, 1024]
    h = jnp.dot(base.astype(w1_ref.dtype), w1_ref[...],
                preferred_element_type=jnp.float32) + b1_ref[...]           # [8, 256]
    h = jnp.maximum(h, 0.0)
    y = jnp.dot(h.astype(w2_ref.dtype), w2_ref[...],
                preferred_element_type=jnp.float32) + b2_ref[...]           # [8, 128]
    o_ref[...] = y.astype(o_ref.dtype)


# ----------------------------- pallas_call wrappers -----------------------------

def stem_conv_bn_silu(patches, w, scale, bias, tm=256):
    """patches: [M, Kp] bf16, w: [Kp, C] bf16 -> [M, C] bf16 (C lane-dense)."""
    M, K = patches.shape
    N = w.shape[1]
    Mp = _round_up(M, tm)
    if Mp != M:
        patches = jnp.pad(patches, ((0, Mp - M), (0, 0)))
    out = pl.pallas_call(
        _stem_kernel,
        out_shape=jax.ShapeDtypeStruct((Mp, N), jnp.bfloat16),
        grid=(Mp // tm,),
        in_specs=[
            pl.BlockSpec((tm, K), lambda i: (i, 0)),
            pl.BlockSpec((K, N), lambda i: (0, 0)),
            pl.BlockSpec((1, N), lambda i: (0, 0)),
            pl.BlockSpec((1, N), lambda i: (0, 0)),
        ],
        out_specs=pl.BlockSpec((tm, N), lambda i: (i, 0)),
        compiler_params=pltpu.CompilerParams(dimension_semantics=("parallel",)),
    )(patches, w, scale, bias)
    return out[:M]


def gap_fc_head(feat, w_cls, b_cls, w1, b1, w2, b2):
    """feat: [Bp, S, C] bf16 (Bp a multiple of 8, >= 16) -> logits [Bp, Ncls_pad]."""
    Bp, S, C = feat.shape
    N = w2.shape[1]
    bt = 8  # one f32 sublane tile of batch rows per grid step
    kernel = functools.partial(_tail_kernel, inv_s=1.0 / S)
    return pl.pallas_call(
        kernel,
        out_shape=jax.ShapeDtypeStruct((Bp, N), jnp.float32),
        grid=(Bp // bt,),
        in_specs=[
            pl.BlockSpec((bt, S, C), lambda i: (i, 0, 0)),
            pl.BlockSpec(w_cls.shape, lambda i: (0, 0)),
            pl.BlockSpec(b_cls.shape, lambda i: (0, 0)),
            pl.BlockSpec(w1.shape, lambda i: (0, 0)),
            pl.BlockSpec(b1.shape, lambda i: (0, 0)),
            pl.BlockSpec(w2.shape, lambda i: (0, 0)),
            pl.BlockSpec(b2.shape, lambda i: (0, 0)),
        ],
        out_specs=pl.BlockSpec((bt, N), lambda i: (i, 0)),
        compiler_params=pltpu.CompilerParams(dimension_semantics=("parallel",)),
    )(feat, w_cls, b_cls, w1, b1, w2, b2)


# ----------------------------- glue (plain JAX) -----------------------------

def _im2col(x_nhwc, kh, kw, stride, pad):
    # Patch features ordered (kh, kw, C) along K — w_stem is built in the same
    # layout below, so there is no silent permutation mismatch.
    x = jnp.pad(x_nhwc, ((0, 0), (pad, pad), (pad, pad), (0, 0)))
    B, H, W, C = x.shape
    ho = (H - kh) // stride + 1
    wo = (W - kw) // stride + 1
    cols = []
    for i in range(kh):
        for j in range(kw):
            cols.append(x[:, i:i + stride * ho:stride, j:j + stride * wo:stride, :])
    patches = jnp.concatenate(cols, axis=-1)              # [B, ho, wo, kh*kw*C]
    return patches.reshape(B * ho * wo, kh * kw * C), ho, wo


def efficientnet_b4_transfer_forward(x_nchw, params, num_classes):
    """Forward pass mirroring EfficientNetB4Transfer.forward (eval mode)."""
    B = x_nchw.shape[0]
    x = jnp.transpose(x_nchw, (0, 2, 3, 1))               # NCHW -> NHWC

    # --- base stem: conv 3x3/s2 + BN + SiLU as one lane-dense MXU matmul ---
    patches, ho, wo = _im2col(x, 3, 3, stride=2, pad=1)    # [M, 27]
    K = patches.shape[1]
    Kp = params["w_stem"].shape[0]
    patches = jnp.pad(patches, ((0, 0), (0, Kp - K))).astype(jnp.bfloat16)

    feat = stem_conv_bn_silu(patches, params["w_stem"],
                             params["bn_scale"], params["bn_bias"])  # [M, 128] bf16
    C = feat.shape[1]
    S = ho * wo
    feat = feat.reshape(B, S, C)

    # Pad batch to >= 16 rows (two 8-row sublane tiles): unmasked stores in the
    # fused tail kernel and a 2-wide parallel grid (keeps v7x's 2nd TC busy).
    Bp = max(16, _round_up(B, 8))
    feat = jnp.pad(feat, ((0, Bp - B), (0, 0), (0, 0)))

    # --- fused tail: GAP -> FC(1024) -> l1 -> ReLU -> Dropout(eval) -> l2 ---
    logits_padded = gap_fc_head(feat, params["w_cls"], params["b_cls"],
                                params["w1"], params["b1"],
                                params["w2"], params["b2"])          # [Bp, 128]
    return logits_padded[:B, :num_classes]


def init_params(key, num_classes, c_stem=128):
    """Lane-padded parameters; padded rows/cols are zero so the math equals the
    un-padded (27-K stem, 1000-wide base, num_classes-wide head) module."""
    kp = 128                                  # 3*3*3 = 27 -> 128
    n_base = 1024                             # 1000 -> 1024
    n_cls = _round_up(num_classes, 128)       # 10 -> 128

    ks = jax.random.split(key, 8)
    w_stem = jnp.zeros((kp, c_stem), jnp.float32).at[:27].set(
        0.1 * jax.random.normal(ks[0], (27, c_stem), jnp.float32))
    w_cls = jnp.zeros((c_stem, n_base), jnp.float32).at[:, :1000].set(
        0.1 * jax.random.normal(ks[3], (c_stem, 1000), jnp.float32))
    b_cls = jnp.zeros((1, n_base), jnp.float32).at[:, :1000].set(
        0.01 * jax.random.normal(ks[4], (1, 1000), jnp.float32))
    # nn.Linear(1000, 256) stored as [in, out]; rows 1000..1023 are zero.
    w1 = jnp.zeros((n_base, 256), jnp.float32).at[:1000].set(
        0.05 * jax.random.normal(ks[5], (1000, 256), jnp.float32))
    # nn.Linear(256, num_classes) padded to 128 output lanes.
    w2 = jnp.zeros((256, n_cls), jnp.float32).at[:, :num_classes].set(
        0.05 * jax.random.normal(ks[6], (256, num_classes), jnp.float32))
    return {
        # bf16 weights (native MXU path, halves HBM weight traffic)
        "w_stem":   w_stem.astype(jnp.bfloat16),
        "w_cls":    w_cls.astype(jnp.bfloat16),
        "w1":       w1.astype(jnp.bfloat16),
        "w2":       w2.astype(jnp.bfloat16),
        # f32 BN fold + biases (added to the f32 accumulators)
        "bn_scale": 1.0 + 0.05 * jax.random.normal(ks[1], (1, c_stem), jnp.float32),
        "bn_bias":  0.05 * jax.random.normal(ks[2], (1, c_stem), jnp.float32),
        "b_cls":    b_cls,
        "b1":       jnp.zeros((1, 256), jnp.float32),
        "b2":       jnp.zeros((1, n_cls), jnp.float32),
    }


if __name__ == "__main__":
    num_classes = 10
    key = jax.random.PRNGKey(0)
    k_x, k_p = jax.random.split(key)

    # small NCHW image batch, consistent with the module's image-classifier input
    x = jax.random.normal(k_x, (2, 3, 32, 32), jnp.float32)
    params = init_params(k_p, num_classes)

    fwd = jax.jit(functools.partial(efficientnet_b4_transfer_forward,
                                    num_classes=num_classes))
    out = fwd(x, params)
    jax.block_until_ready(out)

    assert out.shape == (2, num_classes) and out.dtype == jnp.float32
    print("KERNEL_OK")
</pallas_src>

<mosaic_0001>
module attributes {stable_mosaic.version = 11 : i64} {
  func.func @_stem_kernel(%arg0: i32, %arg1: memref<256x128xbf16, #tpu.memory_space<vmem>>, %arg2: memref<128x128xbf16, #tpu.memory_space<vmem>>, %arg3: memref<1x128xf32, #tpu.memory_space<vmem>>, %arg4: memref<1x128xf32, #tpu.memory_space<vmem>>, %arg5: memref<256x128xbf16, #tpu.memory_space<vmem>>) attributes {dimension_semantics = [#tpu.dimension_semantics<parallel>], iteration_bounds = array<i64: 2>, scalar_prefetch = 0 : i64, scratch_operands = 0 : i64, tpu.core_type = #tpu.core_type<tc>, window_params = [{transform_indices = @transform_0, window_bounds = array<i64: 256, 128>}, {pipeline_mode = #tpu.pipeline_mode<synchronous>, transform_indices = @transform_1, window_bounds = array<i64: 128, 128>}, {pipeline_mode = #tpu.pipeline_mode<synchronous>, transform_indices = @transform_2, window_bounds = array<i64: 1, 128>}, {pipeline_mode = #tpu.pipeline_mode<synchronous>, transform_indices = @transform_3, window_bounds = array<i64: 1, 128>}, {transform_indices = @transform_4, window_bounds = array<i64: 256, 128>}]} {
    %c0 = arith.constant 0 : index
    %c0_0 = arith.constant 0 : index
    %0 = vector.load %arg1[%c0, %c0_0] : memref<256x128xbf16, #tpu.memory_space<vmem>>, vector<256x128xbf16>
    %c0_1 = arith.constant 0 : index
    %c0_2 = arith.constant 0 : index
    %1 = vector.load %arg2[%c0_1, %c0_2] : memref<128x128xbf16, #tpu.memory_space<vmem>>, vector<128x128xbf16>
    %cst = arith.constant dense<0.000000e+00> : vector<256x128xf32>
    %2 = tpu.matmul %0, %1, %cst {dimension_numbers = #tpu.dot_dimension_numbers<[1], [0], [0], [1], [0, 0, 1, 1], [], []>} : vector<256x128xbf16>, vector<128x128xbf16>, vector<256x128xf32> -> vector<256x128xf32>
    %c0_3 = arith.constant 0 : index
    %c0_4 = arith.constant 0 : index
    %3 = vector.load %arg3[%c0_3, %c0_4] : memref<1x128xf32, #tpu.memory_space<vmem>>, vector<1x128xf32>
    %4 = vector.broadcast %3 : vector<1x128xf32> to vector<256x128xf32>
    %5 = arith.mulf %2, %4 : vector<256x128xf32>
    %c0_5 = arith.constant 0 : index
    %c0_6 = arith.constant 0 : index
    %6 = vector.load %arg4[%c0_5, %c0_6] : memref<1x128xf32, #tpu.memory_space<vmem>>, vector<1x128xf32>
    %7 = vector.broadcast %6 : vector<1x128xf32> to vector<256x128xf32>
    %8 = arith.addf %5, %7 : vector<256x128xf32>
    %9 = arith.negf %8 : vector<256x128xf32>
    %10 = math.exp %9 : vector<256x128xf32>
    %cst_7 = arith.constant 1.000000e+00 : f32
    %11 = vector.broadcast %cst_7 : f32 to vector<256x128xf32>
    %12 = arith.addf %11, %10 : vector<256x128xf32>
    %13 = arith.divf %11, %12 : vector<256x128xf32>
    %14 = arith.mulf %8, %13 : vector<256x128xf32>
    %15 = arith.truncf %14 : vector<256x128xf32> to vector<256x128xbf16>
    %c0_8 = arith.constant 0 : index
    %c0_9 = arith.constant 0 : index
    %16 = vector.load %arg5[%c0_8, %c0_9] : memref<256x128xbf16, #tpu.memory_space<vmem>>, vector<256x128xbf16>
    tpu.vector_store %arg5[%c0_8, %c0_9], %15 {strides = array<i32>} : memref<256x128xbf16, #tpu.memory_space<vmem>>, vector<256x128xbf16>,
    return
  }
  func.func @transform_0(%arg0: i32) -> (i32, i32) {
    %c0_i32 = arith.constant 0 : i32
    %c0_i32_0 = arith.constant 0 : i32
    return %arg0, %c0_i32 : i32, i32
  }
  func.func @transform_1(%arg0: i32) -> (i32, i32) {
    %c0_i32 = arith.constant 0 : i32
    %c0_i32_0 = arith.constant 0 : i32
    %c0_i32_1 = arith.constant 0 : i32
    return %c0_i32, %c0_i32_0 : i32, i32
  }
  func.func @transform_2(%arg0: i32) -> (i32, i32) {
    %c0_i32 = arith.constant 0 : i32
    %c0_i32_0 = arith.constant 0 : i32
    %c0_i32_1 = arith.constant 0 : i32
    return %c0_i32, %c0_i32_0 : i32, i32
  }
  func.func @transform_3(%arg0: i32) -> (i32, i32) {
    %c0_i32 = arith.constant 0 : i32
    %c0_i32_0 = arith.constant 0 : i32
    %c0_i32_1 = arith.constant 0 : i32
    return %c0_i32, %c0_i32_0 : i32, i32
  }
  func.func @transform_4(%arg0: i32) -> (i32, i32) {
    %c0_i32 = arith.constant 0 : i32
    %c0_i32_0 = arith.constant 0 : i32
    return %arg0, %c0_i32 : i32, i32
  }
}

module attributes {stable_mosaic.version = 11 : i64} {
  func.func @_tail_kernel(%arg0: i32, %arg1: memref<8x256x128xbf16, #tpu.memory_space<vmem>>, %arg2: memref<128x1024xbf16, #tpu.memory_space<vmem>>, %arg3: memref<1x1024xf32, #tpu.memory_space<vmem>>, %arg4: memref<1024x256xbf16, #tpu.memory_space<vmem>>, %arg5: memref<1x256xf32, #tpu.memory_space<vmem>>, %arg6: memref<256x128xbf16, #tpu.memory_space<vmem>>, %arg7: memref<1x128xf32, #tpu.memory_space<vmem>>, %arg8: memref<8x128xf32, #tpu.memory_space<vmem>>) attributes {dimension_semantics = [#tpu.dimension_semantics<parallel>], iteration_bounds = array<i64: 2>, scalar_prefetch = 0 : i64, scratch_operands = 0 : i64, tpu.core_type = #tpu.core_type<tc>, window_params = [{transform_indices = @transform_0, window_bounds = array<i64: 8, 256, 128>}, {pipeline_mode = #tpu.pipeline_mode<synchronous>, transform_indices = @transform_1, window_bounds = array<i64: 128, 1024>}, {pipeline_mode = #tpu.pipeline_mode<synchronous>, transform_indices = @transform_2, window_bounds = array<i64: 1, 1024>}, {pipeline_mode = #tpu.pipeline_mode<synchronous>, transform_indices = @transform_3, window_bounds = array<i64: 1024, 256>}, {pipeline_mode = #tpu.pipeline_mode<synchronous>, transform_indices = @transform_4, window_bounds = array<i64: 1, 256>}, {pipeline_mode = #tpu.pipeline_mode<synchronous>, transform_indices = @transform_5, window_bounds = array<i64: 256, 128>}, {pipeline_mode = #tpu.pipeline_mode<synchronous>, transform_indices = @transform_6, window_bounds = array<i64: 1, 128>}, {transform_indices = @transform_7, window_bounds = array<i64: 8, 128>}]} {
    %c0 = arith.constant 0 : index
    %c0_0 = arith.constant 0 : index
    %c0_1 = arith.constant 0 : index
    %0 = vector.load %arg1[%c0, %c0_0, %c0_1] : memref<8x256x128xbf16, #tpu.memory_space<vmem>>, vector<8x256x128xbf16>
    %1 = arith.extf %0 : vector<8x256x128xbf16> to vector<8x256x128xf32>
    %cst = arith.constant dense<0.000000e+00> : vector<8x128xf32>
    %2 = vector.multi_reduction <add>, %1, %cst [1] : vector<8x256x128xf32> to vector<8x128xf32>
    %cst_2 = arith.constant 3.906250e-03 : f32
    %3 = vector.broadcast %cst_2 : f32 to vector<8x128xf32>
    %4 = arith.mulf %2, %3 : vector<8x128xf32>
    %5 = arith.truncf %4 : vector<8x128xf32> to vector<8x128xbf16>
    %c0_3 = arith.constant 0 : index
    %c0_4 = arith.constant 0 : index
    %6 = vector.load %arg2[%c0_3, %c0_4] : memref<128x1024xbf16, #tpu.memory_space<vmem>>, vector<128x1024xbf16>
    %cst_5 = arith.constant dense<0.000000e+00> : vector<8x1024xf32>
    %7 = tpu.matmul %5, %6, %cst_5 {dimension_numbers = #tpu.dot_dimension_numbers<[1], [0], [0], [1], [0, 0, 1, 1], [], []>} : vector<8x128xbf16>, vector<128x1024xbf16>, vector<8x1024xf32> -> vector<8x1024xf32>
    %c0_6 = arith.constant 0 : index
    %c0_7 = arith.constant 0 : index
    %8 = vector.load %arg3[%c0_6, %c0_7] : memref<1x1024xf32, #tpu.memory_space<vmem>>, vector<1x1024xf32>
    %9 = vector.broadcast %8 : vector<1x1024xf32> to vector<8x1024xf32>
    %10 = arith.addf %7, %9 : vector<8x1024xf32>
    %11 = arith.truncf %10 : vector<8x1024xf32> to vector<8x1024xbf16>
    %c0_8 = arith.constant 0 : index
    %c0_9 = arith.constant 0 : index
    %12 = vector.load %arg4[%c0_8, %c0_9] : memref<1024x256xbf16, #tpu.memory_space<vmem>>, vector<1024x256xbf16>
    %cst_10 = arith.constant dense<0.000000e+00> : vector<8x256xf32>
    %13 = tpu.matmul %11, %12, %cst_10 {dimension_numbers = #tpu.dot_dimension_numbers<[1], [0], [0], [1], [0, 0, 1, 1], [], []>} : vector<8x1024xbf16>, vector<1024x256xbf16>, vector<8x256xf32> -> vector<8x256xf32>
    %c0_11 = arith.constant 0 : index
    %c0_12 = arith.constant 0 : index
    %14 = vector.load %arg5[%c0_11, %c0_12] : memref<1x256xf32, #tpu.memory_space<vmem>>, vector<1x256xf32>
    %15 = vector.broadcast %14 : vector<1x256xf32> to vector<8x256xf32>
    %16 = arith.addf %13, %15 : vector<8x256xf32>
    %cst_13 = arith.constant 0.000000e+00 : f32
    %17 = vector.broadcast %cst_13 : f32 to vector<8x256xf32>
    %18 = arith.maximumf %16, %17 : vector<8x256xf32>
    %19 = arith.truncf %18 : vector<8x256xf32> to vector<8x256xbf16>
    %c0_14 = arith.constant 0 : index
    %c0_15 = arith.constant 0 : index
    %20 = vector.load %arg6[%c0_14, %c0_15] : memref<256x128xbf16, #tpu.memory_space<vmem>>, vector<256x128xbf16>
    %cst_16 = arith.constant dense<0.000000e+00> : vector<8x128xf32>
    %21 = tpu.matmul %19, %20, %cst_16 {dimension_numbers = #tpu.dot_dimension_numbers<[1], [0], [0], [1], [0, 0, 1, 1], [], []>} : vector<8x256xbf16>, vector<256x128xbf16>, vector<8x128xf32> -> vector<8x128xf32>
    %c0_17 = arith.constant 0 : index
    %c0_18 = arith.constant 0 : index
    %22 = vector.load %arg7[%c0_17, %c0_18] : memref<1x128xf32, #tpu.memory_space<vmem>>, vector<1x128xf32>
    %23 = vector.broadcast %22 : vector<1x128xf32> to vector<8x128xf32>
    %24 = arith.addf %21, %23 : vector<8x128xf32>
    %c0_19 = arith.constant 0 : index
    %c0_20 = arith.constant 0 : index
    %25 = vector.load %arg8[%c0_19, %c0_20] : memref<8x128xf32, #tpu.memory_space<vmem>>, vector<8x128xf32>
    tpu.vector_store %arg8[%c0_19, %c0_20], %24 {strides = array<i32>} : memref<8x128xf32, #tpu.memory_space<vmem>>, vector<8x128xf32>,
    return
  }
  func.func @transform_0(%arg0: i32) -> (i32, i32, i32) {
    %c0_i32 = arith.constant 0 : i32
    %c0_i32_0 = arith.constant 0 : i32
    %c0_i32_1 = arith.constant 0 : i32
    return %arg0, %c0_i32, %c0_i32_0 : i32, i32, i32
  }
  func.func @transform_1(%arg0: i32) -> (i32, i32) {
    %c0_i32 = arith.constant 0 : i32
    %c0_i32_0 = arith.constant 0 : i32
    %c0_i32_1 = arith.constant 0 : i32
    return %c0_i32, %c0_i32_0 : i32, i32
  }
  func.func @transform_2(%arg0: i32) -> (i32, i32) {
    %c0_i32 = arith.constant 0 : i32
    %c0_i32_0 = arith.constant 0 : i32
    %c0_i32_1 = arith.constant 0 : i32
    return %c0_i32, %c0_i32_0 : i32, i32
  }
  func.func @transform_3(%arg0: i32) -> (i32, i32) {
    %c0_i32 = arith.constant 0 : i32
    %c0_i32_0 = arith.constant 0 : i32
    %c0_i32_1 = arith.constant 0 : i32
    return %c0_i32, %c0_i32_0 : i32, i32
  }
  func.func @transform_4(%arg0: i32) -> (i32, i32) {
    %c0_i32 = arith.constant 0 : i32
    %c0_i32_0 = arith.constant 0 : i32
    %c0_i32_1 = arith.constant 0 : i32
    return %c0_i32, %c0_i32_0 : i32, i32
  }
  func.func @transform_5(%arg0: i32) -> (i32, i32) {
    %c0_i32 = arith.constant 0 : i32
    %c0_i32_0 = arith.constant 0 : i32
    %c0_i32_1 = arith.constant 0 : i32
    return %c0_i32, %c0_i32_0 : i32, i32
  }
  func.func @transform_6(%arg0: i32) -> (i32, i32) {
    %c0_i32 = arith.constant 0 : i32
    %c0_i32_0 = arith.constant 0 : i32
    %c0_i32_1 = arith.constant 0 : i32
    return %c0_i32, %c0_i32_0 : i32, i32
  }
  func.func @transform_7(%arg0: i32) -> (i32, i32) {
    %c0_i32 = arith.constant 0 : i32
    %c0_i32_0 = arith.constant 0 : i32
    return %arg0, %c0_i32 : i32, i32
  }
}

</mosaic_0001>

<llo_original>
// kernel: efficientnet_b4_transfer_forward.2
$region0: #{efficientnet_b4_transfer_forward.2}
  #allocation0 [shape = 'u32[]', space=smem, size = 0x4, offset = 0x4, fixed_abs, tag = 'smem constant byte address 0x4 - core index']
  #allocation1 [shape = 'u32[72,128]{1,0:T(1,128)}', space=vmem, size = 0x9000, scoped, tag = 'internal scratch']
  %s0 = inlined_call_operand.vmem [shape: bf16[512,128], index: 0, kind: input, shape index: {}]
  %s1 = inlined_call_operand.vmem [shape: bf16[128,128], index: 1, kind: input, shape index: {}]
  %s2 = inlined_call_operand.vmem [shape: f32[1,128], index: 2, kind: input, shape index: {}]
  %s3 = inlined_call_operand.vmem [shape: f32[1,128], index: 3, kind: input, shape index: {}]
  %s4 = inlined_call_operand.vmem [shape: bf16[512,128], index: 4, kind: output, shape index: {}]
  %s5 = sld [smem:[#allocation0]]
  $region49: #{efficientnet_b4_transfer_forward.2} parent=0
    _
  %s7 = ssub.s32 1, %s5
  %s8 = scalar_select 0, %s7, %s5
  loop: start=0, step=1, limit=4
  $region2: #{efficientnet_b4_transfer_forward.2} parent=0 // loop_pre_header
    _
  $region3: #{efficientnet_b4_transfer_forward.2} parent=0 // loop_header
    %s10 = sphi 0, %s14
    %p11 = scmp.ge.s32.totalorder %s10, 4
    %s20 = sphi 0, %s22
    %s23 = sphi 0, %s20
    %s24 = sphi 0, %s23
    %s40 = sphi 0, %s24
    %s44 = sphi 0, %s44
    %s46 = sphi 0, %s44
    %s47 = sphi 0, %s46
    %s61 = sphi 0, %s47
    %s65 = sphi 0, %s65
    %s67 = sphi 0, %s65
    %s68 = sphi 0, %s67
    %s82 = sphi 0, %s68
    %s86 = sphi 0, %s86
    %s88 = sphi 0, %s86
    %s89 = sphi 0, %s88
    %s103 = sphi 0, %s89
    %s109 = sphi 0, %s111
    %s112 = sphi 0, %s109
    %s113 = sphi 0, %s112
    %s129 = sphi 0, %s113
  $region4: #{efficientnet_b4_transfer_forward.2} parent=0 // loop_header_branch
    %13 = sbr.rel (%p11) target = $region8
  $region5: #{efficientnet_b4_transfer_forward.2} parent=0 // loop_body
    %s15 = ssub.s32 %s10, 1
    %s16 = ssub.s32 %s10, 2
    %s17 = sadd.s32 %s10, 1
    %s18 = ssub.s32 %s10, %s17
    %p19 = scmp.eq.s32.totalorder %s18, 0
    %s21 = sadd.s32 %s20, 1
    %s22 = scalar_select %p19, %s20, %s21
    %p25 = pneg %p19
    %p26 = scmp.eq.s32.totalorder %s10, 1
    %p27 = por %p25, %p26
    %p28 = scmp.ne.s32.totalorder %s20, %s23
    %p29 = scmp.eq.s32.totalorder %s10, 0
    %p30 = por %p28, %p29
    %p31 = scmp.ne.s32.totalorder %s20, %s23
    %p32 = scmp.eq.s32.totalorder %s15, 1
    %p33 = por %p31, %p32
    %p34 = scmp.ne.s32.totalorder %s23, %s24
    %p35 = scmp.eq.s32.totalorder %s15, 0
    %p36 = por %p34, %p35
    %p37 = scmp.ne.s32.totalorder %s23, %s24
    %p38 = scmp.eq.s32.totalorder %s16, 1
    %p39 = por %p37, %p38
    %p41 = scmp.ne.s32.totalorder %s24, %s40
    %p42 = scmp.eq.s32.totalorder %s16, 0
    %p43 = por %p41, %p42
    %s45 = sadd.s32 %s44, 1
    %p48 = scmp.eq.s32.totalorder %s10, 1
    %p49 = scmp.ne.s32.totalorder %s44, %s46
    %p50 = scmp.eq.s32.totalorder %s10, 0
    %p51 = por %p49, %p50
    %p52 = scmp.ne.s32.totalorder %s44, %s46
    %p53 = scmp.eq.s32.totalorder %s15, 1
    %p54 = por %p52, %p53
    %p55 = scmp.ne.s32.totalorder %s46, %s47
    %p56 = scmp.eq.s32.totalorder %s15, 0
    %p57 = por %p55, %p56
    %p58 = scmp.ne.s32.totalorder %s46, %s47
    %p59 = scmp.eq.s32.totalorder %s16, 1
    %p60 = por %p58, %p59
    %p62 = scmp.ne.s32.totalorder %s47, %s61
    %p63 = scmp.eq.s32.totalorder %s16, 0
    %p64 = por %p62, %p63
    %s66 = sadd.s32 %s65, 1
    %p69 = scmp.eq.s32.totalorder %s10, 1
    %p70 = scmp.ne.s32.totalorder %s65, %s67
    %p71 = scmp.eq.s32.totalorder %s10, 0
    %p72 = por %p70, %p71
    %p73 = scmp.ne.s32.totalorder %s65, %s67
    %p74 = scmp.eq.s32.totalorder %s15, 1
    %p75 = por %p73, %p74
    %p76 = scmp.ne.s32.totalorder %s67, %s68
    %p77 = scmp.eq.s32.totalorder %s15, 0
    %p78 = por %p76, %p77
    %p79 = scmp.ne.s32.totalorder %s67, %s68
    %p80 = scmp.eq.s32.totalorder %s16, 1
    %p81 = por %p79, %p80
    %p83 = scmp.ne.s32.totalorder %s68, %s82
    %p84 = scmp.eq.s32.totalorder %s16, 0
    %p85 = por %p83, %p84
    %s87 = sadd.s32 %s86, 1
    %p90 = scmp.eq.s32.totalorder %s10, 1
    %p91 = scmp.ne.s32.totalorder %s86, %s88
    %p92 = scmp.eq.s32.totalorder %s10, 0
    %p93 = por %p91, %p92
    %p94 = scmp.ne.s32.totalorder %s86, %s88
    %p95 = scmp.eq.s32.totalorder %s15, 1
    %p96 = por %p94, %p95
    %p97 = scmp.ne.s32.totalorder %s88, %s89
    %p98 = scmp.eq.s32.totalorder %s15, 0
    %p99 = por %p97, %p98
    %p100 = scmp.ne.s32.totalorder %s88, %s89
    %p101 = scmp.eq.s32.totalorder %s16, 1
    %p102 = por %p100, %p101
    %p104 = scmp.ne.s32.totalorder %s89, %s103
    %p105 = scmp.eq.s32.totalorder %s16, 0
    %p106 = por %p104, %p105
    %s107 = ssub.s32 %s10, %s17
    %p108 = scmp.eq.s32.totalorder %s107, 0
    %s110 = sadd.s32 %s109, 1
    %s111 = scalar_select %p108, %s109, %s110
    %p114 = pneg %p108
    %p115 = scmp.eq.s32.totalorder %s10, 1
    %p116 = por %p114, %p115
    %p117 = scmp.ne.s32.totalorder %s109, %s112
    %p118 = scmp.eq.s32.totalorder %s10, 0
    %p119 = por %p117, %p118
    %p120 = scmp.ne.s32.totalorder %s109, %s112
    %p121 = scmp.eq.s32.totalorder %s15, 1
    %p122 = por %p120, %p121
    %p123 = scmp.ne.s32.totalorder %s112, %s113
    %p124 = scmp.eq.s32.totalorder %s15, 0
    %p125 = por %p123, %p124
    %p126 = scmp.ne.s32.totalorder %s112, %s113
    %p127 = scmp.eq.s32.totalorder %s16, 1
    %p128 = por %p126, %p127
    %p130 = scmp.ne.s32.totalorder %s113, %s129
    %p131 = scmp.eq.s32.totalorder %s16, 0
    %p132 = por %p130, %p131
    %p133 = scmp.le.s32.totalorder 1, %s10
    %p134 = scmp.lt.s32.totalorder %s10, 3
    %p135 = pnand %p133, %p134
    %p136 = pneg %p135
    // Predicated region
    $region9: #{efficientnet_b4_transfer_forward.2} parent=5 // pred_check
      _
    $region10: #{efficientnet_b4_transfer_forward.2} parent=5 // pred_check_branch
      %138 = sbr.rel (%p135) target = $region12
    $region11: #{efficientnet_b4_transfer_forward.2} parent=5 // pred_region
      %s139 = ssub.s32 %s10, 1
      // Predicated region
      $region13: #{efficientnet_b4_transfer_forward.2} parent=11 // pred_check
        %p140 = pneg %p57
      $region14: #{efficientnet_b4_transfer_forward.2} parent=11 // pred_check_branch
        %142 = sbr.rel (%p140) target = $region16
      $region15: #{efficientnet_b4_transfer_forward.2} parent=11 // pred_region
        _
      $region16: #{efficientnet_b4_transfer_forward.2} parent=11 // pred_fallthru
        _
      // Predicated region
      $region17: #{efficientnet_b4_transfer_forward.2} parent=11 // pred_check
        %p143 = pneg %p78
      $region18: #{efficientnet_b4_transfer_forward.2} parent=11 // pred_check_branch
        %145 = sbr.rel (%p143) target = $region20
      $region19: #{efficientnet_b4_transfer_forward.2} parent=11 // pred_region
        _
      $region20: #{efficientnet_b4_transfer_forward.2} parent=11 // pred_fallthru
        _
      // Predicated region
      $region21: #{efficientnet_b4_transfer_forward.2} parent=11 // pred_check
        %p146 = pneg %p99
      $region22: #{efficientnet_b4_transfer_forward.2} parent=11 // pred_check_branch
        %148 = sbr.rel (%p146) target = $region24
      $region23: #{efficientnet_b4_transfer_forward.2} parent=11 // pred_region
        _
      $region24: #{efficientnet_b4_transfer_forward.2} parent=11 // pred_fallthru
        _
    $region12: #{efficientnet_b4_transfer_forward.2} parent=5 // pred_fallthru
      _
    %p149 = scmp.lt.s32.totalorder %s10, 2
    // Predicated region
    $region25: #{efficientnet_b4_transfer_forward.2} parent=5 // pred_check
      %p150 = pneg %p149
    $region26: #{efficientnet_b4_transfer_forward.2} parent=5 // pred_check_branch
      %152 = sbr.rel (%p150) target = $region28
    $region27: #{efficientnet_b4_transfer_forward.2} parent=5 // pred_region
      // Predicated region
      $region29: #{efficientnet_b4_transfer_forward.2} parent=27 // pred_check
        %p153 = pneg %p30
      $region30: #{efficientnet_b4_transfer_forward.2} parent=27 // pred_check_branch
        %155 = sbr.rel (%p153) target = $region32
      $region31: #{efficientnet_b4_transfer_forward.2} parent=27 // pred_region
        %s156 = smul.u32 32, %s10
        %p157 = scmp.lt.s32.totalorder %s156, 63
        %s158 = scalar_select %p157, %s156, 63
        %s159 = smul.addr %s158, 4
        %s160 = scalar_lea.vmem %s0, %s159
        %s161 = smul.u32 32, %s10
      $region32: #{efficientnet_b4_transfer_forward.2} parent=27 // pred_fallthru
        _
    $region28: #{efficientnet_b4_transfer_forward.2} parent=5 // pred_fallthru
      _
    %p162 = scmp.le.s32.totalorder 1, %s10
    %p163 = scmp.lt.s32.totalorder %s10, 3
    %p164 = pnand %p162, %p163
    %p165 = pneg %p164
    // Predicated region
    $region33: #{efficientnet_b4_transfer_forward.2} parent=5 // pred_check
      _
    $region34: #{efficientnet_b4_transfer_forward.2} parent=5 // pred_check_branch
      %167 = sbr.rel (%p164) target = $region36
    $region35: #{efficientnet_b4_transfer_forward.2} parent=5 // pred_region
      %s168 = ssub.s32 %s10, 1
      %s169 = smul.u32 32, %s15
      %p170 = scmp.lt.s32.totalorder %s169, 63
      %s171 = scalar_select %p170, %s169, 63
      %s172 = smul.addr %s171, 4
      %s173 = scalar_lea.vmem %s0, %s172
      %p174 = pneg %p36
      %p175 = pneg %p33
      %p176 = pneg %p57
      %p177 = pneg %p54
      %p178 = pneg %p78
      %p179 = pneg %p75
      %p180 = pneg %p99
      %p181 = pneg %p96
      %p182 = pneg %p125
      %p183 = pneg %p122
      %s184 = smul.u32 32, %s15
      %p185 = scmp.lt.s32.totalorder %s184, 63
      %s186 = scalar_select %p185, %s184, 63
      %s187 = smul.addr %s186, 4
      %s188 = scalar_lea.vmem %s4, %s187
      %s189 = smul.u32 32, %s15
      %p190 = scmp.lt.s32.totalorder %s189, 63
      %s191 = scalar_select %p190, %s189, 63
      %s192 = smul.addr %s191, 4
      %s193 = scalar_lea.vmem %s0, %s192
      %s194 = smul.u32 32, %s15
      %s195 = smul.u32 32, %s15
      %p196 = scmp.lt.s32.totalorder %s195, 63
      %s197 = scalar_select %p196, %s195, 63
      %s198 = smul.addr %s197, 4
      %s199 = scalar_lea.vmem %s4, %s198
      %s200 = smul.u32 32, %s15
      %v201 = vld [vmem:[%s193] sm:$0xf]
      %v202 = vld [vmem:[%s193 + $0x4] sm:$0xf]
      %v203 = vld [vmem:[%s193 + $0x8] sm:$0xf]
      %v204 = vld [vmem:[%s193 + $0xc] sm:$0xf]
      %v205 = vld [vmem:[%s193 + $0x10] sm:$0xf]
      %v206 = vld [vmem:[%s193 + $0x14] sm:$0xf]
      %v207 = vld [vmem:[%s193 + $0x18] sm:$0xf]
      %v208 = vld [vmem:[%s193 + $0x1c] sm:$0xf]
      %v209 = vld [vmem:[%s193 + $0x20] sm:$0xf]
      %v210 = vld [vmem:[%s193 + $0x24] sm:$0xf]
      %v211 = vld [vmem:[%s193 + $0x28] sm:$0xf]
      %v212 = vld [vmem:[%s193 + $0x2c] sm:$0xf]
      %v213 = vld [vmem:[%s193 + $0x30] sm:$0xf]
      %v214 = vld [vmem:[%s193 + $0x34] sm:$0xf]
      %v215 = vld [vmem:[%s193 + $0x38] sm:$0xf]
      %v216 = vld [vmem:[%s193 + $0x3c] sm:$0xf]
      %v217 = vld [vmem:[%s193 + $0x40] sm:$0xf]
      %v218 = vld [vmem:[%s193 + $0x44] sm:$0xf]
      %v219 = vld [vmem:[%s193 + $0x48] sm:$0xf]
      %v220 = vld [vmem:[%s193 + $0x4c] sm:$0xf]
      %v221 = vld [vmem:[%s193 + $0x50] sm:$0xf]
      %v222 = vld [vmem:[%s193 + $0x54] sm:$0xf]
      %v223 = vld [vmem:[%s193 + $0x58] sm:$0xf]
      %v224 = vld [vmem:[%s193 + $0x5c] sm:$0xf]
      %v225 = vld [vmem:[%s193 + $0x60] sm:$0xf]
      %v226 = vld [vmem:[%s193 + $0x64] sm:$0xf]
      %v227 = vld [vmem:[%s193 + $0x68] sm:$0xf]
      %v228 = vld [vmem:[%s193 + $0x6c] sm:$0xf]
      %v229 = vld [vmem:[%s193 + $0x70] sm:$0xf]
      %v230 = vld [vmem:[%s193 + $0x74] sm:$0xf]
      %v231 = vld [vmem:[%s193 + $0x78] sm:$0xf]
      %v232 = vld [vmem:[%s193 + $0x7c] sm:$0xf]
      %v233 = vld [vmem:[%s1] sm:$0xf]
      %v234 = vld [vmem:[%s1 + $0x4] sm:$0xf]
      %v235 = vld [vmem:[%s1 + $0x8] sm:$0xf]
      %v236 = vld [vmem:[%s1 + $0xc] sm:$0xf]
      %v237 = vld [vmem:[%s1 + $0x10] sm:$0xf]
      %v238 = vld [vmem:[%s1 + $0x14] sm:$0xf]
      %v239 = vld [vmem:[%s1 + $0x18] sm:$0xf]
      %v240 = vld [vmem:[%s1 + $0x1c] sm:$0xf]
      %v241 = vld [vmem:[%s1 + $0x20] sm:$0xf]
      %v242 = vld [vmem:[%s1 + $0x24] sm:$0xf]
      %v243 = vld [vmem:[%s1 + $0x28] sm:$0xf]
      %v244 = vld [vmem:[%s1 + $0x2c] sm:$0xf]
      %v245 = vld [vmem:[%s1 + $0x30] sm:$0xf]
      %v246 = vld [vmem:[%s1 + $0x34] sm:$0xf]
      %v247 = vld [vmem:[%s1 + $0x38] sm:$0xf]
      %v248 = vld [vmem:[%s1 + $0x3c] sm:$0xf]
      %v281 = vunpack.c.l.b16 %v201
      %v282 = vunpack.c.l.b16 %v202
      %v283 = vunpack.c.l.b16 %v203
      %v284 = vunpack.c.l.b16 %v204
      %v285 = vunpack.c.l.b16 %v205
      %v286 = vunpack.c.l.b16 %v206
      %v287 = vunpack.c.l.b16 %v207
      %v288 = vunpack.c.l.b16 %v208
      %v289 = vunpack.c.l.b16 %v209
      %v290 = vunpack.c.l.b16 %v210
      %v291 = vunpack.c.l.b16 %v211
      %v292 = vunpack.c.l.b16 %v212
      %v293 = vunpack.c.l.b16 %v213
      %v294 = vunpack.c.l.b16 %v214
      %v295 = vunpack.c.l.b16 %v215
      %v296 = vunpack.c.l.b16 %v216
      %v297 = vunpack.c.l.b16 %v217
      %v298 = vunpack.c.l.b16 %v218
      %v299 = vunpack.c.l.b16 %v219
      %v300 = vunpack.c.l.b16 %v220
      %v301 = vunpack.c.l.b16 %v221
      %v302 = vunpack.c.l.b16 %v222
      %v303 = vunpack.c.l.b16 %v223
      %v304 = vunpack.c.l.b16 %v224
      %v305 = vunpack.c.l.b16 %v225
      %v306 = vunpack.c.l.b16 %v226
      %v307 = vunpack.c.l.b16 %v227
      %v308 = vunpack.c.l.b16 %v228
      %v309 = vunpack.c.l.b16 %v229
      %v310 = vunpack.c.l.b16 %v230
      %v311 = vunpack.c.l.b16 %v231
      %v312 = vunpack.c.l.b16 %v232
      %v313 = vpack.c.b16 %v282, %v281
      %v314 = vpack.c.b16 %v284, %v283
      %v315 = vpack.c.b16 %v286, %v285
      %v316 = vpack.c.b16 %v288, %v287
      %v317 = vpack.c.b16 %v290, %v289
      %v318 = vpack.c.b16 %v292, %v291
      %v319 = vpack.c.b16 %v294, %v293
      %v320 = vpack.c.b16 %v296, %v295
      %v321 = vpack.c.b16 %v298, %v297
      %v322 = vpack.c.b16 %v300, %v299
      %v323 = vpack.c.b16 %v302, %v301
      %v324 = vpack.c.b16 %v304, %v303
      %v325 = vpack.c.b16 %v306, %v305
      %v326 = vpack.c.b16 %v308, %v307
      %v327 = vpack.c.b16 %v310, %v309
      %v328 = vpack.c.b16 %v312, %v311
      %v361 = vunpack.c.l.b16 %v233
      %v362 = vunpack.c.l.b16 %v234
      %v363 = vunpack.c.l.b16 %v235
      %v364 = vunpack.c.l.b16 %v236
      %v365 = vunpack.c.l.b16 %v237
      %v366 = vunpack.c.l.b16 %v238
      %v367 = vunpack.c.l.b16 %v239
      %v368 = vunpack.c.l.b16 %v240
      %v369 = vunpack.c.l.b16 %v241
      %v370 = vunpack.c.l.b16 %v242
      %v371 = vunpack.c.l.b16 %v243
      %v372 = vunpack.c.l.b16 %v244
      %v373 = vunpack.c.l.b16 %v245
      %v374 = vunpack.c.l.b16 %v246
      %v375 = vunpack.c.l.b16 %v247
      %v376 = vunpack.c.l.b16 %v248
      %v377 = vpack.c.b16 %v362, %v361
      %v378 = vpack.c.b16 %v364, %v363
      %v379 = vpack.c.b16 %v366, %v365
      %v380 = vpack.c.b16 %v368, %v367
      %v381 = vpack.c.b16 %v370, %v369
      %v382 = vpack.c.b16 %v372, %v371
      %v383 = vpack.c.b16 %v374, %v373
      %v384 = vpack.c.b16 %v376, %v375
      %393 = vmatpush.bf16.msra.mxu0 %v384
      %394 = vmatpush.bf16.msra.mxu0 %v383
      %395 = vmatpush.bf16.msra.mxu0 %v382
      %396 = vmatpush.bf16.msra.mxu0 %v381
      %397 = vmatpush.bf16.msra.mxu0 %v380
      %398 = vmatpush.bf16.msra.mxu0 %v379
      %399 = vmatpush.bf16.msra.mxu0 %v378
      %400 = vmatpush.bf16.msra.mxu0 %v377
      %401 = vmatmul.bf16.gmra.mxu0 %v313
      %v402 = vpop.f32.mrf.mxu0
      %v403 = vadd.f32 0.0, %v402
      %v404 = vpop.f32.mrf.mxu0
      %v405 = vadd.f32 0.0, %v404
      %406 = vmatmul.bf16.gmra.mxu0 %v314
      %v407 = vpop.f32.mrf.mxu0
      %v408 = vadd.f32 0.0, %v407
      %v409 = vpop.f32.mrf.mxu0
      %v410 = vadd.f32 0.0, %v409
      %411 = vmatmul.bf16.gmra.mxu0 %v315
      %v412 = vpop.f32.mrf.mxu0
      %v413 = vadd.f32 0.0, %v412
      %v414 = vpop.f32.mrf.mxu0
      %v415 = vadd.f32 0.0, %v414
      %416 = vmatmul.bf16.gmra.mxu0 %v316
      %v417 = vpop.f32.mrf.mxu0
      %v418 = vadd.f32 0.0, %v417
      %v419 = vpop.f32.mrf.mxu0
      %v420 = vadd.f32 0.0, %v419
      %421 = vmatmul.bf16.gmra.mxu0 %v317
      %v422 = vpop.f32.mrf.mxu0
      %v423 = vadd.f32 0.0, %v422
      %v424 = vpop.f32.mrf.mxu0
      %v425 = vadd.f32 0.0, %v424
      %426 = vmatmul.bf16.gmra.mxu0 %v318
      %v427 = vpop.f32.mrf.mxu0
      %v428 = vadd.f32 0.0, %v427
      %v429 = vpop.f32.mrf.mxu0
      %v430 = vadd.f32 0.0, %v429
      %431 = vmatmul.bf16.gmra.mxu0 %v319
      %v432 = vpop.f32.mrf.mxu0
      %v433 = vadd.f32 0.0, %v432
      %v434 = vpop.f32.mrf.mxu0
      %v435 = vadd.f32 0.0, %v434
      %436 = vmatmul.bf16.gmra.mxu0 %v320
      %v437 = vpop.f32.mrf.mxu0
      %v438 = vadd.f32 0.0, %v437
      %v439 = vpop.f32.mrf.mxu0
      %v440 = vadd.f32 0.0, %v439
      %441 = vmatmul.bf16.gmra.mxu0 %v321
      %v442 = vpop.f32.mrf.mxu0
      %v443 = vadd.f32 0.0, %v442
      %v444 = vpop.f32.mrf.mxu0
      %v445 = vadd.f32 0.0, %v444
      %446 = vmatmul.bf16.gmra.mxu0 %v322
      %v447 = vpop.f32.mrf.mxu0
      %v448 = vadd.f32 0.0, %v447
      %v449 = vpop.f32.mrf.mxu0
      %v450 = vadd.f32 0.0, %v449
      %451 = vmatmul.bf16.gmra.mxu0 %v323
      %v452 = vpop.f32.mrf.mxu0
      %v453 = vadd.f32 0.0, %v452
      %v454 = vpop.f32.mrf.mxu0
      %v455 = vadd.f32 0.0, %v454
      %456 = vmatmul.bf16.gmra.mxu0 %v324
      %v457 = vpop.f32.mrf.mxu0
      %v458 = vadd.f32 0.0, %v457
      %v459 = vpop.f32.mrf.mxu0
      %v460 = vadd.f32 0.0, %v459
      %461 = vmatmul.bf16.gmra.mxu0 %v325
      %v462 = vpop.f32.mrf.mxu0
      %v463 = vadd.f32 0.0, %v462
      %v464 = vpop.f32.mrf.mxu0
      %v465 = vadd.f32 0.0, %v464
      %466 = vmatmul.bf16.gmra.mxu0 %v326
      %v467 = vpop.f32.mrf.mxu0
      %v468 = vadd.f32 0.0, %v467
      %v469 = vpop.f32.mrf.mxu0
      %v470 = vadd.f32 0.0, %v469
      %471 = vmatmul.bf16.gmra.mxu0 %v327
      %v472 = vpop.f32.mrf.mxu0
      %v473 = vadd.f32 0.0, %v472
      %v474 = vpop.f32.mrf.mxu0
      %v475 = vadd.f32 0.0, %v474
      %476 = vmatmul.bf16.gmra.mxu0 %v328
      %v477 = vpop.f32.mrf.mxu0
      %v478 = vadd.f32 0.0, %v477
      %v479 = vpop.f32.mrf.mxu0
      %v480 = vadd.f32 0.0, %v479
      %481 = vdwg.mxu0
      %v482 = vld [vmem:[%s2] sm:$0x1]
      %v484 = vperm.slane %v482, 0
      %v486 = vmul.f32 %v403, %v484
      %v487 = vmul.f32 %v405, %v484
      %v488 = vmul.f32 %v408, %v484
      %v489 = vmul.f32 %v410, %v484
      %v490 = vmul.f32 %v413, %v484
      %v491 = vmul.f32 %v415, %v484
      %v492 = vmul.f32 %v418, %v484
      %v493 = vmul.f32 %v420, %v484
      %v494 = vmul.f32 %v423, %v484
      %v495 = vmul.f32 %v425, %v484
      %v496 = vmul.f32 %v428, %v484
      %v497 = vmul.f32 %v430, %v484
      %v498 = vmul.f32 %v433, %v484
      %v499 = vmul.f32 %v435, %v484
      %v500 = vmul.f32 %v438, %v484
      %v501 = vmul.f32 %v440, %v484
      %v502 = vmul.f32 %v443, %v484
      %v503 = vmul.f32 %v445, %v484
      %v504 = vmul.f32 %v448, %v484
      %v505 = vmul.f32 %v450, %v484
      %v506 = vmul.f32 %v453, %v484
      %v507 = vmul.f32 %v455, %v484
      %v508 = vmul.f32 %v458, %v484
      %v509 = vmul.f32 %v460, %v484
      %v510 = vmul.f32 %v463, %v484
      %v511 = vmul.f32 %v465, %v484
      %v512 = vmul.f32 %v468, %v484
      %v513 = vmul.f32 %v470, %v484
      %v514 = vmul.f32 %v473, %v484
      %v515 = vmul.f32 %v475, %v484
      %v516 = vmul.f32 %v478, %v484
      %v517 = vmul.f32 %v480, %v484
      %v518 = vld [vmem:[%s3] sm:$0x1]
      %v520 = vperm.slane %v518, 0
      %v522 = vadd.f32 %v486, %v520
      %v523 = vadd.f32 %v487, %v520
      %v524 = vadd.f32 %v488, %v520
      %v525 = vadd.f32 %v489, %v520
      %v526 = vadd.f32 %v490, %v520
      %v527 = vadd.f32 %v491, %v520
      %v528 = vadd.f32 %v492, %v520
      %v529 = vadd.f32 %v493, %v520
      %v530 = vadd.f32 %v494, %v520
      %v531 = vadd.f32 %v495, %v520
      %v532 = vadd.f32 %v496, %v520
      %v533 = vadd.f32 %v497, %v520
      %v534 = vadd.f32 %v498, %v520
      %v535 = vadd.f32 %v499, %v520
      %v536 = vadd.f32 %v500, %v520
      %v537 = vadd.f32 %v501, %v520
      %v538 = vadd.f32 %v502, %v520
      %v539 = vadd.f32 %v503, %v520
      %v540 = vadd.f32 %v504, %v520
      %v541 = vadd.f32 %v505, %v520
      %v542 = vadd.f32 %v506, %v520
      %v543 = vadd.f32 %v507, %v520
      %v544 = vadd.f32 %v508, %v520
      %v545 = vadd.f32 %v509, %v520
      %v546 = vadd.f32 %v510, %v520
      %v547 = vadd.f32 %v511, %v520
      %v548 = vadd.f32 %v512, %v520
      %v549 = vadd.f32 %v513, %v520
      %v550 = vadd.f32 %v514, %v520
      %v551 = vadd.f32 %v515, %v520
      %v552 = vadd.f32 %v516, %v520
      %v553 = vadd.f32 %v517, %v520
      %v554 = vxor.u32 %v522, 2147483648
      %v555 = vxor.u32 %v523, 2147483648
      %v556 = vxor.u32 %v524, 2147483648
      %v557 = vxor.u32 %v525, 2147483648
      %v558 = vxor.u32 %v526, 2147483648
      %v559 = vxor.u32 %v527, 2147483648
      %v560 = vxor.u32 %v528, 2147483648
      %v561 = vxor.u32 %v529, 2147483648
      %v562 = vxor.u32 %v530, 2147483648
      %v563 = vxor.u32 %v531, 2147483648
      %v564 = vxor.u32 %v532, 2147483648
      %v565 = vxor.u32 %v533, 2147483648
      %v566 = vxor.u32 %v534, 2147483648
      %v567 = vxor.u32 %v535, 2147483648
      %v568 = vxor.u32 %v536, 2147483648
      %v569 = vxor.u32 %v537, 2147483648
      %v570 = vxor.u32 %v538, 2147483648
      %v571 = vxor.u32 %v539, 2147483648
      %v572 = vxor.u32 %v540, 2147483648
      %v573 = vxor.u32 %v541, 2147483648
      %v574 = vxor.u32 %v542, 2147483648
      %v575 = vxor.u32 %v543, 2147483648
      %v576 = vxor.u32 %v544, 2147483648
      %v577 = vxor.u32 %v545, 2147483648
      %v578 = vxor.u32 %v546, 2147483648
      %v579 = vxor.u32 %v547, 2147483648
      %v580 = vxor.u32 %v548, 2147483648
      %v581 = vxor.u32 %v549, 2147483648
      %v582 = vxor.u32 %v550, 2147483648
      %v583 = vxor.u32 %v551, 2147483648
      %v584 = vxor.u32 %v552, 2147483648
      %v585 = vxor.u32 %v553, 2147483648
      %v586 = vmul.f32 %v554, 1.442695
      %v587 = vpow.pop %v586
      %v588 = vmul.f32 %v555, 1.442695
      %v589 = vpow.pop %v588
      %v590 = vmul.f32 %v556, 1.442695
      %v591 = vpow.pop %v590
      %v592 = vmul.f32 %v557, 1.442695
      %v593 = vpow.pop %v592
      %v594 = vmul.f32 %v558, 1.442695
      %v595 = vpow.pop %v594
      %v596 = vmul.f32 %v559, 1.442695
      %v597 = vpow.pop %v596
      %v598 = vmul.f32 %v560, 1.442695
      %v599 = vpow.pop %v598
      %v600 = vmul.f32 %v561, 1.442695
      %v601 = vpow.pop %v600
      %v602 = vmul.f32 %v562, 1.442695
      %v603 = vpow.pop %v602
      %v604 = vmul.f32 %v563, 1.442695
      %v605 = vpow.pop %v604
      %v606 = vmul.f32 %v564, 1.442695
      %v607 = vpow.pop %v606
      %v608 = vmul.f32 %v565, 1.442695
      %v609 = vpow.pop %v608
      %v610 = vmul.f32 %v566, 1.442695
      %v611 = vpow.pop %v610
      %v612 = vmul.f32 %v567, 1.442695
      %v613 = vpow.pop %v612
      %v614 = vmul.f32 %v568, 1.442695
      %v615 = vpow.pop %v614
      %v616 = vmul.f32 %v569, 1.442695
      %v617 = vpow.pop %v616
      %v618 = vmul.f32 %v570, 1.442695
      %v619 = vpow.pop %v618
      %v620 = vmul.f32 %v571, 1.442695
      %v621 = vpow.pop %v620
      %v622 = vmul.f32 %v572, 1.442695
      %v623 = vpow.pop %v622
      %v624 = vmul.f32 %v573, 1.442695
      %v625 = vpow.pop %v624
      %v626 = vmul.f32 %v574, 1.442695
      %v627 = vpow.pop %v626
      %v628 = vmul.f32 %v575, 1.442695
      %v629 = vpow.pop %v628
      %v630 = vmul.f32 %v576, 1.442695
      %v631 = vpow.pop %v630
      %v632 = vmul.f32 %v577, 1.442695
      %v633 = vpow.pop %v632
      %v634 = vmul.f32 %v578, 1.442695
      %v635 = vpow.pop %v634
      %v636 = vmul.f32 %v579, 1.442695
      %v637 = vpow.pop %v636
      %v638 = vmul.f32 %v580, 1.442695
      %v639 = vpow.pop %v638
      %v640 = vmul.f32 %v581, 1.442695
      %v641 = vpow.pop %v640
      %v642 = vmul.f32 %v582, 1.442695
      %v643 = vpow.pop %v642
      %v644 = vmul.f32 %v583, 1.442695
      %v645 = vpow.pop %v644
      %v646 = vmul.f32 %v584, 1.442695
      %v647 = vpow.pop %v646
      %v648 = vmul.f32 %v585, 1.442695
      %v649 = vpow.pop %v648
      %v650 = vadd.f32 %v587, 1.0
      %v651 = vadd.f32 %v589, 1.0
      %v652 = vadd.f32 %v591, 1.0
      %v653 = vadd.f32 %v593, 1.0
      %v654 = vadd.f32 %v595, 1.0
      %v655 = vadd.f32 %v597, 1.0
      %v656 = vadd.f32 %v599, 1.0
      %v657 = vadd.f32 %v601, 1.0
      %v658 = vadd.f32 %v603, 1.0
      %v659 = vadd.f32 %v605, 1.0
      %v660 = vadd.f32 %v607, 1.0
      %v661 = vadd.f32 %v609, 1.0
      %v662 = vadd.f32 %v611, 1.0
      %v663 = vadd.f32 %v613, 1.0
      %v664 = vadd.f32 %v615, 1.0
      %v665 = vadd.f32 %v617, 1.0
      %v666 = vadd.f32 %v619, 1.0
      %v667 = vadd.f32 %v621, 1.0
      %v668 = vadd.f32 %v623, 1.0
      %v669 = vadd.f32 %v625, 1.0
      %v670 = vadd.f32 %v627, 1.0
      %v671 = vadd.f32 %v629, 1.0
      %v672 = vadd.f32 %v631, 1.0
      %v673 = vadd.f32 %v633, 1.0
      %v674 = vadd.f32 %v635, 1.0
      %v675 = vadd.f32 %v637, 1.0
      %v676 = vadd.f32 %v639, 1.0
      %v677 = vadd.f32 %v641, 1.0
      %v678 = vadd.f32 %v643, 1.0
      %v679 = vadd.f32 %v645, 1.0
      %v680 = vadd.f32 %v647, 1.0
      %v681 = vadd.f32 %v649, 1.0
      %v682 = vrcp.pop %v650
      %v683 = vmul.f32 %v650, %v682
      %v684 = vsub.f32 1.0, %v683
      %v685 = vmul.f32 %v682, %v684
      %v686 = vadd.f32 %v682, %v685
      %vm687 = vweird.f32 %v650
      %vm688 = vweird.f32 %v682
      %vm689 = vmor %vm687, %vm688
      %v690 = vsel %vm689, %v682, %v686
      %v691 = vand.u32 2147483647, %v650
      %vm692 = vcmp.eq.f32.partialorder %v691, 8.507059e+37
      %v693 = vand.u32 %v650, 2147483648
      %v694 = vor.u32 1.1754944e-38, %v693
      %v695 = vsel %vm692, %v694, %v690
      %v696 = vmul.f32 1.0, %v695
      %v697 = vrcp.pop %v651
      %v698 = vmul.f32 %v651, %v697
      %v699 = vsub.f32 1.0, %v698
      %v700 = vmul.f32 %v697, %v699
      %v701 = vadd.f32 %v697, %v700
      %vm702 = vweird.f32 %v651
      %vm703 = vweird.f32 %v697
      %vm704 = vmor %vm702, %vm703
      %v705 = vsel %vm704, %v697, %v701
      %v706 = vand.u32 2147483647, %v651
      %vm707 = vcmp.eq.f32.partialorder %v706, 8.507059e+37
      %v708 = vand.u32 %v651, 2147483648
      %v709 = vor.u32 1.1754944e-38, %v708
      %v710 = vsel %vm707, %v709, %v705
      %v711 = vmul.f32 1.0, %v710
      %v712 = vrcp.pop %v652
      %v713 = vmul.f32 %v652, %v712
      %v714 = vsub.f32 1.0, %v713
      %v715 = vmul.f32 %v712, %v714
      %v716 = vadd.f32 %v712, %v715
      %vm717 = vweird.f32 %v652
      %vm718 = vweird.f32 %v712
      %vm719 = vmor %vm717, %vm718
      %v720 = vsel %vm719, %v712, %v716
      %v721 = vand.u32 2147483647, %v652
      %vm722 = vcmp.eq.f32.partialorder %v721, 8.507059e+37
      %v723 = vand.u32 %v652, 2147483648
      %v724 = vor.u32 1.1754944e-38, %v723
      %v725 = vsel %vm722, %v724, %v720
      %v726 = vmul.f32 1.0, %v725
      %v727 = vrcp.pop %v653
      %v728 = vmul.f32 %v653, %v727
      %v729 = vsub.f32 1.0, %v728
      %v730 = vmul.f32 %v727, %v729
      %v731 = vadd.f32 %v727, %v730
      %vm732 = vweird.f32 %v653
      %vm733 = vweird.f32 %v727
      %vm734 = vmor %vm732, %vm733
      %v735 = vsel %vm734, %v727, %v731
      %v736 = vand.u32 2147483647, %v653
      %vm737 = vcmp.eq.f32.partialorder %v736, 8.507059e+37
      %v738 = vand.u32 %v653, 2147483648
      %v739 = vor.u32 1.1754944e-38, %v738
      %v740 = vsel %vm737, %v739, %v735
      %v741 = vmul.f32 1.0, %v740
      %v742 = vrcp.pop %v654
      %v743 = vmul.f32 %v654, %v742
      %v744 = vsub.f32 1.0, %v743
      %v745 = vmul.f32 %v742, %v744
      %v746 = vadd.f32 %v742, %v745
      %vm747 = vweird.f32 %v654
      %vm748 = vweird.f32 %v742
      %vm749 = vmor %vm747, %vm748
      %v750 = vsel %vm749, %v742, %v746
      %v751 = vand.u32 2147483647, %v654
      %vm752 = vcmp.eq.f32.partialorder %v751, 8.507059e+37
      %v753 = vand.u32 %v654, 2147483648
      %v754 = vor.u32 1.1754944e-38, %v753
      %v755 = vsel %vm752, %v754, %v750
      %v756 = vmul.f32 1.0, %v755
      %v757 = vrcp.pop %v655
      %v758 = vmul.f32 %v655, %v757
      %v759 = vsub.f32 1.0, %v758
      %v760 = vmul.f32 %v757, %v759
      %v761 = vadd.f32 %v757, %v760
      %vm762 = vweird.f32 %v655
      %vm763 = vweird.f32 %v757
      %vm764 = vmor %vm762, %vm763
      %v765 = vsel %vm764, %v757, %v761
      %v766 = vand.u32 2147483647, %v655
      %vm767 = vcmp.eq.f32.partialorder %v766, 8.507059e+37
      %v768 = vand.u32 %v655, 2147483648
      %v769 = vor.u32 1.1754944e-38, %v768
      %v770 = vsel %vm767, %v769, %v765
      %v771 = vmul.f32 1.0, %v770
      %v772 = vrcp.pop %v656
      %v773 = vmul.f32 %v656, %v772
      %v774 = vsub.f32 1.0, %v773
      %v775 = vmul.f32 %v772, %v774
      %v776 = vadd.f32 %v772, %v775
      %vm777 = vweird.f32 %v656
      %vm778 = vweird.f32 %v772
      %vm779 = vmor %vm777, %vm778
      %v780 = vsel %vm779, %v772, %v776
      %v781 = vand.u32 2147483647, %v656
      %vm782 = vcmp.eq.f32.partialorder %v781, 8.507059e+37
      %v783 = vand.u32 %v656, 2147483648
      %v784 = vor.u32 1.1754944e-38, %v783
      %v785 = vsel %vm782, %v784, %v780
      %v786 = vmul.f32 1.0, %v785
      %v787 = vrcp.pop %v657
      %v788 = vmul.f32 %v657, %v787
      %v789 = vsub.f32 1.0, %v788
      %v790 = vmul.f32 %v787, %v789
      %v791 = vadd.f32 %v787, %v790
      %vm792 = vweird.f32 %v657
      %vm793 = vweird.f32 %v787
      %vm794 = vmor %vm792, %vm793
      %v795 = vsel %vm794, %v787, %v791
      %v796 = vand.u32 2147483647, %v657
      %vm797 = vcmp.eq.f32.partialorder %v796, 8.507059e+37
      %v798 = vand.u32 %v657, 2147483648
      %v799 = vor.u32 1.1754944e-38, %v798
      %v800 = vsel %vm797, %v799, %v795
      %v801 = vmul.f32 1.0, %v800
      %v802 = vrcp.pop %v658
      %v803 = vmul.f32 %v658, %v802
      %v804 = vsub.f32 1.0, %v803
      %v805 = vmul.f32 %v802, %v804
      %v806 = vadd.f32 %v802, %v805
      %vm807 = vweird.f32 %v658
      %vm808 = vweird.f32 %v802
      %vm809 = vmor %vm807, %vm808
      %v810 = vsel %vm809, %v802, %v806
      %v811 = vand.u32 2147483647, %v658
      %vm812 = vcmp.eq.f32.partialorder %v811, 8.507059e+37
      %v813 = vand.u32 %v658, 2147483648
      %v814 = vor.u32 1.1754944e-38, %v813
      %v815 = vsel %vm812, %v814, %v810
      %v816 = vmul.f32 1.0, %v815
      %v817 = vrcp.pop %v659
      %v818 = vmul.f32 %v659, %v817
      %v819 = vsub.f32 1.0, %v818
      %v820 = vmul.f32 %v817, %v819
      %v821 = vadd.f32 %v817, %v820
      %vm822 = vweird.f32 %v659
      %vm823 = vweird.f32 %v817
      %vm824 = vmor %vm822, %vm823
      %v825 = vsel %vm824, %v817, %v821
      %v826 = vand.u32 2147483647, %v659
      %vm827 = vcmp.eq.f32.partialorder %v826, 8.507059e+37
      %v828 = vand.u32 %v659, 2147483648
      %v829 = vor.u32 1.1754944e-38, %v828
      %v830 = vsel %vm827, %v829, %v825
      %v831 = vmul.f32 1.0, %v830
      %v832 = vrcp.pop %v660
      %v833 = vmul.f32 %v660, %v832
      %v834 = vsub.f32 1.0, %v833
      %v835 = vmul.f32 %v832, %v834
      %v836 = vadd.f32 %v832, %v835
      %vm837 = vweird.f32 %v660
      %vm838 = vweird.f32 %v832
      %vm839 = vmor %vm837, %vm838
      %v840 = vsel %vm839, %v832, %v836
      %v841 = vand.u32 2147483647, %v660
      %vm842 = vcmp.eq.f32.partialorder %v841, 8.507059e+37
      %v843 = vand.u32 %v660, 2147483648
      %v844 = vor.u32 1.1754944e-38, %v843
      %v845 = vsel %vm842, %v844, %v840
      %v846 = vmul.f32 1.0, %v845
      %v847 = vrcp.pop %v661
      %v848 = vmul.f32 %v661, %v847
      %v849 = vsub.f32 1.0, %v848
      %v850 = vmul.f32 %v847, %v849
      %v851 = vadd.f32 %v847, %v850
      %vm852 = vweird.f32 %v661
      %vm853 = vweird.f32 %v847
      %vm854 = vmor %vm852, %vm853
      %v855 = vsel %vm854, %v847, %v851
      %v856 = vand.u32 2147483647, %v661
      %vm857 = vcmp.eq.f32.partialorder %v856, 8.507059e+37
      %v858 = vand.u32 %v661, 2147483648
      %v859 = vor.u32 1.1754944e-38, %v858
      %v860 = vsel %vm857, %v859, %v855
      %v861 = vmul.f32 1.0, %v860
      %v862 = vrcp.pop %v662
      %v863 = vmul.f32 %v662, %v862
      %v864 = vsub.f32 1.0, %v863
      %v865 = vmul.f32 %v862, %v864
      %v866 = vadd.f32 %v862, %v865
      %vm867 = vweird.f32 %v662
      %vm868 = vweird.f32 %v862
      %vm869 = vmor %vm867, %vm868
      %v870 = vsel %vm869, %v862, %v866
      %v871 = vand.u32 2147483647, %v662
      %vm872 = vcmp.eq.f32.partialorder %v871, 8.507059e+37
      %v873 = vand.u32 %v662, 2147483648
      %v874 = vor.u32 1.1754944e-38, %v873
      %v875 = vsel %vm872, %v874, %v870
      %v876 = vmul.f32 1.0, %v875
      %v877 = vrcp.pop %v663
      %v878 = vmul.f32 %v663, %v877
      %v879 = vsub.f32 1.0, %v878
      %v880 = vmul.f32 %v877, %v879
      %v881 = vadd.f32 %v877, %v880
      %vm882 = vweird.f32 %v663
      %vm883 = vweird.f32 %v877
      %vm884 = vmor %vm882, %vm883
      %v885 = vsel %vm884, %v877, %v881
      %v886 = vand.u32 2147483647, %v663
      %vm887 = vcmp.eq.f32.partialorder %v886, 8.507059e+37
      %v888 = vand.u32 %v663, 2147483648
      %v889 = vor.u32 1.1754944e-38, %v888
      %v890 = vsel %vm887, %v889, %v885
      %v891 = vmul.f32 1.0, %v890
      %v892 = vrcp.pop %v664
      %v893 = vmul.f32 %v664, %v892
      %v894 = vsub.f32 1.0, %v893
      %v895 = vmul.f32 %v892, %v894
      %v896 = vadd.f32 %v892, %v895
      %vm897 = vweird.f32 %v664
      %vm898 = vweird.f32 %v892
      %vm899 = vmor %vm897, %vm898
      %v900 = vsel %vm899, %v892, %v896
      %v901 = vand.u32 2147483647, %v664
      %vm902 = vcmp.eq.f32.partialorder %v901, 8.507059e+37
      %v903 = vand.u32 %v664, 2147483648
      %v904 = vor.u32 1.1754944e-38, %v903
      %v905 = vsel %vm902, %v904, %v900
      %v906 = vmul.f32 1.0, %v905
      %v907 = vrcp.pop %v665
      %v908 = vmul.f32 %v665, %v907
      %v909 = vsub.f32 1.0, %v908
      %v910 = vmul.f32 %v907, %v909
      %v911 = vadd.f32 %v907, %v910
      %vm912 = vweird.f32 %v665
      %vm913 = vweird.f32 %v907
      %vm914 = vmor %vm912, %vm913
      %v915 = vsel %vm914, %v907, %v911
      %v916 = vand.u32 2147483647, %v665
      %vm917 = vcmp.eq.f32.partialorder %v916, 8.507059e+37
      %v918 = vand.u32 %v665, 2147483648
      %v919 = vor.u32 1.1754944e-38, %v918
      %v920 = vsel %vm917, %v919, %v915
      %v921 = vmul.f32 1.0, %v920
      %v922 = vrcp.pop %v666
      %v923 = vmul.f32 %v666, %v922
      %v924 = vsub.f32 1.0, %v923
      %v925 = vmul.f32 %v922, %v924
      %v926 = vadd.f32 %v922, %v925
      %vm927 = vweird.f32 %v666
      %vm928 = vweird.f32 %v922
      %vm929 = vmor %vm927, %vm928
      %v930 = vsel %vm929, %v922, %v926
      %v931 = vand.u32 2147483647, %v666
      %vm932 = vcmp.eq.f32.partialorder %v931, 8.507059e+37
      %v933 = vand.u32 %v666, 2147483648
      %v934 = vor.u32 1.1754944e-38, %v933
      %v935 = vsel %vm932, %v934, %v930
      %v936 = vmul.f32 1.0, %v935
      %v937 = vrcp.pop %v667
      %v938 = vmul.f32 %v667, %v937
      %v939 = vsub.f32 1.0, %v938
      %v940 = vmul.f32 %v937, %v939
      %v941 = vadd.f32 %v937, %v940
      %vm942 = vweird.f32 %v667
      %vm943 = vweird.f32 %v937
      %vm944 = vmor %vm942, %vm943
      %v945 = vsel %vm944, %v937, %v941
      %v946 = vand.u32 2147483647, %v667
      %vm947 = vcmp.eq.f32.partialorder %v946, 8.507059e+37
      %v948 = vand.u32 %v667, 2147483648
      %v949 = vor.u32 1.1754944e-38, %v948
      %v950 = vsel %vm947, %v949, %v945
      %v951 = vmul.f32 1.0, %v950
      %v952 = vrcp.pop %v668
      %v953 = vmul.f32 %v668, %v952
      %v954 = vsub.f32 1.0, %v953
      %v955 = vmul.f32 %v952, %v954
      %v956 = vadd.f32 %v952, %v955
      %vm957 = vweird.f32 %v668
      %vm958 = vweird.f32 %v952
      %vm959 = vmor %vm957, %vm958
      %v960 = vsel %vm959, %v952, %v956
      %v961 = vand.u32 2147483647, %v668
      %vm962 = vcmp.eq.f32.partialorder %v961, 8.507059e+37
      %v963 = vand.u32 %v668, 2147483648
      %v964 = vor.u32 1.1754944e-38, %v963
      %v965 = vsel %vm962, %v964, %v960
      %v966 = vmul.f32 1.0, %v965
      %v967 = vrcp.pop %v669
      %v968 = vmul.f32 %v669, %v967
      %v969 = vsub.f32 1.0, %v968
      %v970 = vmul.f32 %v967, %v969
      %v971 = vadd.f32 %v967, %v970
      %vm972 = vweird.f32 %v669
      %vm973 = vweird.f32 %v967
      %vm974 = vmor %vm972, %vm973
      %v975 = vsel %vm974, %v967, %v971
      %v976 = vand.u32 2147483647, %v669
      %vm977 = vcmp.eq.f32.partialorder %v976, 8.507059e+37
      %v978 = vand.u32 %v669, 2147483648
      %v979 = vor.u32 1.1754944e-38, %v978
      %v980 = vsel %vm977, %v979, %v975
      %v981 = vmul.f32 1.0, %v980
      %v982 = vrcp.pop %v670
      %v983 = vmul.f32 %v670, %v982
      %v984 = vsub.f32 1.0, %v983
      %v985 = vmul.f32 %v982, %v984
      %v986 = vadd.f32 %v982, %v985
      %vm987 = vweird.f32 %v670
      %vm988 = vweird.f32 %v982
      %vm989 = vmor %vm987, %vm988
      %v990 = vsel %vm989, %v982, %v986
      %v991 = vand.u32 2147483647, %v670
      %vm992 = vcmp.eq.f32.partialorder %v991, 8.507059e+37
      %v993 = vand.u32 %v670, 2147483648
      %v994 = vor.u32 1.1754944e-38, %v993
      %v995 = vsel %vm992, %v994, %v990
      %v996 = vmul.f32 1.0, %v995
      %v997 = vrcp.pop %v671
      %v998 = vmul.f32 %v671, %v997
      %v999 = vsub.f32 1.0, %v998
      %v1000 = vmul.f32 %v997, %v999
      %v1001 = vadd.f32 %v997, %v1000
      %vm1002 = vweird.f32 %v671
      %vm1003 = vweird.f32 %v997
      %vm1004 = vmor %vm1002, %vm1003
      %v1005 = vsel %vm1004, %v997, %v1001
      %v1006 = vand.u32 2147483647, %v671
      %vm1007 = vcmp.eq.f32.partialorder %v1006, 8.507059e+37
      %v1008 = vand.u32 %v671, 2147483648
      %v1009 = vor.u32 1.1754944e-38, %v1008
      %v1010 = vsel %vm1007, %v1009, %v1005
      %v1011 = vmul.f32 1.0, %v1010
      %v1012 = vrcp.pop %v672
      %v1013 = vmul.f32 %v672, %v1012
      %v1014 = vsub.f32 1.0, %v1013
      %v1015 = vmul.f32 %v1012, %v1014
      %v1016 = vadd.f32 %v1012, %v1015
      %vm1017 = vweird.f32 %v672
      %vm1018 = vweird.f32 %v1012
      %vm1019 = vmor %vm1017, %vm1018
      %v1020 = vsel %vm1019, %v1012, %v1016
      %v1021 = vand.u32 2147483647, %v672
      %vm1022 = vcmp.eq.f32.partialorder %v1021, 8.507059e+37
      %v1023 = vand.u32 %v672, 2147483648
      %v1024 = vor.u32 1.1754944e-38, %v1023
      %v1025 = vsel %vm1022, %v1024, %v1020
      %v1026 = vmul.f32 1.0, %v1025
      %v1027 = vrcp.pop %v673
      %v1028 = vmul.f32 %v673, %v1027
      %v1029 = vsub.f32 1.0, %v1028
      %v1030 = vmul.f32 %v1027, %v1029
      %v1031 = vadd.f32 %v1027, %v1030
      %vm1032 = vweird.f32 %v673
      %vm1033 = vweird.f32 %v1027
      %vm1034 = vmor %vm1032, %vm1033
      %v1035 = vsel %vm1034, %v1027, %v1031
      %v1036 = vand.u32 2147483647, %v673
      %vm1037 = vcmp.eq.f32.partialorder %v1036, 8.507059e+37
      %v1038 = vand.u32 %v673, 2147483648
      %v1039 = vor.u32 1.1754944e-38, %v1038
      %v1040 = vsel %vm1037, %v1039, %v1035
      %v1041 = vmul.f32 1.0, %v1040
      %v1042 = vrcp.pop %v674
      %v1043 = vmul.f32 %v674, %v1042
      %v1044 = vsub.f32 1.0, %v1043
      %v1045 = vmul.f32 %v1042, %v1044
      %v1046 = vadd.f32 %v1042, %v1045
      %vm1047 = vweird.f32 %v674
      %vm1048 = vweird.f32 %v1042
      %vm1049 = vmor %vm1047, %vm1048
      %v1050 = vsel %vm1049, %v1042, %v1046
      %v1051 = vand.u32 2147483647, %v674
      %vm1052 = vcmp.eq.f32.partialorder %v1051, 8.507059e+37
      %v1053 = vand.u32 %v674, 2147483648
      %v1054 = vor.u32 1.1754944e-38, %v1053
      %v1055 = vsel %vm1052, %v1054, %v1050
      %v1056 = vmul.f32 1.0, %v1055
      %v1057 = vrcp.pop %v675
      %v1058 = vmul.f32 %v675, %v1057
      %v1059 = vsub.f32 1.0, %v1058
      %v1060 = vmul.f32 %v1057, %v1059
      %v1061 = vadd.f32 %v1057, %v1060
      %vm1062 = vweird.f32 %v675
      %vm1063 = vweird.f32 %v1057
      %vm1064 = vmor %vm1062, %vm1063
      %v1065 = vsel %vm1064, %v1057, %v1061
      %v1066 = vand.u32 2147483647, %v675
      %vm1067 = vcmp.eq.f32.partialorder %v1066, 8.507059e+37
      %v1068 = vand.u32 %v675, 2147483648
      %v1069 = vor.u32 1.1754944e-38, %v1068
      %v1070 = vsel %vm1067, %v1069, %v1065
      %v1071 = vmul.f32 1.0, %v1070
      %v1072 = vrcp.pop %v676
      %v1073 = vmul.f32 %v676, %v1072
      %v1074 = vsub.f32 1.0, %v1073
      %v1075 = vmul.f32 %v1072, %v1074
      %v1076 = vadd.f32 %v1072, %v1075
      %vm1077 = vweird.f32 %v676
      %vm1078 = vweird.f32 %v1072
      %vm1079 = vmor %vm1077, %vm1078
      %v1080 = vsel %vm1079, %v1072, %v1076
      %v1081 = vand.u32 2147483647, %v676
      %vm1082 = vcmp.eq.f32.partialorder %v1081, 8.507059e+37
      %v1083 = vand.u32 %v676, 2147483648
      %v1084 = vor.u32 1.1754944e-38, %v1083
      %v1085 = vsel %vm1082, %v1084, %v1080
      %v1086 = vmul.f32 1.0, %v1085
      %v1087 = vrcp.pop %v677
      %v1088 = vmul.f32 %v677, %v1087
      %v1089 = vsub.f32 1.0, %v1088
      %v1090 = vmul.f32 %v1087, %v1089
      %v1091 = vadd.f32 %v1087, %v1090
      %vm1092 = vweird.f32 %v677
      %vm1093 = vweird.f32 %v1087
      %vm1094 = vmor %vm1092, %vm1093
      %v1095 = vsel %vm1094, %v1087, %v1091
      %v1096 = vand.u32 2147483647, %v677
      %vm1097 = vcmp.eq.f32.partialorder %v1096, 8.507059e+37
      %v1098 = vand.u32 %v677, 2147483648
      %v1099 = vor.u32 1.1754944e-38, %v1098
      %v1100 = vsel %vm1097, %v1099, %v1095
      %v1101 = vmul.f32 1.0, %v1100
      %v1102 = vrcp.pop %v678
      %v1103 = vmul.f32 %v678, %v1102
      %v1104 = vsub.f32 1.0, %v1103
      %v1105 = vmul.f32 %v1102, %v1104
      %v1106 = vadd.f32 %v1102, %v1105
      %vm1107 = vweird.f32 %v678
      %vm1108 = vweird.f32 %v1102
      %vm1109 = vmor %vm1107, %vm1108
      %v1110 = vsel %vm1109, %v1102, %v1106
      %v1111 = vand.u32 2147483647, %v678
      %vm1112 = vcmp.eq.f32.partialorder %v1111, 8.507059e+37
      %v1113 = vand.u32 %v678, 2147483648
      %v1114 = vor.u32 1.1754944e-38, %v1113
      %v1115 = vsel %vm1112, %v1114, %v1110
      %v1116 = vmul.f32 1.0, %v1115
      %v1117 = vrcp.pop %v679
      %v1118 = vmul.f32 %v679, %v1117
      %v1119 = vsub.f32 1.0, %v1118
      %v1120 = vmul.f32 %v1117, %v1119
      %v1121 = vadd.f32 %v1117, %v1120
      %vm1122 = vweird.f32 %v679
      %vm1123 = vweird.f32 %v1117
      %vm1124 = vmor %vm1122, %vm1123
      %v1125 = vsel %vm1124, %v1117, %v1121
      %v1126 = vand.u32 2147483647, %v679
      %vm1127 = vcmp.eq.f32.partialorder %v1126, 8.507059e+37
      %v1128 = vand.u32 %v679, 2147483648
      %v1129 = vor.u32 1.1754944e-38, %v1128
      %v1130 = vsel %vm1127, %v1129, %v1125
      %v1131 = vmul.f32 1.0, %v1130
      %v1132 = vrcp.pop %v680
      %v1133 = vmul.f32 %v680, %v1132
      %v1134 = vsub.f32 1.0, %v1133
      %v1135 = vmul.f32 %v1132, %v1134
      %v1136 = vadd.f32 %v1132, %v1135
      %vm1137 = vweird.f32 %v680
      %vm1138 = vweird.f32 %v1132
      %vm1139 = vmor %vm1137, %vm1138
      %v1140 = vsel %vm1139, %v1132, %v1136
      %v1141 = vand.u32 2147483647, %v680
      %vm1142 = vcmp.eq.f32.partialorder %v1141, 8.507059e+37
      %v1143 = vand.u32 %v680, 2147483648
      %v1144 = vor.u32 1.1754944e-38, %v1143
      %v1145 = vsel %vm1142, %v1144, %v1140
      %v1146 = vmul.f32 1.0, %v1145
      %v1147 = vrcp.pop %v681
      %v1148 = vmul.f32 %v681, %v1147
      %v1149 = vsub.f32 1.0, %v1148
      %v1150 = vmul.f32 %v1147, %v1149
      %v1151 = vadd.f32 %v1147, %v1150
      %vm1152 = vweird.f32 %v681
      %vm1153 = vweird.f32 %v1147
      %vm1154 = vmor %vm1152, %vm1153
      %v1155 = vsel %vm1154, %v1147, %v1151
      %v1156 = vand.u32 2147483647, %v681
      %vm1157 = vcmp.eq.f32.partialorder %v1156, 8.507059e+37
      %v1158 = vand.u32 %v681, 2147483648
      %v1159 = vor.u32 1.1754944e-38, %v1158
      %v1160 = vsel %vm1157, %v1159, %v1155
      %v1161 = vmul.f32 1.0, %v1160
      %v1162 = vmul.f32 %v522, %v696
      %v1163 = vmul.f32 %v523, %v711
      %v1164 = vmul.f32 %v524, %v726
      %v1165 = vmul.f32 %v525, %v741
      %v1166 = vmul.f32 %v526, %v756
      %v1167 = vmul.f32 %v527, %v771
      %v1168 = vmul.f32 %v528, %v786
      %v1169 = vmul.f32 %v529, %v801
      %v1170 = vmul.f32 %v530, %v816
      %v1171 = vmul.f32 %v531, %v831
      %v1172 = vmul.f32 %v532, %v846
      %v1173 = vmul.f32 %v533, %v861
      %v1174 = vmul.f32 %v534, %v876
      %v1175 = vmul.f32 %v535, %v891
      %v1176 = vmul.f32 %v536, %v906
      %v1177 = vmul.f32 %v537, %v921
      %v1178 = vmul.f32 %v538, %v936
      %v1179 = vmul.f32 %v539, %v951
      %v1180 = vmul.f32 %v540, %v966
      %v1181 = vmul.f32 %v541, %v981
      %v1182 = vmul.f32 %v542, %v996
      %v1183 = vmul.f32 %v543, %v1011
      %v1184 = vmul.f32 %v544, %v1026
      %v1185 = vmul.f32 %v545, %v1041
      %v1186 = vmul.f32 %v546, %v1056
      %v1187 = vmul.f32 %v547, %v1071
      %v1188 = vmul.f32 %v548, %v1086
      %v1189 = vmul.f32 %v549, %v1101
      %v1190 = vmul.f32 %v550, %v1116
      %v1191 = vmul.f32 %v551, %v1131
      %v1192 = vmul.f32 %v552, %v1146
      %v1193 = vmul.f32 %v553, %v1161
      %v1194 = vpack.c.bf16 %v1162, %v1162
      %v1195 = vpack.c.bf16 %v1163, %v1163
      %v1196 = vpack.c.bf16 %v1164, %v1164
      %v1197 = vpack.c.bf16 %v1165, %v1165
      %v1198 = vpack.c.bf16 %v1166, %v1166
      %v1199 = vpack.c.bf16 %v1167, %v1167
      %v1200 = vpack.c.bf16 %v1168, %v1168
      %v1201 = vpack.c.bf16 %v1169, %v1169
      %v1202 = vpack.c.bf16 %v1170, %v1170
      %v1203 = vpack.c.bf16 %v1171, %v1171
      %v1204 = vpack.c.bf16 %v1172, %v1172
      %v1205 = vpack.c.bf16 %v1173, %v1173
      %v1206 = vpack.c.bf16 %v1174, %v1174
      %v1207 = vpack.c.bf16 %v1175, %v1175
      %v1208 = vpack.c.bf16 %v1176, %v1176
      %v1209 = vpack.c.bf16 %v1177, %v1177
      %v1210 = vpack.c.bf16 %v1178, %v1178
      %v1211 = vpack.c.bf16 %v1179, %v1179
      %v1212 = vpack.c.bf16 %v1180, %v1180
      %v1213 = vpack.c.bf16 %v1181, %v1181
      %v1214 = vpack.c.bf16 %v1182, %v1182
      %v1215 = vpack.c.bf16 %v1183, %v1183
      %v1216 = vpack.c.bf16 %v1184, %v1184
      %v1217 = vpack.c.bf16 %v1185, %v1185
      %v1218 = vpack.c.bf16 %v1186, %v1186
      %v1219 = vpack.c.bf16 %v1187, %v1187
      %v1220 = vpack.c.bf16 %v1188, %v1188
      %v1221 = vpack.c.bf16 %v1189, %v1189
      %v1222 = vpack.c.bf16 %v1190, %v1190
      %v1223 = vpack.c.bf16 %v1191, %v1191
      %v1224 = vpack.c.bf16 %v1192, %v1192
      %v1225 = vpack.c.bf16 %v1193, %v1193
      %1226 = vst [vmem:[%s199] sm:$0xf] %v1194
      %1227 = vst [vmem:[%s199 + $0x4] sm:$0xf] %v1195
      %1228 = vst [vmem:[%s199 + $0x8] sm:$0xf] %v1196
      %1229 = vst [vmem:[%s199 + $0xc] sm:$0xf] %v1197
      %1230 = vst [vmem:[%s199 + $0x10] sm:$0xf] %v1198
      %1231 = vst [vmem:[%s199 + $0x14] sm:$0xf] %v1199
      %1232 = vst [vmem:[%s199 + $0x18] sm:$0xf] %v1200
      %1233 = vst [vmem:[%s199 + $0x1c] sm:$0xf] %v1201
      %1234 = vst [vmem:[%s199 + $0x20] sm:$0xf] %v1202
      %1235 = vst [vmem:[%s199 + $0x24] sm:$0xf] %v1203
      %1236 = vst [vmem:[%s199 + $0x28] sm:$0xf] %v1204
      %1237 = vst [vmem:[%s199 + $0x2c] sm:$0xf] %v1205
      %1238 = vst [vmem:[%s199 + $0x30] sm:$0xf] %v1206
      %1239 = vst [vmem:[%s199 + $0x34] sm:$0xf] %v1207
      %1240 = vst [vmem:[%s199 + $0x38] sm:$0xf] %v1208
      %1241 = vst [vmem:[%s199 + $0x3c] sm:$0xf] %v1209
      %1242 = vst [vmem:[%s199 + $0x40] sm:$0xf] %v1210
      %1243 = vst [vmem:[%s199 + $0x44] sm:$0xf] %v1211
      %1244 = vst [vmem:[%s199 + $0x48] sm:$0xf] %v1212
      %1245 = vst [vmem:[%s199 + $0x4c] sm:$0xf] %v1213
      %1246 = vst [vmem:[%s199 + $0x50] sm:$0xf] %v1214
      %1247 = vst [vmem:[%s199 + $0x54] sm:$0xf] %v1215
      %1248 = vst [vmem:[%s199 + $0x58] sm:$0xf] %v1216
      %1249 = vst [vmem:[%s199 + $0x5c] sm:$0xf] %v1217
      %1250 = vst [vmem:[%s199 + $0x60] sm:$0xf] %v1218
      %1251 = vst [vmem:[%s199 + $0x64] sm:$0xf] %v1219
      %1252 = vst [vmem:[%s199 + $0x68] sm:$0xf] %v1220
      %1253 = vst [vmem:[%s199 + $0x6c] sm:$0xf] %v1221
      %1254 = vst [vmem:[%s199 + $0x70] sm:$0xf] %v1222
      %1255 = vst [vmem:[%s199 + $0x74] sm:$0xf] %v1223
      %1256 = vst [vmem:[%s199 + $0x78] sm:$0xf] %v1224
      %1257 = vst [vmem:[%s199 + $0x7c] sm:$0xf] %v1225
      %s1258 = smul.u32 32, %s15
      %p1259 = scmp.lt.s32.totalorder %s1258, 63
      %s1260 = scalar_select %p1259, %s1258, 63
      %s1261 = smul.addr %s1260, 4
      %s1262 = scalar_lea.vmem %s4, %s1261
      // Predicated region
      $region37: #{efficientnet_b4_transfer_forward.2} parent=35 // pred_check
        %p1263 = pneg %p122
      $region38: #{efficientnet_b4_transfer_forward.2} parent=35 // pred_check_branch
        %1265 = sbr.rel (%p1263) target = $region40
      $region39: #{efficientnet_b4_transfer_forward.2} parent=35 // pred_region
        %s1266 = smul.u32 32, %s15
      $region40: #{efficientnet_b4_transfer_forward.2} parent=35 // pred_fallthru
        _
    $region36: #{efficientnet_b4_transfer_forward.2} parent=5 // pred_fallthru
      _
    %p1267 = scmp.le.s32.totalorder 2, %s10
    // Predicated region
    $region41: #{efficientnet_b4_transfer_forward.2} parent=5 // pred_check
      %p1268 = pneg %p1267
    $region42: #{efficientnet_b4_transfer_forward.2} parent=5 // pred_check_branch
      %1270 = sbr.rel (%p1268) target = $region44
    $region43: #{efficientnet_b4_transfer_forward.2} parent=5 // pred_region
      %s1271 = ssub.s32 %s10, 2
      // Predicated region
      $region45: #{efficientnet_b4_transfer_forward.2} parent=43 // pred_check
        %p1272 = pneg %p128
      $region46: #{efficientnet_b4_transfer_forward.2} parent=43 // pred_check_branch
        %1274 = sbr.rel (%p1272) target = $region48
      $region47: #{efficientnet_b4_transfer_forward.2} parent=43 // pred_region
        %s1275 = smul.u32 32, %s16
        %p1276 = scmp.lt.s32.totalorder %s1275, 63
        %s1277 = scalar_select %p1276, %s1275, 63
        %s1278 = smul.addr %s1277, 4
        %s1279 = scalar_lea.vmem %s4, %s1278
      $region48: #{efficientnet_b4_transfer_forward.2} parent=43 // pred_fallthru
        _
    $region44: #{efficientnet_b4_transfer_forward.2} parent=5 // pred_fallthru
      _
  $region6: #{efficientnet_b4_transfer_forward.2} parent=0 // loop_footer
    %s14 = sadd.s32 1, %s10
  $region7: #{efficientnet_b4_transfer_forward.2} parent=0 // loop_footer_branch
    %9 = sbr.rel target = $region3
  $region8: #{efficientnet_b4_transfer_forward.2} parent=0 // loop_exit
    _

// kernel: efficientnet_b4_transfer_forward.3
$region0: #{efficientnet_b4_transfer_forward.3}
  #allocation0 [shape = 'u32[]', space=smem, size = 0x4, offset = 0x4, fixed_abs, tag = 'smem constant byte address 0x4 - core index']
  #allocation1 [shape = 'u32[72,128]{1,0:T(1,128)}', space=vmem, size = 0x9000, scoped, tag = 'internal scratch']
  %s0 = inlined_call_operand.vmem [shape: bf16[16,256,128], index: 0, kind: input, shape index: {}]
  %s1 = inlined_call_operand.vmem [shape: bf16[128,1024], index: 1, kind: input, shape index: {}]
  %s2 = inlined_call_operand.vmem [shape: f32[1,1024], index: 2, kind: input, shape index: {}]
  %s3 = inlined_call_operand.vmem [shape: bf16[1024,256], index: 3, kind: input, shape index: {}]
  %s4 = inlined_call_operand.vmem [shape: f32[1,256], index: 4, kind: input, shape index: {}]
  %s5 = inlined_call_operand.vmem [shape: bf16[256,128], index: 5, kind: input, shape index: {}]
  %s6 = inlined_call_operand.vmem [shape: f32[1,128], index: 6, kind: input, shape index: {}]
  %s7 = inlined_call_operand.vmem [shape: f32[16,128], index: 7, kind: output, shape index: {}]
  %s8 = sld [smem:[#allocation0]]
  $region61: #{efficientnet_b4_transfer_forward.3} parent=0
    _
  %s10 = ssub.s32 1, %s8
  %s11 = scalar_select 0, %s10, %s8
  loop: start=0, step=1, limit=4
  $region2: #{efficientnet_b4_transfer_forward.3} parent=0 // loop_pre_header
    _
  $region3: #{efficientnet_b4_transfer_forward.3} parent=0 // loop_header
    %s13 = sphi 0, %s17
    %p14 = scmp.ge.s32.totalorder %s13, 4
    %s23 = sphi 0, %s25
    %s26 = sphi 0, %s23
    %s27 = sphi 0, %s26
    %s43 = sphi 0, %s27
    %s47 = sphi 0, %s47
    %s49 = sphi 0, %s47
    %s50 = sphi 0, %s49
    %s64 = sphi 0, %s50
    %s68 = sphi 0, %s68
    %s70 = sphi 0, %s68
    %s71 = sphi 0, %s70
    %s85 = sphi 0, %s71
    %s89 = sphi 0, %s89
    %s91 = sphi 0, %s89
    %s92 = sphi 0, %s91
    %s106 = sphi 0, %s92
    %s110 = sphi 0, %s110
    %s112 = sphi 0, %s110
    %s113 = sphi 0, %s112
    %s127 = sphi 0, %s113
    %s131 = sphi 0, %s131
    %s133 = sphi 0, %s131
    %s134 = sphi 0, %s133
    %s148 = sphi 0, %s134
    %s152 = sphi 0, %s152
    %s154 = sphi 0, %s152
    %s155 = sphi 0, %s154
    %s169 = sphi 0, %s155
    %s175 = sphi 0, %s177
    %s178 = sphi 0, %s175
    %s179 = sphi 0, %s178
    %s195 = sphi 0, %s179
  $region4: #{efficientnet_b4_transfer_forward.3} parent=0 // loop_header_branch
    %16 = sbr.rel (%p14) target = $region8
  $region5: #{efficientnet_b4_transfer_forward.3} parent=0 // loop_body
    %s18 = ssub.s32 %s13, 1
    %s19 = ssub.s32 %s13, 2
    %s20 = sadd.s32 %s13, 1
    %s21 = ssub.s32 %s13, %s20
    %p22 = scmp.eq.s32.totalorder %s21, 0
    %s24 = sadd.s32 %s23, 1
    %s25 = scalar_select %p22, %s23, %s24
    %p28 = pneg %p22
    %p29 = scmp.eq.s32.totalorder %s13, 1
    %p30 = por %p28, %p29
    %p31 = scmp.ne.s32.totalorder %s23, %s26
    %p32 = scmp.eq.s32.totalorder %s13, 0
    %p33 = por %p31, %p32
    %p34 = scmp.ne.s32.totalorder %s23, %s26
    %p35 = scmp.eq.s32.totalorder %s18, 1
    %p36 = por %p34, %p35
    %p37 = scmp.ne.s32.totalorder %s26, %s27
    %p38 = scmp.eq.s32.totalorder %s18, 0
    %p39 = por %p37, %p38
    %p40 = scmp.ne.s32.totalorder %s26, %s27
    %p41 = scmp.eq.s32.totalorder %s19, 1
    %p42 = por %p40, %p41
    %p44 = scmp.ne.s32.totalorder %s27, %s43
    %p45 = scmp.eq.s32.totalorder %s19, 0
    %p46 = por %p44, %p45
    %s48 = sadd.s32 %s47, 1
    %p51 = scmp.eq.s32.totalorder %s13, 1
    %p52 = scmp.ne.s32.totalorder %s47, %s49
    %p53 = scmp.eq.s32.totalorder %s13, 0
    %p54 = por %p52, %p53
    %p55 = scmp.ne.s32.totalorder %s47, %s49
    %p56 = scmp.eq.s32.totalorder %s18, 1
    %p57 = por %p55, %p56
    %p58 = scmp.ne.s32.totalorder %s49, %s50
    %p59 = scmp.eq.s32.totalorder %s18, 0
    %p60 = por %p58, %p59
    %p61 = scmp.ne.s32.totalorder %s49, %s50
    %p62 = scmp.eq.s32.totalorder %s19, 1
    %p63 = por %p61, %p62
    %p65 = scmp.ne.s32.totalorder %s50, %s64
    %p66 = scmp.eq.s32.totalorder %s19, 0
    %p67 = por %p65, %p66
    %s69 = sadd.s32 %s68, 1
    %p72 = scmp.eq.s32.totalorder %s13, 1
    %p73 = scmp.ne.s32.totalorder %s68, %s70
    %p74 = scmp.eq.s32.totalorder %s13, 0
    %p75 = por %p73, %p74
    %p76 = scmp.ne.s32.totalorder %s68, %s70
    %p77 = scmp.eq.s32.totalorder %s18, 1
    %p78 = por %p76, %p77
    %p79 = scmp.ne.s32.totalorder %s70, %s71
    %p80 = scmp.eq.s32.totalorder %s18, 0
    %p81 = por %p79, %p80
    %p82 = scmp.ne.s32.totalorder %s70, %s71
    %p83 = scmp.eq.s32.totalorder %s19, 1
    %p84 = por %p82, %p83
    %p86 = scmp.ne.s32.totalorder %s71, %s85
    %p87 = scmp.eq.s32.totalorder %s19, 0
    %p88 = por %p86, %p87
    %s90 = sadd.s32 %s89, 1
    %p93 = scmp.eq.s32.totalorder %s13, 1
    %p94 = scmp.ne.s32.totalorder %s89, %s91
    %p95 = scmp.eq.s32.totalorder %s13, 0
    %p96 = por %p94, %p95
    %p97 = scmp.ne.s32.totalorder %s89, %s91
    %p98 = scmp.eq.s32.totalorder %s18, 1
    %p99 = por %p97, %p98
    %p100 = scmp.ne.s32.totalorder %s91, %s92
    %p101 = scmp.eq.s32.totalorder %s18, 0
    %p102 = por %p100, %p101
    %p103 = scmp.ne.s32.totalorder %s91, %s92
    %p104 = scmp.eq.s32.totalorder %s19, 1
    %p105 = por %p103, %p104
    %p107 = scmp.ne.s32.totalorder %s92, %s106
    %p108 = scmp.eq.s32.totalorder %s19, 0
    %p109 = por %p107, %p108
    %s111 = sadd.s32 %s110, 1
    %p114 = scmp.eq.s32.totalorder %s13, 1
    %p115 = scmp.ne.s32.totalorder %s110, %s112
    %p116 = scmp.eq.s32.totalorder %s13, 0
    %p117 = por %p115, %p116
    %p118 = scmp.ne.s32.totalorder %s110, %s112
    %p119 = scmp.eq.s32.totalorder %s18, 1
    %p120 = por %p118, %p119
    %p121 = scmp.ne.s32.totalorder %s112, %s113
    %p122 = scmp.eq.s32.totalorder %s18, 0
    %p123 = por %p121, %p122
    %p124 = scmp.ne.s32.totalorder %s112, %s113
    %p125 = scmp.eq.s32.totalorder %s19, 1
    %p126 = por %p124, %p125
    %p128 = scmp.ne.s32.totalorder %s113, %s127
    %p129 = scmp.eq.s32.totalorder %s19, 0
    %p130 = por %p128, %p129
    %s132 = sadd.s32 %s131, 1
    %p135 = scmp.eq.s32.totalorder %s13, 1
    %p136 = scmp.ne.s32.totalorder %s131, %s133
    %p137 = scmp.eq.s32.totalorder %s13, 0
    %p138 = por %p136, %p137
    %p139 = scmp.ne.s32.totalorder %s131, %s133
    %p140 = scmp.eq.s32.totalorder %s18, 1
    %p141 = por %p139, %p140
    %p142 = scmp.ne.s32.totalorder %s133, %s134
    %p143 = scmp.eq.s32.totalorder %s18, 0
    %p144 = por %p142, %p143
    %p145 = scmp.ne.s32.totalorder %s133, %s134
    %p146 = scmp.eq.s32.totalorder %s19, 1
    %p147 = por %p145, %p146
    %p149 = scmp.ne.s32.totalorder %s134, %s148
    %p150 = scmp.eq.s32.totalorder %s19, 0
    %p151 = por %p149, %p150
    %s153 = sadd.s32 %s152, 1
    %p156 = scmp.eq.s32.totalorder %s13, 1
    %p157 = scmp.ne.s32.totalorder %s152, %s154
    %p158 = scmp.eq.s32.totalorder %s13, 0
    %p159 = por %p157, %p158
    %p160 = scmp.ne.s32.totalorder %s152, %s154
    %p161 = scmp.eq.s32.totalorder %s18, 1
    %p162 = por %p160, %p161
    %p163 = scmp.ne.s32.totalorder %s154, %s155
    %p164 = scmp.eq.s32.totalorder %s18, 0
    %p165 = por %p163, %p164
    %p166 = scmp.ne.s32.totalorder %s154, %s155
    %p167 = scmp.eq.s32.totalorder %s19, 1
    %p168 = por %p166, %p167
    %p170 = scmp.ne.s32.totalorder %s155, %s169
    %p171 = scmp.eq.s32.totalorder %s19, 0
    %p172 = por %p170, %p171
    %s173 = ssub.s32 %s13, %s20
    %p174 = scmp.eq.s32.totalorder %s173, 0
    %s176 = sadd.s32 %s175, 1
    %s177 = scalar_select %p174, %s175, %s176
    %p180 = pneg %p174
    %p181 = scmp.eq.s32.totalorder %s13, 1
    %p182 = por %p180, %p181
    %p183 = scmp.ne.s32.totalorder %s175, %s178
    %p184 = scmp.eq.s32.totalorder %s13, 0
    %p185 = por %p183, %p184
    %p186 = scmp.ne.s32.totalorder %s175, %s178
    %p187 = scmp.eq.s32.totalorder %s18, 1
    %p188 = por %p186, %p187
    %p189 = scmp.ne.s32.totalorder %s178, %s179
    %p190 = scmp.eq.s32.totalorder %s18, 0
    %p191 = por %p189, %p190
    %p192 = scmp.ne.s32.totalorder %s178, %s179
    %p193 = scmp.eq.s32.totalorder %s19, 1
    %p194 = por %p192, %p193
    %p196 = scmp.ne.s32.totalorder %s179, %s195
    %p197 = scmp.eq.s32.totalorder %s19, 0
    %p198 = por %p196, %p197
    %p199 = scmp.le.s32.totalorder 1, %s13
    %p200 = scmp.lt.s32.totalorder %s13, 3
    %p201 = pnand %p199, %p200
    %p202 = pneg %p201
    // Predicated region
    $region9: #{efficientnet_b4_transfer_forward.3} parent=5 // pred_check
      _
    $region10: #{efficientnet_b4_transfer_forward.3} parent=5 // pred_check_branch
      %204 = sbr.rel (%p201) target = $region12
    $region11: #{efficientnet_b4_transfer_forward.3} parent=5 // pred_region
      %s205 = ssub.s32 %s13, 1
      // Predicated region
      $region13: #{efficientnet_b4_transfer_forward.3} parent=11 // pred_check
        %p206 = pneg %p60
      $region14: #{efficientnet_b4_transfer_forward.3} parent=11 // pred_check_branch
        %208 = sbr.rel (%p206) target = $region16
      $region15: #{efficientnet_b4_transfer_forward.3} parent=11 // pred_region
        _
      $region16: #{efficientnet_b4_transfer_forward.3} parent=11 // pred_fallthru
        _
      // Predicated region
      $region17: #{efficientnet_b4_transfer_forward.3} parent=11 // pred_check
        %p209 = pneg %p81
      $region18: #{efficientnet_b4_transfer_forward.3} parent=11 // pred_check_branch
        %211 = sbr.rel (%p209) target = $region20
      $region19: #{efficientnet_b4_transfer_forward.3} parent=11 // pred_region
        _
      $region20: #{efficientnet_b4_transfer_forward.3} parent=11 // pred_fallthru
        _
      // Predicated region
      $region21: #{efficientnet_b4_transfer_forward.3} parent=11 // pred_check
        %p212 = pneg %p102
      $region22: #{efficientnet_b4_transfer_forward.3} parent=11 // pred_check_branch
        %214 = sbr.rel (%p212) target = $region24
      $region23: #{efficientnet_b4_transfer_forward.3} parent=11 // pred_region
        _
      $region24: #{efficientnet_b4_transfer_forward.3} parent=11 // pred_fallthru
        _
      // Predicated region
      $region25: #{efficientnet_b4_transfer_forward.3} parent=11 // pred_check
        %p215 = pneg %p123
      $region26: #{efficientnet_b4_transfer_forward.3} parent=11 // pred_check_branch
        %217 = sbr.rel (%p215) target = $region28
      $region27: #{efficientnet_b4_transfer_forward.3} parent=11 // pred_region
        _
      $region28: #{efficientnet_b4_transfer_forward.3} parent=11 // pred_fallthru
        _
      // Predicated region
      $region29: #{efficientnet_b4_transfer_forward.3} parent=11 // pred_check
        %p218 = pneg %p144
      $region30: #{efficientnet_b4_transfer_forward.3} parent=11 // pred_check_branch
        %220 = sbr.rel (%p218) target = $region32
      $region31: #{efficientnet_b4_transfer_forward.3} parent=11 // pred_region
        _
      $region32: #{efficientnet_b4_transfer_forward.3} parent=11 // pred_fallthru
        _
      // Predicated region
      $region33: #{efficientnet_b4_transfer_forward.3} parent=11 // pred_check
        %p221 = pneg %p165
      $region34: #{efficientnet_b4_transfer_forward.3} parent=11 // pred_check_branch
        %223 = sbr.rel (%p221) target = $region36
      $region35: #{efficientnet_b4_transfer_forward.3} parent=11 // pred_region
        _
      $region36: #{efficientnet_b4_transfer_forward.3} parent=11 // pred_fallthru
        _
    $region12: #{efficientnet_b4_transfer_forward.3} parent=5 // pred_fallthru
      _
    %p224 = scmp.lt.s32.totalorder %s13, 2
    // Predicated region
    $region37: #{efficientnet_b4_transfer_forward.3} parent=5 // pred_check
      %p225 = pneg %p224
    $region38: #{efficientnet_b4_transfer_forward.3} parent=5 // pred_check_branch
      %227 = sbr.rel (%p225) target = $region40
    $region39: #{efficientnet_b4_transfer_forward.3} parent=5 // pred_region
      // Predicated region
      $region41: #{efficientnet_b4_transfer_forward.3} parent=39 // pred_check
        %p228 = pneg %p33
      $region42: #{efficientnet_b4_transfer_forward.3} parent=39 // pred_check_branch
        %230 = sbr.rel (%p228) target = $region44
      $region43: #{efficientnet_b4_transfer_forward.3} parent=39 // pred_region
        %s231 = smul.u32 8, %s13
        %p232 = scmp.lt.s32.totalorder %s231, 15
        %s233 = scalar_select %p232, %s231, 15
        %s234 = smul.addr %s233, 32
        %s235 = smul.addr %s234, 4
        %s236 = scalar_lea.vmem %s0, %s235
        %s237 = smul.u32 8, %s13
      $region44: #{efficientnet_b4_transfer_forward.3} parent=39 // pred_fallthru
        _
    $region40: #{efficientnet_b4_transfer_forward.3} parent=5 // pred_fallthru
      _
    %p238 = scmp.le.s32.totalorder 1, %s13
    %p239 = scmp.lt.s32.totalorder %s13, 3
    %p240 = pnand %p238, %p239
    %p241 = pneg %p240
    // Predicated region
    $region45: #{efficientnet_b4_transfer_forward.3} parent=5 // pred_check
      _
    $region46: #{efficientnet_b4_transfer_forward.3} parent=5 // pred_check_branch
      %243 = sbr.rel (%p240) target = $region48
    $region47: #{efficientnet_b4_transfer_forward.3} parent=5 // pred_region
      %s244 = ssub.s32 %s13, 1
      %s245 = smul.u32 8, %s18
      %p246 = scmp.lt.s32.totalorder %s245, 15
      %s247 = scalar_select %p246, %s245, 15
      %s248 = smul.addr %s247, 32
      %s249 = smul.addr %s248, 4
      %s250 = scalar_lea.vmem %s0, %s249
      %p251 = pneg %p39
      %p252 = pneg %p36
      %p253 = pneg %p60
      %p254 = pneg %p57
      %p255 = pneg %p81
      %p256 = pneg %p78
      %p257 = pneg %p102
      %p258 = pneg %p99
      %p259 = pneg %p123
      %p260 = pneg %p120
      %p261 = pneg %p144
      %p262 = pneg %p141
      %p263 = pneg %p165
      %p264 = pneg %p162
      %p265 = pneg %p191
      %p266 = pneg %p188
      %p267 = scmp.lt.s32.totalorder %s18, 1
      %s268 = scalar_select %p267, %s18, 1
      %s269 = smul.addr %s268, 8
      %s270 = scalar_lea.vmem %s7, %s269
      %s271 = smul.u32 8, %s18
      %p272 = scmp.lt.s32.totalorder %s271, 15
      %s273 = scalar_select %p272, %s271, 15
      %s274 = smul.addr %s273, 32
      %s275 = smul.addr %s274, 4
      %s276 = scalar_lea.vmem %s0, %s275
      %s277 = smul.u32 8, %s18
      %p278 = scmp.lt.s32.totalorder %s18, 1
      %s279 = scalar_select %p278, %s18, 1
      %s280 = smul.addr %s279, 8
      %s281 = scalar_lea.vmem %s7, %s280
      %v282 = vld [vmem:[%s276] sm:$0xf]
      %v283 = vld [vmem:[%s276 + $0x4] sm:$0xf]
      %v284 = vld [vmem:[%s276 + $0x8] sm:$0xf]
      %v285 = vld [vmem:[%s276 + $0xc] sm:$0xf]
      %v286 = vld [vmem:[%s276 + $0x10] sm:$0xf]
      %v287 = vld [vmem:[%s276 + $0x14] sm:$0xf]
      %v288 = vld [vmem:[%s276 + $0x18] sm:$0xf]
      %v289 = vld [vmem:[%s276 + $0x1c] sm:$0xf]
      %v290 = vld [vmem:[%s276 + $0x20] sm:$0xf]
      %v291 = vld [vmem:[%s276 + $0x24] sm:$0xf]
      %v292 = vld [vmem:[%s276 + $0x28] sm:$0xf]
      %v293 = vld [vmem:[%s276 + $0x2c] sm:$0xf]
      %v294 = vld [vmem:[%s276 + $0x30] sm:$0xf]
      %v295 = vld [vmem:[%s276 + $0x34] sm:$0xf]
      %v296 = vld [vmem:[%s276 + $0x38] sm:$0xf]
      %v297 = vld [vmem:[%s276 + $0x3c] sm:$0xf]
      %v298 = vld [vmem:[%s276 + $0x40] sm:$0xf]
      %v299 = vld [vmem:[%s276 + $0x44] sm:$0xf]
      %v300 = vld [vmem:[%s276 + $0x48] sm:$0xf]
      %v301 = vld [vmem:[%s276 + $0x4c] sm:$0xf]
      %v302 = vld [vmem:[%s276 + $0x50] sm:$0xf]
      %v303 = vld [vmem:[%s276 + $0x54] sm:$0xf]
      %v304 = vld [vmem:[%s276 + $0x58] sm:$0xf]
      %v305 = vld [vmem:[%s276 + $0x5c] sm:$0xf]
      %v306 = vld [vmem:[%s276 + $0x60] sm:$0xf]
      %v307 = vld [vmem:[%s276 + $0x64] sm:$0xf]
      %v308 = vld [vmem:[%s276 + $0x68] sm:$0xf]
      %v309 = vld [vmem:[%s276 + $0x6c] sm:$0xf]
      %v310 = vld [vmem:[%s276 + $0x70] sm:$0xf]
      %v311 = vld [vmem:[%s276 + $0x74] sm:$0xf]
      %v312 = vld [vmem:[%s276 + $0x78] sm:$0xf]
      %v313 = vld [vmem:[%s276 + $0x7c] sm:$0xf]
      %v314 = vld [vmem:[%s276 + $0x80] sm:$0xf]
      %v315 = vld [vmem:[%s276 + $0x84] sm:$0xf]
      %v316 = vld [vmem:[%s276 + $0x88] sm:$0xf]
      %v317 = vld [vmem:[%s276 + $0x8c] sm:$0xf]
      %v318 = vld [vmem:[%s276 + $0x90] sm:$0xf]
      %v319 = vld [vmem:[%s276 + $0x94] sm:$0xf]
      %v320 = vld [vmem:[%s276 + $0x98] sm:$0xf]
      %v321 = vld [vmem:[%s276 + $0x9c] sm:$0xf]
      %v322 = vld [vmem:[%s276 + $0xa0] sm:$0xf]
      %v323 = vld [vmem:[%s276 + $0xa4] sm:$0xf]
      %v324 = vld [vmem:[%s276 + $0xa8] sm:$0xf]
      %v325 = vld [vmem:[%s276 + $0xac] sm:$0xf]
      %v326 = vld [vmem:[%s276 + $0xb0] sm:$0xf]
      %v327 = vld [vmem:[%s276 + $0xb4] sm:$0xf]
      %v328 = vld [vmem:[%s276 + $0xb8] sm:$0xf]
      %v329 = vld [vmem:[%s276 + $0xbc] sm:$0xf]
      %v330 = vld [vmem:[%s276 + $0xc0] sm:$0xf]
      %v331 = vld [vmem:[%s276 + $0xc4] sm:$0xf]
      %v332 = vld [vmem:[%s276 + $0xc8] sm:$0xf]
      %v333 = vld [vmem:[%s276 + $0xcc] sm:$0xf]
      %v334 = vld [vmem:[%s276 + $0xd0] sm:$0xf]
      %v335 = vld [vmem:[%s276 + $0xd4] sm:$0xf]
      %v336 = vld [vmem:[%s276 + $0xd8] sm:$0xf]
      %v337 = vld [vmem:[%s276 + $0xdc] sm:$0xf]
      %v338 = vld [vmem:[%s276 + $0xe0] sm:$0xf]
      %v339 = vld [vmem:[%s276 + $0xe4] sm:$0xf]
      %v340 = vld [vmem:[%s276 + $0xe8] sm:$0xf]
      %v341 = vld [vmem:[%s276 + $0xec] sm:$0xf]
      %v342 = vld [vmem:[%s276 + $0xf0] sm:$0xf]
      %v343 = vld [vmem:[%s276 + $0xf4] sm:$0xf]
      %v344 = vld [vmem:[%s276 + $0xf8] sm:$0xf]
      %v345 = vld [vmem:[%s276 + $0xfc] sm:$0xf]
      %v346 = vld [vmem:[%s276 + $0x100] sm:$0xf]
      %v347 = vld [vmem:[%s276 + $0x104] sm:$0xf]
      %v348 = vld [vmem:[%s276 + $0x108] sm:$0xf]
      %v349 = vld [vmem:[%s276 + $0x10c] sm:$0xf]
      %v350 = vld [vmem:[%s276 + $0x110] sm:$0xf]
      %v351 = vld [vmem:[%s276 + $0x114] sm:$0xf]
      %v352 = vld [vmem:[%s276 + $0x118] sm:$0xf]
      %v353 = vld [vmem:[%s276 + $0x11c] sm:$0xf]
      %v354 = vld [vmem:[%s276 + $0x120] sm:$0xf]
      %v355 = vld [vmem:[%s276 + $0x124] sm:$0xf]
      %v356 = vld [vmem:[%s276 + $0x128] sm:$0xf]
      %v357 = vld [vmem:[%s276 + $0x12c] sm:$0xf]
      %v358 = vld [vmem:[%s276 + $0x130] sm:$0xf]
      %v359 = vld [vmem:[%s276 + $0x134] sm:$0xf]
      %v360 = vld [vmem:[%s276 + $0x138] sm:$0xf]
      %v361 = vld [vmem:[%s276 + $0x13c] sm:$0xf]
      %v362 = vld [vmem:[%s276 + $0x140] sm:$0xf]
      %v363 = vld [vmem:[%s276 + $0x144] sm:$0xf]
      %v364 = vld [vmem:[%s276 + $0x148] sm:$0xf]
      %v365 = vld [vmem:[%s276 + $0x14c] sm:$0xf]
      %v366 = vld [vmem:[%s276 + $0x150] sm:$0xf]
      %v367 = vld [vmem:[%s276 + $0x154] sm:$0xf]
      %v368 = vld [vmem:[%s276 + $0x158] sm:$0xf]
      %v369 = vld [vmem:[%s276 + $0x15c] sm:$0xf]
      %v370 = vld [vmem:[%s276 + $0x160] sm:$0xf]
      %v371 = vld [vmem:[%s276 + $0x164] sm:$0xf]
      %v372 = vld [vmem:[%s276 + $0x168] sm:$0xf]
      %v373 = vld [vmem:[%s276 + $0x16c] sm:$0xf]
      %v374 = vld [vmem:[%s276 + $0x170] sm:$0xf]
      %v375 = vld [vmem:[%s276 + $0x174] sm:$0xf]
      %v376 = vld [vmem:[%s276 + $0x178] sm:$0xf]
      %v377 = vld [vmem:[%s276 + $0x17c] sm:$0xf]
      %v378 = vld [vmem:[%s276 + $0x180] sm:$0xf]
      %v379 = vld [vmem:[%s276 + $0x184] sm:$0xf]
      %v380 = vld [vmem:[%s276 + $0x188] sm:$0xf]
      %v381 = vld [vmem:[%s276 + $0x18c] sm:$0xf]
      %v382 = vld [vmem:[%s276 + $0x190] sm:$0xf]
      %v383 = vld [vmem:[%s276 + $0x194] sm:$0xf]
      %v384 = vld [vmem:[%s276 + $0x198] sm:$0xf]
      %v385 = vld [vmem:[%s276 + $0x19c] sm:$0xf]
      %v386 = vld [vmem:[%s276 + $0x1a0] sm:$0xf]
      %v387 = vld [vmem:[%s276 + $0x1a4] sm:$0xf]
      %v388 = vld [vmem:[%s276 + $0x1a8] sm:$0xf]
      %v389 = vld [vmem:[%s276 + $0x1ac] sm:$0xf]
      %v390 = vld [vmem:[%s276 + $0x1b0] sm:$0xf]
      %v391 = vld [vmem:[%s276 + $0x1b4] sm:$0xf]
      %v392 = vld [vmem:[%s276 + $0x1b8] sm:$0xf]
      %v393 = vld [vmem:[%s276 + $0x1bc] sm:$0xf]
      %v394 = vld [vmem:[%s276 + $0x1c0] sm:$0xf]
      %v395 = vld [vmem:[%s276 + $0x1c4] sm:$0xf]
      %v396 = vld [vmem:[%s276 + $0x1c8] sm:$0xf]
      %v397 = vld [vmem:[%s276 + $0x1cc] sm:$0xf]
      %v398 = vld [vmem:[%s276 + $0x1d0] sm:$0xf]
      %v399 = vld [vmem:[%s276 + $0x1d4] sm:$0xf]
      %v400 = vld [vmem:[%s276 + $0x1d8] sm:$0xf]
      %v401 = vld [vmem:[%s276 + $0x1dc] sm:$0xf]
      %v402 = vld [vmem:[%s276 + $0x1e0] sm:$0xf]
      %v403 = vld [vmem:[%s276 + $0x1e4] sm:$0xf]
      %v404 = vld [vmem:[%s276 + $0x1e8] sm:$0xf]
      %v405 = vld [vmem:[%s276 + $0x1ec] sm:$0xf]
      %v406 = vld [vmem:[%s276 + $0x1f0] sm:$0xf]
      %v407 = vld [vmem:[%s276 + $0x1f4] sm:$0xf]
      %v408 = vld [vmem:[%s276 + $0x1f8] sm:$0xf]
      %v409 = vld [vmem:[%s276 + $0x1fc] sm:$0xf]
      %v410 = vld [vmem:[%s276 + $0x200] sm:$0xf]
      %v411 = vld [vmem:[%s276 + $0x204] sm:$0xf]
      %v412 = vld [vmem:[%s276 + $0x208] sm:$0xf]
      %v413 = vld [vmem:[%s276 + $0x20c] sm:$0xf]
      %v414 = vld [vmem:[%s276 + $0x210] sm:$0xf]
      %v415 = vld [vmem:[%s276 + $0x214] sm:$0xf]
      %v416 = vld [vmem:[%s276 + $0x218] sm:$0xf]
      %v417 = vld [vmem:[%s276 + $0x21c] sm:$0xf]
      %v418 = vld [vmem:[%s276 + $0x220] sm:$0xf]
      %v419 = vld [vmem:[%s276 + $0x224] sm:$0xf]
      %v420 = vld [vmem:[%s276 + $0x228] sm:$0xf]
      %v421 = vld [vmem:[%s276 + $0x22c] sm:$0xf]
      %v422 = vld [vmem:[%s276 + $0x230] sm:$0xf]
      %v423 = vld [vmem:[%s276 + $0x234] sm:$0xf]
      %v424 = vld [vmem:[%s276 + $0x238] sm:$0xf]
      %v425 = vld [vmem:[%s276 + $0x23c] sm:$0xf]
      %v426 = vld [vmem:[%s276 + $0x240] sm:$0xf]
      %v427 = vld [vmem:[%s276 + $0x244] sm:$0xf]
      %v428 = vld [vmem:[%s276 + $0x248] sm:$0xf]
      %v429 = vld [vmem:[%s276 + $0x24c] sm:$0xf]
      %v430 = vld [vmem:[%s276 + $0x250] sm:$0xf]
      %v431 = vld [vmem:[%s276 + $0x254] sm:$0xf]
      %v432 = vld [vmem:[%s276 + $0x258] sm:$0xf]
      %v433 = vld [vmem:[%s276 + $0x25c] sm:$0xf]
      %v434 = vld [vmem:[%s276 + $0x260] sm:$0xf]
      %v435 = vld [vmem:[%s276 + $0x264] sm:$0xf]
      %v436 = vld [vmem:[%s276 + $0x268] sm:$0xf]
      %v437 = vld [vmem:[%s276 + $0x26c] sm:$0xf]
      %v438 = vld [vmem:[%s276 + $0x270] sm:$0xf]
      %v439 = vld [vmem:[%s276 + $0x274] sm:$0xf]
      %v440 = vld [vmem:[%s276 + $0x278] sm:$0xf]
      %v441 = vld [vmem:[%s276 + $0x27c] sm:$0xf]
      %v442 = vld [vmem:[%s276 + $0x280] sm:$0xf]
      %v443 = vld [vmem:[%s276 + $0x284] sm:$0xf]
      %v444 = vld [vmem:[%s276 + $0x288] sm:$0xf]
      %v445 = vld [vmem:[%s276 + $0x28c] sm:$0xf]
      %v446 = vld [vmem:[%s276 + $0x290] sm:$0xf]
      %v447 = vld [vmem:[%s276 + $0x294] sm:$0xf]
      %v448 = vld [vmem:[%s276 + $0x298] sm:$0xf]
      %v449 = vld [vmem:[%s276 + $0x29c] sm:$0xf]
      %v450 = vld [vmem:[%s276 + $0x2a0] sm:$0xf]
      %v451 = vld [vmem:[%s276 + $0x2a4] sm:$0xf]
      %v452 = vld [vmem:[%s276 + $0x2a8] sm:$0xf]
      %v453 = vld [vmem:[%s276 + $0x2ac] sm:$0xf]
      %v454 = vld [vmem:[%s276 + $0x2b0] sm:$0xf]
      %v455 = vld [vmem:[%s276 + $0x2b4] sm:$0xf]
      %v456 = vld [vmem:[%s276 + $0x2b8] sm:$0xf]
      %v457 = vld [vmem:[%s276 + $0x2bc] sm:$0xf]
      %v458 = vld [vmem:[%s276 + $0x2c0] sm:$0xf]
      %v459 = vld [vmem:[%s276 + $0x2c4] sm:$0xf]
      %v460 = vld [vmem:[%s276 + $0x2c8] sm:$0xf]
      %v461 = vld [vmem:[%s276 + $0x2cc] sm:$0xf]
      %v462 = vld [vmem:[%s276 + $0x2d0] sm:$0xf]
      %v463 = vld [vmem:[%s276 + $0x2d4] sm:$0xf]
      %v464 = vld [vmem:[%s276 + $0x2d8] sm:$0xf]
      %v465 = vld [vmem:[%s276 + $0x2dc] sm:$0xf]
      %v466 = vld [vmem:[%s276 + $0x2e0] sm:$0xf]
      %v467 = vld [vmem:[%s276 + $0x2e4] sm:$0xf]
      %v468 = vld [vmem:[%s276 + $0x2e8] sm:$0xf]
      %v469 = vld [vmem:[%s276 + $0x2ec] sm:$0xf]
      %v470 = vld [vmem:[%s276 + $0x2f0] sm:$0xf]
      %v471 = vld [vmem:[%s276 + $0x2f4] sm:$0xf]
      %v472 = vld [vmem:[%s276 + $0x2f8] sm:$0xf]
      %v473 = vld [vmem:[%s276 + $0x2fc] sm:$0xf]
      %v474 = vld [vmem:[%s276 + $0x300] sm:$0xf]
      %v475 = vld [vmem:[%s276 + $0x304] sm:$0xf]
      %v476 = vld [vmem:[%s276 + $0x308] sm:$0xf]
      %v477 = vld [vmem:[%s276 + $0x30c] sm:$0xf]
      %v478 = vld [vmem:[%s276 + $0x310] sm:$0xf]
      %v479 = vld [vmem:[%s276 + $0x314] sm:$0xf]
      %v480 = vld [vmem:[%s276 + $0x318] sm:$0xf]
      %v481 = vld [vmem:[%s276 + $0x31c] sm:$0xf]
      %v482 = vld [vmem:[%s276 + $0x320] sm:$0xf]
      %v483 = vld [vmem:[%s276 + $0x324] sm:$0xf]
      %v484 = vld [vmem:[%s276 + $0x328] sm:$0xf]
      %v485 = vld [vmem:[%s276 + $0x32c] sm:$0xf]
      %v486 = vld [vmem:[%s276 + $0x330] sm:$0xf]
      %v487 = vld [vmem:[%s276 + $0x334] sm:$0xf]
      %v488 = vld [vmem:[%s276 + $0x338] sm:$0xf]
      %v489 = vld [vmem:[%s276 + $0x33c] sm:$0xf]
      %v490 = vld [vmem:[%s276 + $0x340] sm:$0xf]
      %v491 = vld [vmem:[%s276 + $0x344] sm:$0xf]
      %v492 = vld [vmem:[%s276 + $0x348] sm:$0xf]
      %v493 = vld [vmem:[%s276 + $0x34c] sm:$0xf]
      %v494 = vld [vmem:[%s276 + $0x350] sm:$0xf]
      %v495 = vld [vmem:[%s276 + $0x354] sm:$0xf]
      %v496 = vld [vmem:[%s276 + $0x358] sm:$0xf]
      %v497 = vld [vmem:[%s276 + $0x35c] sm:$0xf]
      %v498 = vld [vmem:[%s276 + $0x360] sm:$0xf]
      %v499 = vld [vmem:[%s276 + $0x364] sm:$0xf]
      %v500 = vld [vmem:[%s276 + $0x368] sm:$0xf]
      %v501 = vld [vmem:[%s276 + $0x36c] sm:$0xf]
      %v502 = vld [vmem:[%s276 + $0x370] sm:$0xf]
      %v503 = vld [vmem:[%s276 + $0x374] sm:$0xf]
      %v504 = vld [vmem:[%s276 + $0x378] sm:$0xf]
      %v505 = vld [vmem:[%s276 + $0x37c] sm:$0xf]
      %v506 = vld [vmem:[%s276 + $0x380] sm:$0xf]
      %v507 = vld [vmem:[%s276 + $0x384] sm:$0xf]
      %v508 = vld [vmem:[%s276 + $0x388] sm:$0xf]
      %v509 = vld [vmem:[%s276 + $0x38c] sm:$0xf]
      %v510 = vld [vmem:[%s276 + $0x390] sm:$0xf]
      %v511 = vld [vmem:[%s276 + $0x394] sm:$0xf]
      %v512 = vld [vmem:[%s276 + $0x398] sm:$0xf]
      %v513 = vld [vmem:[%s276 + $0x39c] sm:$0xf]
      %v514 = vld [vmem:[%s276 + $0x3a0] sm:$0xf]
      %v515 = vld [vmem:[%s276 + $0x3a4] sm:$0xf]
      %v516 = vld [vmem:[%s276 + $0x3a8] sm:$0xf]
      %v517 = vld [vmem:[%s276 + $0x3ac] sm:$0xf]
      %v518 = vld [vmem:[%s276 + $0x3b0] sm:$0xf]
      %v519 = vld [vmem:[%s276 + $0x3b4] sm:$0xf]
      %v520 = vld [vmem:[%s276 + $0x3b8] sm:$0xf]
      %v521 = vld [vmem:[%s276 + $0x3bc] sm:$0xf]
      %v522 = vld [vmem:[%s276 + $0x3c0] sm:$0xf]
      %v523 = vld [vmem:[%s276 + $0x3c4] sm:$0xf]
      %v524 = vld [vmem:[%s276 + $0x3c8] sm:$0xf]
      %v525 = vld [vmem:[%s276 + $0x3cc] sm:$0xf]
      %v526 = vld [vmem:[%s276 + $0x3d0] sm:$0xf]
      %v527 = vld [vmem:[%s276 + $0x3d4] sm:$0xf]
      %v528 = vld [vmem:[%s276 + $0x3d8] sm:$0xf]
      %v529 = vld [vmem:[%s276 + $0x3dc] sm:$0xf]
      %v530 = vld [vmem:[%s276 + $0x3e0] sm:$0xf]
      %v531 = vld [vmem:[%s276 + $0x3e4] sm:$0xf]
      %v532 = vld [vmem:[%s276 + $0x3e8] sm:$0xf]
      %v533 = vld [vmem:[%s276 + $0x3ec] sm:$0xf]
      %v534 = vld [vmem:[%s276 + $0x3f0] sm:$0xf]
      %v535 = vld [vmem:[%s276 + $0x3f4] sm:$0xf]
      %v536 = vld [vmem:[%s276 + $0x3f8] sm:$0xf]
      %v537 = vld [vmem:[%s276 + $0x3fc] sm:$0xf]
      %v538 = vunpack.c.l.bf16 %v282
      %v539 = vunpack.c.l.bf16 %v283
      %v540 = vunpack.c.l.bf16 %v284
      %v541 = vunpack.c.l.bf16 %v285
      %v542 = vunpack.c.l.bf16 %v286
      %v543 = vunpack.c.l.bf16 %v287
      %v544 = vunpack.c.l.bf16 %v288
      %v545 = vunpack.c.l.bf16 %v289
      %v546 = vunpack.c.l.bf16 %v290
      %v547 = vunpack.c.l.bf16 %v291
      %v548 = vunpack.c.l.bf16 %v292
      %v549 = vunpack.c.l.bf16 %v293
      %v550 = vunpack.c.l.bf16 %v294
      %v551 = vunpack.c.l.bf16 %v295
      %v552 = vunpack.c.l.bf16 %v296
      %v553 = vunpack.c.l.bf16 %v297
      %v554 = vunpack.c.l.bf16 %v298
      %v555 = vunpack.c.l.bf16 %v299
      %v556 = vunpack.c.l.bf16 %v300
      %v557 = vunpack.c.l.bf16 %v301
      %v558 = vunpack.c.l.bf16 %v302
      %v559 = vunpack.c.l.bf16 %v303
      %v560 = vunpack.c.l.bf16 %v304
      %v561 = vunpack.c.l.bf16 %v305
      %v562 = vunpack.c.l.bf16 %v306
      %v563 = vunpack.c.l.bf16 %v307
      %v564 = vunpack.c.l.bf16 %v308
      %v565 = vunpack.c.l.bf16 %v309
      %v566 = vunpack.c.l.bf16 %v310
      %v567 = vunpack.c.l.bf16 %v311
      %v568 = vunpack.c.l.bf16 %v312
      %v569 = vunpack.c.l.bf16 %v313
      %v570 = vunpack.c.l.bf16 %v314
      %v571 = vunpack.c.l.bf16 %v315
      %v572 = vunpack.c.l.bf16 %v316
      %v573 = vunpack.c.l.bf16 %v317
      %v574 = vunpack.c.l.bf16 %v318
      %v575 = vunpack.c.l.bf16 %v319
      %v576 = vunpack.c.l.bf16 %v320
      %v577 = vunpack.c.l.bf16 %v321
      %v578 = vunpack.c.l.bf16 %v322
      %v579 = vunpack.c.l.bf16 %v323
      %v580 = vunpack.c.l.bf16 %v324
      %v581 = vunpack.c.l.bf16 %v325
      %v582 = vunpack.c.l.bf16 %v326
      %v583 = vunpack.c.l.bf16 %v327
      %v584 = vunpack.c.l.bf16 %v328
      %v585 = vunpack.c.l.bf16 %v329
      %v586 = vunpack.c.l.bf16 %v330
      %v587 = vunpack.c.l.bf16 %v331
      %v588 = vunpack.c.l.bf16 %v332
      %v589 = vunpack.c.l.bf16 %v333
      %v590 = vunpack.c.l.bf16 %v334
      %v591 = vunpack.c.l.bf16 %v335
      %v592 = vunpack.c.l.bf16 %v336
      %v593 = vunpack.c.l.bf16 %v337
      %v594 = vunpack.c.l.bf16 %v338
      %v595 = vunpack.c.l.bf16 %v339
      %v596 = vunpack.c.l.bf16 %v340
      %v597 = vunpack.c.l.bf16 %v341
      %v598 = vunpack.c.l.bf16 %v342
      %v599 = vunpack.c.l.bf16 %v343
      %v600 = vunpack.c.l.bf16 %v344
      %v601 = vunpack.c.l.bf16 %v345
      %v602 = vunpack.c.l.bf16 %v346
      %v603 = vunpack.c.l.bf16 %v347
      %v604 = vunpack.c.l.bf16 %v348
      %v605 = vunpack.c.l.bf16 %v349
      %v606 = vunpack.c.l.bf16 %v350
      %v607 = vunpack.c.l.bf16 %v351
      %v608 = vunpack.c.l.bf16 %v352
      %v609 = vunpack.c.l.bf16 %v353
      %v610 = vunpack.c.l.bf16 %v354
      %v611 = vunpack.c.l.bf16 %v355
      %v612 = vunpack.c.l.bf16 %v356
      %v613 = vunpack.c.l.bf16 %v357
      %v614 = vunpack.c.l.bf16 %v358
      %v615 = vunpack.c.l.bf16 %v359
      %v616 = vunpack.c.l.bf16 %v360
      %v617 = vunpack.c.l.bf16 %v361
      %v618 = vunpack.c.l.bf16 %v362
      %v619 = vunpack.c.l.bf16 %v363
      %v620 = vunpack.c.l.bf16 %v364
      %v621 = vunpack.c.l.bf16 %v365
      %v622 = vunpack.c.l.bf16 %v366
      %v623 = vunpack.c.l.bf16 %v367
      %v624 = vunpack.c.l.bf16 %v368
      %v625 = vunpack.c.l.bf16 %v369
      %v626 = vunpack.c.l.bf16 %v370
      %v627 = vunpack.c.l.bf16 %v371
      %v628 = vunpack.c.l.bf16 %v372
      %v629 = vunpack.c.l.bf16 %v373
      %v630 = vunpack.c.l.bf16 %v374
      %v631 = vunpack.c.l.bf16 %v375
      %v632 = vunpack.c.l.bf16 %v376
      %v633 = vunpack.c.l.bf16 %v377
      %v634 = vunpack.c.l.bf16 %v378
      %v635 = vunpack.c.l.bf16 %v379
      %v636 = vunpack.c.l.bf16 %v380
      %v637 = vunpack.c.l.bf16 %v381
      %v638 = vunpack.c.l.bf16 %v382
      %v639 = vunpack.c.l.bf16 %v383
      %v640 = vunpack.c.l.bf16 %v384
      %v641 = vunpack.c.l.bf16 %v385
      %v642 = vunpack.c.l.bf16 %v386
      %v643 = vunpack.c.l.bf16 %v387
      %v644 = vunpack.c.l.bf16 %v388
      %v645 = vunpack.c.l.bf16 %v389
      %v646 = vunpack.c.l.bf16 %v390
      %v647 = vunpack.c.l.bf16 %v391
      %v648 = vunpack.c.l.bf16 %v392
      %v649 = vunpack.c.l.bf16 %v393
      %v650 = vunpack.c.l.bf16 %v394
      %v651 = vunpack.c.l.bf16 %v395
      %v652 = vunpack.c.l.bf16 %v396
      %v653 = vunpack.c.l.bf16 %v397
      %v654 = vunpack.c.l.bf16 %v398
      %v655 = vunpack.c.l.bf16 %v399
      %v656 = vunpack.c.l.bf16 %v400
      %v657 = vunpack.c.l.bf16 %v401
      %v658 = vunpack.c.l.bf16 %v402
      %v659 = vunpack.c.l.bf16 %v403
      %v660 = vunpack.c.l.bf16 %v404
      %v661 = vunpack.c.l.bf16 %v405
      %v662 = vunpack.c.l.bf16 %v406
      %v663 = vunpack.c.l.bf16 %v407
      %v664 = vunpack.c.l.bf16 %v408
      %v665 = vunpack.c.l.bf16 %v409
      %v666 = vunpack.c.l.bf16 %v410
      %v667 = vunpack.c.l.bf16 %v411
      %v668 = vunpack.c.l.bf16 %v412
      %v669 = vunpack.c.l.bf16 %v413
      %v670 = vunpack.c.l.bf16 %v414
      %v671 = vunpack.c.l.bf16 %v415
      %v672 = vunpack.c.l.bf16 %v416
      %v673 = vunpack.c.l.bf16 %v417
      %v674 = vunpack.c.l.bf16 %v418
      %v675 = vunpack.c.l.bf16 %v419
      %v676 = vunpack.c.l.bf16 %v420
      %v677 = vunpack.c.l.bf16 %v421
      %v678 = vunpack.c.l.bf16 %v422
      %v679 = vunpack.c.l.bf16 %v423
      %v680 = vunpack.c.l.bf16 %v424
      %v681 = vunpack.c.l.bf16 %v425
      %v682 = vunpack.c.l.bf16 %v426
      %v683 = vunpack.c.l.bf16 %v427
      %v684 = vunpack.c.l.bf16 %v428
      %v685 = vunpack.c.l.bf16 %v429
      %v686 = vunpack.c.l.bf16 %v430
      %v687 = vunpack.c.l.bf16 %v431
      %v688 = vunpack.c.l.bf16 %v432
      %v689 = vunpack.c.l.bf16 %v433
      %v690 = vunpack.c.l.bf16 %v434
      %v691 = vunpack.c.l.bf16 %v435
      %v692 = vunpack.c.l.bf16 %v436
      %v693 = vunpack.c.l.bf16 %v437
      %v694 = vunpack.c.l.bf16 %v438
      %v695 = vunpack.c.l.bf16 %v439
      %v696 = vunpack.c.l.bf16 %v440
      %v697 = vunpack.c.l.bf16 %v441
      %v698 = vunpack.c.l.bf16 %v442
      %v699 = vunpack.c.l.bf16 %v443
      %v700 = vunpack.c.l.bf16 %v444
      %v701 = vunpack.c.l.bf16 %v445
      %v702 = vunpack.c.l.bf16 %v446
      %v703 = vunpack.c.l.bf16 %v447
      %v704 = vunpack.c.l.bf16 %v448
      %v705 = vunpack.c.l.bf16 %v449
      %v706 = vunpack.c.l.bf16 %v450
      %v707 = vunpack.c.l.bf16 %v451
      %v708 = vunpack.c.l.bf16 %v452
      %v709 = vunpack.c.l.bf16 %v453
      %v710 = vunpack.c.l.bf16 %v454
      %v711 = vunpack.c.l.bf16 %v455
      %v712 = vunpack.c.l.bf16 %v456
      %v713 = vunpack.c.l.bf16 %v457
      %v714 = vunpack.c.l.bf16 %v458
      %v715 = vunpack.c.l.bf16 %v459
      %v716 = vunpack.c.l.bf16 %v460
      %v717 = vunpack.c.l.bf16 %v461
      %v718 = vunpack.c.l.bf16 %v462
      %v719 = vunpack.c.l.bf16 %v463
      %v720 = vunpack.c.l.bf16 %v464
      %v721 = vunpack.c.l.bf16 %v465
      %v722 = vunpack.c.l.bf16 %v466
      %v723 = vunpack.c.l.bf16 %v467
      %v724 = vunpack.c.l.bf16 %v468
      %v725 = vunpack.c.l.bf16 %v469
      %v726 = vunpack.c.l.bf16 %v470
      %v727 = vunpack.c.l.bf16 %v471
      %v728 = vunpack.c.l.bf16 %v472
      %v729 = vunpack.c.l.bf16 %v473
      %v730 = vunpack.c.l.bf16 %v474
      %v731 = vunpack.c.l.bf16 %v475
      %v732 = vunpack.c.l.bf16 %v476
      %v733 = vunpack.c.l.bf16 %v477
      %v734 = vunpack.c.l.bf16 %v478
      %v735 = vunpack.c.l.bf16 %v479
      %v736 = vunpack.c.l.bf16 %v480
      %v737 = vunpack.c.l.bf16 %v481
      %v738 = vunpack.c.l.bf16 %v482
      %v739 = vunpack.c.l.bf16 %v483
      %v740 = vunpack.c.l.bf16 %v484
      %v741 = vunpack.c.l.bf16 %v485
      %v742 = vunpack.c.l.bf16 %v486
      %v743 = vunpack.c.l.bf16 %v487
      %v744 = vunpack.c.l.bf16 %v488
      %v745 = vunpack.c.l.bf16 %v489
      %v746 = vunpack.c.l.bf16 %v490
      %v747 = vunpack.c.l.bf16 %v491
      %v748 = vunpack.c.l.bf16 %v492
      %v749 = vunpack.c.l.bf16 %v493
      %v750 = vunpack.c.l.bf16 %v494
      %v751 = vunpack.c.l.bf16 %v495
      %v752 = vunpack.c.l.bf16 %v496
      %v753 = vunpack.c.l.bf16 %v497
      %v754 = vunpack.c.l.bf16 %v498
      %v755 = vunpack.c.l.bf16 %v499
      %v756 = vunpack.c.l.bf16 %v500
      %v757 = vunpack.c.l.bf16 %v501
      %v758 = vunpack.c.l.bf16 %v502
      %v759 = vunpack.c.l.bf16 %v503
      %v760 = vunpack.c.l.bf16 %v504
      %v761 = vunpack.c.l.bf16 %v505
      %v762 = vunpack.c.l.bf16 %v506
      %v763 = vunpack.c.l.bf16 %v507
      %v764 = vunpack.c.l.bf16 %v508
      %v765 = vunpack.c.l.bf16 %v509
      %v766 = vunpack.c.l.bf16 %v510
      %v767 = vunpack.c.l.bf16 %v511
      %v768 = vunpack.c.l.bf16 %v512
      %v769 = vunpack.c.l.bf16 %v513
      %v770 = vunpack.c.l.bf16 %v514
      %v771 = vunpack.c.l.bf16 %v515
      %v772 = vunpack.c.l.bf16 %v516
      %v773 = vunpack.c.l.bf16 %v517
      %v774 = vunpack.c.l.bf16 %v518
      %v775 = vunpack.c.l.bf16 %v519
      %v776 = vunpack.c.l.bf16 %v520
      %v777 = vunpack.c.l.bf16 %v521
      %v778 = vunpack.c.l.bf16 %v522
      %v779 = vunpack.c.l.bf16 %v523
      %v780 = vunpack.c.l.bf16 %v524
      %v781 = vunpack.c.l.bf16 %v525
      %v782 = vunpack.c.l.bf16 %v526
      %v783 = vunpack.c.l.bf16 %v527
      %v784 = vunpack.c.l.bf16 %v528
      %v785 = vunpack.c.l.bf16 %v529
      %v786 = vunpack.c.l.bf16 %v530
      %v787 = vunpack.c.l.bf16 %v531
      %v788 = vunpack.c.l.bf16 %v532
      %v789 = vunpack.c.l.bf16 %v533
      %v790 = vunpack.c.l.bf16 %v534
      %v791 = vunpack.c.l.bf16 %v535
      %v792 = vunpack.c.l.bf16 %v536
      %v793 = vunpack.c.l.bf16 %v537
      %v794 = vadd.f32 %v538, %v539
      %v795 = vadd.f32 %v794, %v540
      %v796 = vadd.f32 %v795, %v541
      %v797 = vadd.f32 %v796, %v542
      %v798 = vadd.f32 %v797, %v543
      %v799 = vadd.f32 %v798, %v544
      %v800 = vadd.f32 %v799, %v545
      %v801 = vadd.f32 %v800, %v546
      %v802 = vadd.f32 %v801, %v547
      %v803 = vadd.f32 %v802, %v548
      %v804 = vadd.f32 %v803, %v549
      %v805 = vadd.f32 %v804, %v550
      %v806 = vadd.f32 %v805, %v551
      %v807 = vadd.f32 %v806, %v552
      %v808 = vadd.f32 %v807, %v553
      %v809 = vadd.f32 %v808, %v554
      %v810 = vadd.f32 %v809, %v555
      %v811 = vadd.f32 %v810, %v556
      %v812 = vadd.f32 %v811, %v557
      %v813 = vadd.f32 %v812, %v558
      %v814 = vadd.f32 %v813, %v559
      %v815 = vadd.f32 %v814, %v560
      %v816 = vadd.f32 %v815, %v561
      %v817 = vadd.f32 %v816, %v562
      %v818 = vadd.f32 %v817, %v563
      %v819 = vadd.f32 %v818, %v564
      %v820 = vadd.f32 %v819, %v565
      %v821 = vadd.f32 %v820, %v566
      %v822 = vadd.f32 %v821, %v567
      %v823 = vadd.f32 %v822, %v568
      %v824 = vadd.f32 %v823, %v569
      %v825 = vrot.slane %v824, 4
      %v826 = vadd.f32 %v824, %v825
      %v827 = vrot.slane %v826, 2
      %v828 = vadd.f32 %v826, %v827
      %v829 = vrot.slane %v828, 1
      %v830 = vadd.f32 %v828, %v829
      %v831 = vadd.f32 %v570, %v571
      %v832 = vadd.f32 %v831, %v572
      %v833 = vadd.f32 %v832, %v573
      %v834 = vadd.f32 %v833, %v574
      %v835 = vadd.f32 %v834, %v575
      %v836 = vadd.f32 %v835, %v576
      %v837 = vadd.f32 %v836, %v577
      %v838 = vadd.f32 %v837, %v578
      %v839 = vadd.f32 %v838, %v579
      %v840 = vadd.f32 %v839, %v580
      %v841 = vadd.f32 %v840, %v581
      %v842 = vadd.f32 %v841, %v582
      %v843 = vadd.f32 %v842, %v583
      %v844 = vadd.f32 %v843, %v584
      %v845 = vadd.f32 %v844, %v585
      %v846 = vadd.f32 %v845, %v586
      %v847 = vadd.f32 %v846, %v587
      %v848 = vadd.f32 %v847, %v588
      %v849 = vadd.f32 %v848, %v589
      %v850 = vadd.f32 %v849, %v590
      %v851 = vadd.f32 %v850, %v591
      %v852 = vadd.f32 %v851, %v592
      %v853 = vadd.f32 %v852, %v593
      %v854 = vadd.f32 %v853, %v594
      %v855 = vadd.f32 %v854, %v595
      %v856 = vadd.f32 %v855, %v596
      %v857 = vadd.f32 %v856, %v597
      %v858 = vadd.f32 %v857, %v598
      %v859 = vadd.f32 %v858, %v599
      %v860 = vadd.f32 %v859, %v600
      %v861 = vadd.f32 %v860, %v601
      %v862 = vrot.slane %v861, 4
      %v863 = vadd.f32 %v861, %v862
      %v864 = vrot.slane %v863, 2
      %v865 = vadd.f32 %v863, %v864
      %v866 = vrot.slane %v865, 1
      %v867 = vadd.f32 %v865, %v866
      %v868 = vadd.f32 %v602, %v603
      %v869 = vadd.f32 %v868, %v604
      %v870 = vadd.f32 %v869, %v605
      %v871 = vadd.f32 %v870, %v606
      %v872 = vadd.f32 %v871, %v607
      %v873 = vadd.f32 %v872, %v608
      %v874 = vadd.f32 %v873, %v609
      %v875 = vadd.f32 %v874, %v610
      %v876 = vadd.f32 %v875, %v611
      %v877 = vadd.f32 %v876, %v612
      %v878 = vadd.f32 %v877, %v613
      %v879 = vadd.f32 %v878, %v614
      %v880 = vadd.f32 %v879, %v615
      %v881 = vadd.f32 %v880, %v616
      %v882 = vadd.f32 %v881, %v617
      %v883 = vadd.f32 %v882, %v618
      %v884 = vadd.f32 %v883, %v619
      %v885 = vadd.f32 %v884, %v620
      %v886 = vadd.f32 %v885, %v621
      %v887 = vadd.f32 %v886, %v622
      %v888 = vadd.f32 %v887, %v623
      %v889 = vadd.f32 %v888, %v624
      %v890 = vadd.f32 %v889, %v625
      %v891 = vadd.f32 %v890, %v626
      %v892 = vadd.f32 %v891, %v627
      %v893 = vadd.f32 %v892, %v628
      %v894 = vadd.f32 %v893, %v629
      %v895 = vadd.f32 %v894, %v630
      %v896 = vadd.f32 %v895, %v631
      %v897 = vadd.f32 %v896, %v632
      %v898 = vadd.f32 %v897, %v633
      %v899 = vrot.slane %v898, 4
      %v900 = vadd.f32 %v898, %v899
      %v901 = vrot.slane %v900, 2
      %v902 = vadd.f32 %v900, %v901
      %v903 = vrot.slane %v902, 1
      %v904 = vadd.f32 %v902, %v903
      %v905 = vadd.f32 %v634, %v635
      %v906 = vadd.f32 %v905, %v636
      %v907 = vadd.f32 %v906, %v637
      %v908 = vadd.f32 %v907, %v638
      %v909 = vadd.f32 %v908, %v639
      %v910 = vadd.f32 %v909, %v640
      %v911 = vadd.f32 %v910, %v641
      %v912 = vadd.f32 %v911, %v642
      %v913 = vadd.f32 %v912, %v643
      %v914 = vadd.f32 %v913, %v644
      %v915 = vadd.f32 %v914, %v645
      %v916 = vadd.f32 %v915, %v646
      %v917 = vadd.f32 %v916, %v647
      %v918 = vadd.f32 %v917, %v648
      %v919 = vadd.f32 %v918, %v649
      %v920 = vadd.f32 %v919, %v650
      %v921 = vadd.f32 %v920, %v651
      %v922 = vadd.f32 %v921, %v652
      %v923 = vadd.f32 %v922, %v653
      %v924 = vadd.f32 %v923, %v654
      %v925 = vadd.f32 %v924, %v655
      %v926 = vadd.f32 %v925, %v656
      %v927 = vadd.f32 %v926, %v657
      %v928 = vadd.f32 %v927, %v658
      %v929 = vadd.f32 %v928, %v659
      %v930 = vadd.f32 %v929, %v660
      %v931 = vadd.f32 %v930, %v661
      %v932 = vadd.f32 %v931, %v662
      %v933 = vadd.f32 %v932, %v663
      %v934 = vadd.f32 %v933, %v664
      %v935 = vadd.f32 %v934, %v665
      %v936 = vrot.slane %v935, 4
      %v937 = vadd.f32 %v935, %v936
      %v938 = vrot.slane %v937, 2
      %v939 = vadd.f32 %v937, %v938
      %v940 = vrot.slane %v939, 1
      %v941 = vadd.f32 %v939, %v940
      %v942 = vadd.f32 %v666, %v667
      %v943 = vadd.f32 %v942, %v668
      %v944 = vadd.f32 %v943, %v669
      %v945 = vadd.f32 %v944, %v670
      %v946 = vadd.f32 %v945, %v671
      %v947 = vadd.f32 %v946, %v672
      %v948 = vadd.f32 %v947, %v673
      %v949 = vadd.f32 %v948, %v674
      %v950 = vadd.f32 %v949, %v675
      %v951 = vadd.f32 %v950, %v676
      %v952 = vadd.f32 %v951, %v677
      %v953 = vadd.f32 %v952, %v678
      %v954 = vadd.f32 %v953, %v679
      %v955 = vadd.f32 %v954, %v680
      %v956 = vadd.f32 %v955, %v681
      %v957 = vadd.f32 %v956, %v682
      %v958 = vadd.f32 %v957, %v683
      %v959 = vadd.f32 %v958, %v684
      %v960 = vadd.f32 %v959, %v685
      %v961 = vadd.f32 %v960, %v686
      %v962 = vadd.f32 %v961, %v687
      %v963 = vadd.f32 %v962, %v688
      %v964 = vadd.f32 %v963, %v689
      %v965 = vadd.f32 %v964, %v690
      %v966 = vadd.f32 %v965, %v691
      %v967 = vadd.f32 %v966, %v692
      %v968 = vadd.f32 %v967, %v693
      %v969 = vadd.f32 %v968, %v694
      %v970 = vadd.f32 %v969, %v695
      %v971 = vadd.f32 %v970, %v696
      %v972 = vadd.f32 %v971, %v697
      %v973 = vrot.slane %v972, 4
      %v974 = vadd.f32 %v972, %v973
      %v975 = vrot.slane %v974, 2
      %v976 = vadd.f32 %v974, %v975
      %v977 = vrot.slane %v976, 1
      %v978 = vadd.f32 %v976, %v977
      %v979 = vadd.f32 %v698, %v699
      %v980 = vadd.f32 %v979, %v700
      %v981 = vadd.f32 %v980, %v701
      %v982 = vadd.f32 %v981, %v702
      %v983 = vadd.f32 %v982, %v703
      %v984 = vadd.f32 %v983, %v704
      %v985 = vadd.f32 %v984, %v705
      %v986 = vadd.f32 %v985, %v706
      %v987 = vadd.f32 %v986, %v707
      %v988 = vadd.f32 %v987, %v708
      %v989 = vadd.f32 %v988, %v709
      %v990 = vadd.f32 %v989, %v710
      %v991 = vadd.f32 %v990, %v711
      %v992 = vadd.f32 %v991, %v712
      %v993 = vadd.f32 %v992, %v713
      %v994 = vadd.f32 %v993, %v714
      %v995 = vadd.f32 %v994, %v715
      %v996 = vadd.f32 %v995, %v716
      %v997 = vadd.f32 %v996, %v717
      %v998 = vadd.f32 %v997, %v718
      %v999 = vadd.f32 %v998, %v719
      %v1000 = vadd.f32 %v999, %v720
      %v1001 = vadd.f32 %v1000, %v721
      %v1002 = vadd.f32 %v1001, %v722
      %v1003 = vadd.f32 %v1002, %v723
      %v1004 = vadd.f32 %v1003, %v724
      %v1005 = vadd.f32 %v1004, %v725
      %v1006 = vadd.f32 %v1005, %v726
      %v1007 = vadd.f32 %v1006, %v727
      %v1008 = vadd.f32 %v1007, %v728
      %v1009 = vadd.f32 %v1008, %v729
      %v1010 = vrot.slane %v1009, 4
      %v1011 = vadd.f32 %v1009, %v1010
      %v1012 = vrot.slane %v1011, 2
      %v1013 = vadd.f32 %v1011, %v1012
      %v1014 = vrot.slane %v1013, 1
      %v1015 = vadd.f32 %v1013, %v1014
      %v1016 = vadd.f32 %v730, %v731
      %v1017 = vadd.f32 %v1016, %v732
      %v1018 = vadd.f32 %v1017, %v733
      %v1019 = vadd.f32 %v1018, %v734
      %v1020 = vadd.f32 %v1019, %v735
      %v1021 = vadd.f32 %v1020, %v736
      %v1022 = vadd.f32 %v1021, %v737
      %v1023 = vadd.f32 %v1022, %v738
      %v1024 = vadd.f32 %v1023, %v739
      %v1025 = vadd.f32 %v1024, %v740
      %v1026 = vadd.f32 %v1025, %v741
      %v1027 = vadd.f32 %v1026, %v742
      %v1028 = vadd.f32 %v1027, %v743
      %v1029 = vadd.f32 %v1028, %v744
      %v1030 = vadd.f32 %v1029, %v745
      %v1031 = vadd.f32 %v1030, %v746
      %v1032 = vadd.f32 %v1031, %v747
      %v1033 = vadd.f32 %v1032, %v748
      %v1034 = vadd.f32 %v1033, %v749
      %v1035 = vadd.f32 %v1034, %v750
      %v1036 = vadd.f32 %v1035, %v751
      %v1037 = vadd.f32 %v1036, %v752
      %v1038 = vadd.f32 %v1037, %v753
      %v1039 = vadd.f32 %v1038, %v754
      %v1040 = vadd.f32 %v1039, %v755
      %v1041 = vadd.f32 %v1040, %v756
      %v1042 = vadd.f32 %v1041, %v757
      %v1043 = vadd.f32 %v1042, %v758
      %v1044 = vadd.f32 %v1043, %v759
      %v1045 = vadd.f32 %v1044, %v760
      %v1046 = vadd.f32 %v1045, %v761
      %v1047 = vrot.slane %v1046, 4
      %v1048 = vadd.f32 %v1046, %v1047
      %v1049 = vrot.slane %v1048, 2
      %v1050 = vadd.f32 %v1048, %v1049
      %v1051 = vrot.slane %v1050, 1
      %v1052 = vadd.f32 %v1050, %v1051
      %v1053 = vadd.f32 %v762, %v763
      %v1054 = vadd.f32 %v1053, %v764
      %v1055 = vadd.f32 %v1054, %v765
      %v1056 = vadd.f32 %v1055, %v766
      %v1057 = vadd.f32 %v1056, %v767
      %v1058 = vadd.f32 %v1057, %v768
      %v1059 = vadd.f32 %v1058, %v769
      %v1060 = vadd.f32 %v1059, %v770
      %v1061 = vadd.f32 %v1060, %v771
      %v1062 = vadd.f32 %v1061, %v772
      %v1063 = vadd.f32 %v1062, %v773
      %v1064 = vadd.f32 %v1063, %v774
      %v1065 = vadd.f32 %v1064, %v775
      %v1066 = vadd.f32 %v1065, %v776
      %v1067 = vadd.f32 %v1066, %v777
      %v1068 = vadd.f32 %v1067, %v778
      %v1069 = vadd.f32 %v1068, %v779
      %v1070 = vadd.f32 %v1069, %v780
      %v1071 = vadd.f32 %v1070, %v781
      %v1072 = vadd.f32 %v1071, %v782
      %v1073 = vadd.f32 %v1072, %v783
      %v1074 = vadd.f32 %v1073, %v784
      %v1075 = vadd.f32 %v1074, %v785
      %v1076 = vadd.f32 %v1075, %v786
      %v1077 = vadd.f32 %v1076, %v787
      %v1078 = vadd.f32 %v1077, %v788
      %v1079 = vadd.f32 %v1078, %v789
      %v1080 = vadd.f32 %v1079, %v790
      %v1081 = vadd.f32 %v1080, %v791
      %v1082 = vadd.f32 %v1081, %v792
      %v1083 = vadd.f32 %v1082, %v793
      %v1084 = vrot.slane %v1083, 4
      %v1085 = vadd.f32 %v1083, %v1084
      %v1086 = vrot.slane %v1085, 2
      %v1087 = vadd.f32 %v1085, %v1086
      %v1088 = vrot.slane %v1087, 1
      %v1089 = vadd.f32 %v1087, %v1088
      %v1090 = vmul.f32 %v830, 0.00390625
      %v1091 = vmul.f32 %v867, 0.00390625
      %v1092 = vmul.f32 %v904, 0.00390625
      %v1093 = vmul.f32 %v941, 0.00390625
      %v1094 = vmul.f32 %v978, 0.00390625
      %v1095 = vmul.f32 %v1015, 0.00390625
      %v1096 = vmul.f32 %v1052, 0.00390625
      %v1097 = vmul.f32 %v1089, 0.00390625
      %v1098 = vpack.c.bf16 %v1090, %v1090
      %v1099 = vpack.c.bf16 %v1091, %v1091
      %v1100 = vpack.c.bf16 %v1092, %v1092
      %v1101 = vpack.c.bf16 %v1093, %v1093
      %v1102 = vpack.c.bf16 %v1094, %v1094
      %v1103 = vpack.c.bf16 %v1095, %v1095
      %v1104 = vpack.c.bf16 %v1096, %v1096
      %v1105 = vpack.c.bf16 %v1097, %v1097
      %v1106 = vld [vmem:[%s1] sm:$0xff]
      %v1107 = vld [vmem:[%s1 + $0x8] sm:$0xff]
      %v1108 = vld [vmem:[%s1 + $0x10] sm:$0xff]
      %v1109 = vld [vmem:[%s1 + $0x18] sm:$0xff]
      %v1110 = vld [vmem:[%s1 + $0x20] sm:$0xff]
      %v1111 = vld [vmem:[%s1 + $0x28] sm:$0xff]
      %v1112 = vld [vmem:[%s1 + $0x30] sm:$0xff]
      %v1113 = vld [vmem:[%s1 + $0x38] sm:$0xff]
      %v1114 = vld [vmem:[%s1 + $0x40] sm:$0xff]
      %v1115 = vld [vmem:[%s1 + $0x48] sm:$0xff]
      %v1116 = vld [vmem:[%s1 + $0x50] sm:$0xff]
      %v1117 = vld [vmem:[%s1 + $0x58] sm:$0xff]
      %v1118 = vld [vmem:[%s1 + $0x60] sm:$0xff]
      %v1119 = vld [vmem:[%s1 + $0x68] sm:$0xff]
      %v1120 = vld [vmem:[%s1 + $0x70] sm:$0xff]
      %v1121 = vld [vmem:[%s1 + $0x78] sm:$0xff]
      %v1122 = vld [vmem:[%s1 + $0x80] sm:$0xff]
      %v1123 = vld [vmem:[%s1 + $0x88] sm:$0xff]
      %v1124 = vld [vmem:[%s1 + $0x90] sm:$0xff]
      %v1125 = vld [vmem:[%s1 + $0x98] sm:$0xff]
      %v1126 = vld [vmem:[%s1 + $0xa0] sm:$0xff]
      %v1127 = vld [vmem:[%s1 + $0xa8] sm:$0xff]
      %v1128 = vld [vmem:[%s1 + $0xb0] sm:$0xff]
      %v1129 = vld [vmem:[%s1 + $0xb8] sm:$0xff]
      %v1130 = vld [vmem:[%s1 + $0xc0] sm:$0xff]
      %v1131 = vld [vmem:[%s1 + $0xc8] sm:$0xff]
      %v1132 = vld [vmem:[%s1 + $0xd0] sm:$0xff]
      %v1133 = vld [vmem:[%s1 + $0xd8] sm:$0xff]
      %v1134 = vld [vmem:[%s1 + $0xe0] sm:$0xff]
      %v1135 = vld [vmem:[%s1 + $0xe8] sm:$0xff]
      %v1136 = vld [vmem:[%s1 + $0xf0] sm:$0xff]
      %v1137 = vld [vmem:[%s1 + $0xf8] sm:$0xff]
      %v1138 = vld [vmem:[%s1 + $0x100] sm:$0xff]
      %v1139 = vld [vmem:[%s1 + $0x108] sm:$0xff]
      %v1140 = vld [vmem:[%s1 + $0x110] sm:$0xff]
      %v1141 = vld [vmem:[%s1 + $0x118] sm:$0xff]
      %v1142 = vld [vmem:[%s1 + $0x120] sm:$0xff]
      %v1143 = vld [vmem:[%s1 + $0x128] sm:$0xff]
      %v1144 = vld [vmem:[%s1 + $0x130] sm:$0xff]
      %v1145 = vld [vmem:[%s1 + $0x138] sm:$0xff]
      %v1146 = vld [vmem:[%s1 + $0x140] sm:$0xff]
      %v1147 = vld [vmem:[%s1 + $0x148] sm:$0xff]
      %v1148 = vld [vmem:[%s1 + $0x150] sm:$0xff]
      %v1149 = vld [vmem:[%s1 + $0x158] sm:$0xff]
      %v1150 = vld [vmem:[%s1 + $0x160] sm:$0xff]
      %v1151 = vld [vmem:[%s1 + $0x168] sm:$0xff]
      %v1152 = vld [vmem:[%s1 + $0x170] sm:$0xff]
      %v1153 = vld [vmem:[%s1 + $0x178] sm:$0xff]
      %v1154 = vld [vmem:[%s1 + $0x180] sm:$0xff]
      %v1155 = vld [vmem:[%s1 + $0x188] sm:$0xff]
      %v1156 = vld [vmem:[%s1 + $0x190] sm:$0xff]
      %v1157 = vld [vmem:[%s1 + $0x198] sm:$0xff]
      %v1158 = vld [vmem:[%s1 + $0x1a0] sm:$0xff]
      %v1159 = vld [vmem:[%s1 + $0x1a8] sm:$0xff]
      %v1160 = vld [vmem:[%s1 + $0x1b0] sm:$0xff]
      %v1161 = vld [vmem:[%s1 + $0x1b8] sm:$0xff]
      %v1162 = vld [vmem:[%s1 + $0x1c0] sm:$0xff]
      %v1163 = vld [vmem:[%s1 + $0x1c8] sm:$0xff]
      %v1164 = vld [vmem:[%s1 + $0x1d0] sm:$0xff]
      %v1165 = vld [vmem:[%s1 + $0x1d8] sm:$0xff]
      %v1166 = vld [vmem:[%s1 + $0x1e0] sm:$0xff]
      %v1167 = vld [vmem:[%s1 + $0x1e8] sm:$0xff]
      %v1168 = vld [vmem:[%s1 + $0x1f0] sm:$0xff]
      %v1169 = vld [vmem:[%s1 + $0x1f8] sm:$0xff]
      %v1170 = vld [vmem:[%s2] sm:$0xff]
      %v1172 = vperm.slane %v1170, 0
      %v1173 = vperm.slane %v1170, 1
      %v1174 = vperm.slane %v1170, 2
      %v1175 = vperm.slane %v1170, 3
      %v1176 = vperm.slane %v1170, 4
      %v1177 = vperm.slane %v1170, 5
      %v1178 = vperm.slane %v1170, 6
      %v1179 = vperm.slane %v1170, 7
      %v1196 = vunpack.c.l.b16 %v1098
      %v1197 = vunpack.c.l.b16 %v1099
      %v1198 = vunpack.c.l.b16 %v1100
      %v1199 = vunpack.c.l.b16 %v1101
      %v1200 = vunpack.c.l.b16 %v1102
      %v1201 = vunpack.c.l.b16 %v1103
      %v1202 = vunpack.c.l.b16 %v1104
      %v1203 = vunpack.c.l.b16 %v1105
      %vm1204 = vcmask 1041409
      %v1205 = vsel %vm1204, %v1197, %v1196
      %vm1206 = vcmask 1042434
      %v1207 = vsel %vm1206, %v1198, %v1205
      %vm1208 = vcmask 1043459
      %v1209 = vsel %vm1208, %v1199, %v1207
      %vm1210 = vcmask 1044484
      %v1211 = vsel %vm1210, %v1200, %v1209
      %vm1212 = vcmask 1045509
      %v1213 = vsel %vm1212, %v1201, %v1211
      %vm1214 = vcmask 1046534
      %v1215 = vsel %vm1214, %v1202, %v1213
      %vm1216 = vcmask 1047559
      %v1217 = vsel %vm1216, %v1203, %v1215
      %v1218 = vpack.c.b16 %v1217, %v1217
      %v1284 = vunpack.c.l.b16 %v1106
      %v1285 = vunpack.c.h.b16 %v1106
      %v1286 = vunpack.c.l.b16 %v1107
      %v1287 = vunpack.c.h.b16 %v1107
      %v1288 = vunpack.c.l.b16 %v1108
      %v1289 = vunpack.c.h.b16 %v1108
      %v1290 = vunpack.c.l.b16 %v1109
      %v1291 = vunpack.c.h.b16 %v1109
      %v1292 = vunpack.c.l.b16 %v1110
      %v1293 = vunpack.c.h.b16 %v1110
      %v1294 = vunpack.c.l.b16 %v1111
      %v1295 = vunpack.c.h.b16 %v1111
      %v1296 = vunpack.c.l.b16 %v1112
      %v1297 = vunpack.c.h.b16 %v1112
      %v1298 = vunpack.c.l.b16 %v1113
      %v1299 = vunpack.c.h.b16 %v1113
      %v1300 = vunpack.c.l.b16 %v1114
      %v1301 = vunpack.c.h.b16 %v1114
      %v1302 = vunpack.c.l.b16 %v1115
      %v1303 = vunpack.c.h.b16 %v1115
      %v1304 = vunpack.c.l.b16 %v1116
      %v1305 = vunpack.c.h.b16 %v1116
      %v1306 = vunpack.c.l.b16 %v1117
      %v1307 = vunpack.c.h.b16 %v1117
      %v1308 = vunpack.c.l.b16 %v1118
      %v1309 = vunpack.c.h.b16 %v1118
      %v1310 = vunpack.c.l.b16 %v1119
      %v1311 = vunpack.c.h.b16 %v1119
      %v1312 = vunpack.c.l.b16 %v1120
      %v1313 = vunpack.c.h.b16 %v1120
      %v1314 = vunpack.c.l.b16 %v1121
      %v1315 = vunpack.c.h.b16 %v1121
      %v1316 = vunpack.c.l.b16 %v1122
      %v1317 = vunpack.c.h.b16 %v1122
      %v1318 = vunpack.c.l.b16 %v1123
      %v1319 = vunpack.c.h.b16 %v1123
      %v1320 = vunpack.c.l.b16 %v1124
      %v1321 = vunpack.c.h.b16 %v1124
      %v1322 = vunpack.c.l.b16 %v1125
      %v1323 = vunpack.c.h.b16 %v1125
      %v1324 = vunpack.c.l.b16 %v1126
      %v1325 = vunpack.c.h.b16 %v1126
      %v1326 = vunpack.c.l.b16 %v1127
      %v1327 = vunpack.c.h.b16 %v1127
      %v1328 = vunpack.c.l.b16 %v1128
      %v1329 = vunpack.c.h.b16 %v1128
      %v1330 = vunpack.c.l.b16 %v1129
      %v1331 = vunpack.c.h.b16 %v1129
      %v1332 = vunpack.c.l.b16 %v1130
      %v1333 = vunpack.c.h.b16 %v1130
      %v1334 = vunpack.c.l.b16 %v1131
      %v1335 = vunpack.c.h.b16 %v1131
      %v1336 = vunpack.c.l.b16 %v1132
      %v1337 = vunpack.c.h.b16 %v1132
      %v1338 = vunpack.c.l.b16 %v1133
      %v1339 = vunpack.c.h.b16 %v1133
      %v1340 = vunpack.c.l.b16 %v1134
      %v1341 = vunpack.c.h.b16 %v1134
      %v1342 = vunpack.c.l.b16 %v1135
      %v1343 = vunpack.c.h.b16 %v1135
      %v1344 = vunpack.c.l.b16 %v1136
      %v1345 = vunpack.c.h.b16 %v1136
      %v1346 = vunpack.c.l.b16 %v1137
      %v1347 = vunpack.c.h.b16 %v1137
      %v1348 = vunpack.c.l.b16 %v1138
      %v1349 = vunpack.c.h.b16 %v1138
      %v1350 = vunpack.c.l.b16 %v1139
      %v1351 = vunpack.c.h.b16 %v1139
      %v1352 = vunpack.c.l.b16 %v1140
      %v1353 = vunpack.c.h.b16 %v1140
      %v1354 = vunpack.c.l.b16 %v1141
      %v1355 = vunpack.c.h.b16 %v1141
      %v1356 = vunpack.c.l.b16 %v1142
      %v1357 = vunpack.c.h.b16 %v1142
      %v1358 = vunpack.c.l.b16 %v1143
      %v1359 = vunpack.c.h.b16 %v1143
      %v1360 = vunpack.c.l.b16 %v1144
      %v1361 = vunpack.c.h.b16 %v1144
      %v1362 = vunpack.c.l.b16 %v1145
      %v1363 = vunpack.c.h.b16 %v1145
      %v1364 = vunpack.c.l.b16 %v1146
      %v1365 = vunpack.c.h.b16 %v1146
      %v1366 = vunpack.c.l.b16 %v1147
      %v1367 = vunpack.c.h.b16 %v1147
      %v1368 = vunpack.c.l.b16 %v1148
      %v1369 = vunpack.c.h.b16 %v1148
      %v1370 = vunpack.c.l.b16 %v1149
      %v1371 = vunpack.c.h.b16 %v1149
      %v1372 = vunpack.c.l.b16 %v1150
      %v1373 = vunpack.c.h.b16 %v1150
      %v1374 = vunpack.c.l.b16 %v1151
      %v1375 = vunpack.c.h.b16 %v1151
      %v1376 = vunpack.c.l.b16 %v1152
      %v1377 = vunpack.c.h.b16 %v1152
      %v1378 = vunpack.c.l.b16 %v1153
      %v1379 = vunpack.c.h.b16 %v1153
      %v1380 = vunpack.c.l.b16 %v1154
      %v1381 = vunpack.c.h.b16 %v1154
      %v1382 = vunpack.c.l.b16 %v1155
      %v1383 = vunpack.c.h.b16 %v1155
      %v1384 = vunpack.c.l.b16 %v1156
      %v1385 = vunpack.c.h.b16 %v1156
      %v1386 = vunpack.c.l.b16 %v1157
      %v1387 = vunpack.c.h.b16 %v1157
      %v1388 = vunpack.c.l.b16 %v1158
      %v1389 = vunpack.c.h.b16 %v1158
      %v1390 = vunpack.c.l.b16 %v1159
      %v1391 = vunpack.c.h.b16 %v1159
      %v1392 = vunpack.c.l.b16 %v1160
      %v1393 = vunpack.c.h.b16 %v1160
      %v1394 = vunpack.c.l.b16 %v1161
      %v1395 = vunpack.c.h.b16 %v1161
      %v1396 = vunpack.c.l.b16 %v1162
      %v1397 = vunpack.c.h.b16 %v1162
      %v1398 = vunpack.c.l.b16 %v1163
      %v1399 = vunpack.c.h.b16 %v1163
      %v1400 = vunpack.c.l.b16 %v1164
      %v1401 = vunpack.c.h.b16 %v1164
      %v1402 = vunpack.c.l.b16 %v1165
      %v1403 = vunpack.c.h.b16 %v1165
      %v1404 = vunpack.c.l.b16 %v1166
      %v1405 = vunpack.c.h.b16 %v1166
      %v1406 = vunpack.c.l.b16 %v1167
      %v1407 = vunpack.c.h.b16 %v1167
      %v1408 = vunpack.c.l.b16 %v1168
      %v1409 = vunpack.c.h.b16 %v1168
      %v1410 = vunpack.c.l.b16 %v1169
      %v1411 = vunpack.c.h.b16 %v1169
      %v1412 = vpack.c.b16 %v1292, %v1284
      %v1413 = vpack.c.b16 %v1293, %v1285
      %v1414 = vpack.c.b16 %v1294, %v1286
      %v1415 = vpack.c.b16 %v1295, %v1287
      %v1416 = vpack.c.b16 %v1296, %v1288
      %v1417 = vpack.c.b16 %v1297, %v1289
      %v1418 = vpack.c.b16 %v1298, %v1290
      %v1419 = vpack.c.b16 %v1299, %v1291
      %v1420 = vpack.c.b16 %v1308, %v1300
      %v1421 = vpack.c.b16 %v1309, %v1301
      %v1422 = vpack.c.b16 %v1310, %v1302
      %v1423 = vpack.c.b16 %v1311, %v1303
      %v1424 = vpack.c.b16 %v1312, %v1304
      %v1425 = vpack.c.b16 %v1313, %v1305
      %v1426 = vpack.c.b16 %v1314, %v1306
      %v1427 = vpack.c.b16 %v1315, %v1307
      %v1428 = vpack.c.b16 %v1324, %v1316
      %v1429 = vpack.c.b16 %v1325, %v1317
      %v1430 = vpack.c.b16 %v1326, %v1318
      %v1431 = vpack.c.b16 %v1327, %v1319
      %v1432 = vpack.c.b16 %v1328, %v1320
      %v1433 = vpack.c.b16 %v1329, %v1321
      %v1434 = vpack.c.b16 %v1330, %v1322
      %v1435 = vpack.c.b16 %v1331, %v1323
      %v1436 = vpack.c.b16 %v1340, %v1332
      %v1437 = vpack.c.b16 %v1341, %v1333
      %v1438 = vpack.c.b16 %v1342, %v1334
      %v1439 = vpack.c.b16 %v1343, %v1335
      %v1440 = vpack.c.b16 %v1344, %v1336
      %v1441 = vpack.c.b16 %v1345, %v1337
      %v1442 = vpack.c.b16 %v1346, %v1338
      %v1443 = vpack.c.b16 %v1347, %v1339
      %v1444 = vpack.c.b16 %v1356, %v1348
      %v1445 = vpack.c.b16 %v1357, %v1349
      %v1446 = vpack.c.b16 %v1358, %v1350
      %v1447 = vpack.c.b16 %v1359, %v1351
      %v1448 = vpack.c.b16 %v1360, %v1352
      %v1449 = vpack.c.b16 %v1361, %v1353
      %v1450 = vpack.c.b16 %v1362, %v1354
      %v1451 = vpack.c.b16 %v1363, %v1355
      %v1452 = vpack.c.b16 %v1372, %v1364
      %v1453 = vpack.c.b16 %v1373, %v1365
      %v1454 = vpack.c.b16 %v1374, %v1366
      %v1455 = vpack.c.b16 %v1375, %v1367
      %v1456 = vpack.c.b16 %v1376, %v1368
      %v1457 = vpack.c.b16 %v1377, %v1369
      %v1458 = vpack.c.b16 %v1378, %v1370
      %v1459 = vpack.c.b16 %v1379, %v1371
      %v1460 = vpack.c.b16 %v1388, %v1380
      %v1461 = vpack.c.b16 %v1389, %v1381
      %v1462 = vpack.c.b16 %v1390, %v1382
      %v1463 = vpack.c.b16 %v1391, %v1383
      %v1464 = vpack.c.b16 %v1392, %v1384
      %v1465 = vpack.c.b16 %v1393, %v1385
      %v1466 = vpack.c.b16 %v1394, %v1386
      %v1467 = vpack.c.b16 %v1395, %v1387
      %v1468 = vpack.c.b16 %v1404, %v1396
      %v1469 = vpack.c.b16 %v1405, %v1397
      %v1470 = vpack.c.b16 %v1406, %v1398
      %v1471 = vpack.c.b16 %v1407, %v1399
      %v1472 = vpack.c.b16 %v1408, %v1400
      %v1473 = vpack.c.b16 %v1409, %v1401
      %v1474 = vpack.c.b16 %v1410, %v1402
      %v1475 = vpack.c.b16 %v1411, %v1403
      %1540 = vmatpush.bf16.msra.mxu0 %v1468
      %1541 = vmatpush.bf16.msra.mxu0 %v1460
      %1542 = vmatpush.bf16.msra.mxu0 %v1452
      %1543 = vmatpush.bf16.msra.mxu0 %v1444
      %1544 = vmatpush.bf16.msra.mxu0 %v1436
      %1545 = vmatpush.bf16.msra.mxu0 %v1428
      %1546 = vmatpush.bf16.msra.mxu0 %v1420
      %1547 = vmatpush.bf16.msra.mxu0 %v1412
      %1548 = vmatmul.bf16.gmra.mxu0 %v1218
      %v1549 = vpop.f32.mrf.mxu0
      %v1550 = vadd.f32 %v1172, %v1549
      %v1551 = vpop.f32.mrf.mxu0
      %1552 = vdwg.mxu0
      %1553 = vmatpush.bf16.msra.mxu0 %v1469
      %1554 = vmatpush.bf16.msra.mxu0 %v1461
      %1555 = vmatpush.bf16.msra.mxu0 %v1453
      %1556 = vmatpush.bf16.msra.mxu0 %v1445
      %1557 = vmatpush.bf16.msra.mxu0 %v1437
      %1558 = vmatpush.bf16.msra.mxu0 %v1429
      %1559 = vmatpush.bf16.msra.mxu0 %v1421
      %1560 = vmatpush.bf16.msra.mxu0 %v1413
      %1561 = vmatmul.bf16.gmra.mxu0 %v1218
      %v1562 = vpop.f32.mrf.mxu0
      %v1563 = vadd.f32 %v1173, %v1562
      %v1564 = vpop.f32.mrf.mxu0
      %1565 = vdwg.mxu0
      %1566 = vmatpush.bf16.msra.mxu0 %v1470
      %1567 = vmatpush.bf16.msra.mxu0 %v1462
      %1568 = vmatpush.bf16.msra.mxu0 %v1454
      %1569 = vmatpush.bf16.msra.mxu0 %v1446
      %1570 = vmatpush.bf16.msra.mxu0 %v1438
      %1571 = vmatpush.bf16.msra.mxu0 %v1430
      %1572 = vmatpush.bf16.msra.mxu0 %v1422
      %1573 = vmatpush.bf16.msra.mxu0 %v1414
      %1574 = vmatmul.bf16.gmra.mxu0 %v1218
      %v1575 = vpop.f32.mrf.mxu0
      %v1576 = vadd.f32 %v1174, %v1575
      %v1577 = vpop.f32.mrf.mxu0
      %1578 = vdwg.mxu0
      %1579 = vmatpush.bf16.msra.mxu0 %v1471
      %1580 = vmatpush.bf16.msra.mxu0 %v1463
      %1581 = vmatpush.bf16.msra.mxu0 %v1455
      %1582 = vmatpush.bf16.msra.mxu0 %v1447
      %1583 = vmatpush.bf16.msra.mxu0 %v1439
      %1584 = vmatpush.bf16.msra.mxu0 %v1431
      %1585 = vmatpush.bf16.msra.mxu0 %v1423
      %1586 = vmatpush.bf16.msra.mxu0 %v1415
      %1587 = vmatmul.bf16.gmra.mxu0 %v1218
      %v1588 = vpop.f32.mrf.mxu0
      %v1589 = vadd.f32 %v1175, %v1588
      %v1590 = vpop.f32.mrf.mxu0
      %1591 = vdwg.mxu0
      %1592 = vmatpush.bf16.msra.mxu0 %v1472
      %1593 = vmatpush.bf16.msra.mxu0 %v1464
      %1594 = vmatpush.bf16.msra.mxu0 %v1456
      %1595 = vmatpush.bf16.msra.mxu0 %v1448
      %1596 = vmatpush.bf16.msra.mxu0 %v1440
      %1597 = vmatpush.bf16.msra.mxu0 %v1432
      %1598 = vmatpush.bf16.msra.mxu0 %v1424
      %1599 = vmatpush.bf16.msra.mxu0 %v1416
      %1600 = vmatmul.bf16.gmra.mxu0 %v1218
      %v1601 = vpop.f32.mrf.mxu0
      %v1602 = vadd.f32 %v1176, %v1601
      %v1603 = vpop.f32.mrf.mxu0
      %1604 = vdwg.mxu0
      %1605 = vmatpush.bf16.msra.mxu0 %v1473
      %1606 = vmatpush.bf16.msra.mxu0 %v1465
      %1607 = vmatpush.bf16.msra.mxu0 %v1457
      %1608 = vmatpush.bf16.msra.mxu0 %v1449
      %1609 = vmatpush.bf16.msra.mxu0 %v1441
      %1610 = vmatpush.bf16.msra.mxu0 %v1433
      %1611 = vmatpush.bf16.msra.mxu0 %v1425
      %1612 = vmatpush.bf16.msra.mxu0 %v1417
      %1613 = vmatmul.bf16.gmra.mxu0 %v1218
      %v1614 = vpop.f32.mrf.mxu0
      %v1615 = vadd.f32 %v1177, %v1614
      %v1616 = vpop.f32.mrf.mxu0
      %1617 = vdwg.mxu0
      %1618 = vmatpush.bf16.msra.mxu0 %v1474
      %1619 = vmatpush.bf16.msra.mxu0 %v1466
      %1620 = vmatpush.bf16.msra.mxu0 %v1458
      %1621 = vmatpush.bf16.msra.mxu0 %v1450
      %1622 = vmatpush.bf16.msra.mxu0 %v1442
      %1623 = vmatpush.bf16.msra.mxu0 %v1434
      %1624 = vmatpush.bf16.msra.mxu0 %v1426
      %1625 = vmatpush.bf16.msra.mxu0 %v1418
      %1626 = vmatmul.bf16.gmra.mxu0 %v1218
      %v1627 = vpop.f32.mrf.mxu0
      %v1628 = vadd.f32 %v1178, %v1627
      %v1629 = vpop.f32.mrf.mxu0
      %1630 = vdwg.mxu0
      %1631 = vmatpush.bf16.msra.mxu0 %v1475
      %1632 = vmatpush.bf16.msra.mxu0 %v1467
      %1633 = vmatpush.bf16.msra.mxu0 %v1459
      %1634 = vmatpush.bf16.msra.mxu0 %v1451
      %1635 = vmatpush.bf16.msra.mxu0 %v1443
      %1636 = vmatpush.bf16.msra.mxu0 %v1435
      %1637 = vmatpush.bf16.msra.mxu0 %v1427
      %1638 = vmatpush.bf16.msra.mxu0 %v1419
      %1639 = vmatmul.bf16.gmra.mxu0 %v1218
      %v1640 = vpop.f32.mrf.mxu0
      %v1641 = vadd.f32 %v1179, %v1640
      %v1642 = vpop.f32.mrf.mxu0
      %1643 = vdwg.mxu0
      %v1644 = vpack.c.bf16 %v1550, %v1550
      %v1645 = vpack.c.bf16 %v1563, %v1563
      %v1646 = vpack.c.bf16 %v1576, %v1576
      %v1647 = vpack.c.bf16 %v1589, %v1589
      %v1648 = vpack.c.bf16 %v1602, %v1602
      %v1649 = vpack.c.bf16 %v1615, %v1615
      %v1650 = vpack.c.bf16 %v1628, %v1628
      %v1651 = vpack.c.bf16 %v1641, %v1641
      %v1652 = vld [vmem:[%s3] sm:$0xff]
      %v1653 = vld [vmem:[%s3 + $0x8] sm:$0xff]
      %v1654 = vld [vmem:[%s3 + $0x10] sm:$0xff]
      %v1655 = vld [vmem:[%s3 + $0x18] sm:$0xff]
      %v1656 = vld [vmem:[%s3 + $0x20] sm:$0xff]
      %v1657 = vld [vmem:[%s3 + $0x28] sm:$0xff]
      %v1658 = vld [vmem:[%s3 + $0x30] sm:$0xff]
      %v1659 = vld [vmem:[%s3 + $0x38] sm:$0xff]
      %v1660 = vld [vmem:[%s3 + $0x40] sm:$0xff]
      %v1661 = vld [vmem:[%s3 + $0x48] sm:$0xff]
      %v1662 = vld [vmem:[%s3 + $0x50] sm:$0xff]
      %v1663 = vld [vmem:[%s3 + $0x58] sm:$0xff]
      %v1664 = vld [vmem:[%s3 + $0x60] sm:$0xff]
      %v1665 = vld [vmem:[%s3 + $0x68] sm:$0xff]
      %v1666 = vld [vmem:[%s3 + $0x70] sm:$0xff]
      %v1667 = vld [vmem:[%s3 + $0x78] sm:$0xff]
      %v1668 = vld [vmem:[%s3 + $0x80] sm:$0xff]
      %v1669 = vld [vmem:[%s3 + $0x88] sm:$0xff]
      %v1670 = vld [vmem:[%s3 + $0x90] sm:$0xff]
      %v1671 = vld [vmem:[%s3 + $0x98] sm:$0xff]
      %v1672 = vld [vmem:[%s3 + $0xa0] sm:$0xff]
      %v1673 = vld [vmem:[%s3 + $0xa8] sm:$0xff]
      %v1674 = vld [vmem:[%s3 + $0xb0] sm:$0xff]
      %v1675 = vld [vmem:[%s3 + $0xb8] sm:$0xff]
      %v1676 = vld [vmem:[%s3 + $0xc0] sm:$0xff]
      %v1677 = vld [vmem:[%s3 + $0xc8] sm:$0xff]
      %v1678 = vld [vmem:[%s3 + $0xd0] sm:$0xff]
      %v1679 = vld [vmem:[%s3 + $0xd8] sm:$0xff]
      %v1680 = vld [vmem:[%s3 + $0xe0] sm:$0xff]
      %v1681 = vld [vmem:[%s3 + $0xe8] sm:$0xff]
      %v1682 = vld [vmem:[%s3 + $0xf0] sm:$0xff]
      %v1683 = vld [vmem:[%s3 + $0xf8] sm:$0xff]
      %v1684 = vld [vmem:[%s3 + $0x100] sm:$0xff]
      %v1685 = vld [vmem:[%s3 + $0x108] sm:$0xff]
      %v1686 = vld [vmem:[%s3 + $0x110] sm:$0xff]
      %v1687 = vld [vmem:[%s3 + $0x118] sm:$0xff]
      %v1688 = vld [vmem:[%s3 + $0x120] sm:$0xff]
      %v1689 = vld [vmem:[%s3 + $0x128] sm:$0xff]
      %v1690 = vld [vmem:[%s3 + $0x130] sm:$0xff]
      %v1691 = vld [vmem:[%s3 + $0x138] sm:$0xff]
      %v1692 = vld [vmem:[%s3 + $0x140] sm:$0xff]
      %v1693 = vld [vmem:[%s3 + $0x148] sm:$0xff]
      %v1694 = vld [vmem:[%s3 + $0x150] sm:$0xff]
      %v1695 = vld [vmem:[%s3 + $0x158] sm:$0xff]
      %v1696 = vld [vmem:[%s3 + $0x160] sm:$0xff]
      %v1697 = vld [vmem:[%s3 + $0x168] sm:$0xff]
      %v1698 = vld [vmem:[%s3 + $0x170] sm:$0xff]
      %v1699 = vld [vmem:[%s3 + $0x178] sm:$0xff]
      %v1700 = vld [vmem:[%s3 + $0x180] sm:$0xff]
      %v1701 = vld [vmem:[%s3 + $0x188] sm:$0xff]
      %v1702 = vld [vmem:[%s3 + $0x190] sm:$0xff]
      %v1703 = vld [vmem:[%s3 + $0x198] sm:$0xff]
      %v1704 = vld [vmem:[%s3 + $0x1a0] sm:$0xff]
      %v1705 = vld [vmem:[%s3 + $0x1a8] sm:$0xff]
      %v1706 = vld [vmem:[%s3 + $0x1b0] sm:$0xff]
      %v1707 = vld [vmem:[%s3 + $0x1b8] sm:$0xff]
      %v1708 = vld [vmem:[%s3 + $0x1c0] sm:$0xff]
      %v1709 = vld [vmem:[%s3 + $0x1c8] sm:$0xff]
      %v1710 = vld [vmem:[%s3 + $0x1d0] sm:$0xff]
      %v1711 = vld [vmem:[%s3 + $0x1d8] sm:$0xff]
      %v1712 = vld [vmem:[%s3 + $0x1e0] sm:$0xff]
      %v1713 = vld [vmem:[%s3 + $0x1e8] sm:$0xff]
      %v1714 = vld [vmem:[%s3 + $0x1f0] sm:$0xff]
      %v1715 = vld [vmem:[%s3 + $0x1f8] sm:$0xff]
      %v1716 = vld [vmem:[%s3 + $0x200] sm:$0xff]
      %v1717 = vld [vmem:[%s3 + $0x208] sm:$0xff]
      %v1718 = vld [vmem:[%s3 + $0x210] sm:$0xff]
      %v1719 = vld [vmem:[%s3 + $0x218] sm:$0xff]
      %v1720 = vld [vmem:[%s3 + $0x220] sm:$0xff]
      %v1721 = vld [vmem:[%s3 + $0x228] sm:$0xff]
      %v1722 = vld [vmem:[%s3 + $0x230] sm:$0xff]
      %v1723 = vld [vmem:[%s3 + $0x238] sm:$0xff]
      %v1724 = vld [vmem:[%s3 + $0x240] sm:$0xff]
      %v1725 = vld [vmem:[%s3 + $0x248] sm:$0xff]
      %v1726 = vld [vmem:[%s3 + $0x250] sm:$0xff]
      %v1727 = vld [vmem:[%s3 + $0x258] sm:$0xff]
      %v1728 = vld [vmem:[%s3 + $0x260] sm:$0xff]
      %v1729 = vld [vmem:[%s3 + $0x268] sm:$0xff]
      %v1730 = vld [vmem:[%s3 + $0x270] sm:$0xff]
      %v1731 = vld [vmem:[%s3 + $0x278] sm:$0xff]
      %v1732 = vld [vmem:[%s3 + $0x280] sm:$0xff]
      %v1733 = vld [vmem:[%s3 + $0x288] sm:$0xff]
      %v1734 = vld [vmem:[%s3 + $0x290] sm:$0xff]
      %v1735 = vld [vmem:[%s3 + $0x298] sm:$0xff]
      %v1736 = vld [vmem:[%s3 + $0x2a0] sm:$0xff]
      %v1737 = vld [vmem:[%s3 + $0x2a8] sm:$0xff]
      %v1738 = vld [vmem:[%s3 + $0x2b0] sm:$0xff]
      %v1739 = vld [vmem:[%s3 + $0x2b8] sm:$0xff]
      %v1740 = vld [vmem:[%s3 + $0x2c0] sm:$0xff]
      %v1741 = vld [vmem:[%s3 + $0x2c8] sm:$0xff]
      %v1742 = vld [vmem:[%s3 + $0x2d0] sm:$0xff]
      %v1743 = vld [vmem:[%s3 + $0x2d8] sm:$0xff]
      %v1744 = vld [vmem:[%s3 + $0x2e0] sm:$0xff]
      %v1745 = vld [vmem:[%s3 + $0x2e8] sm:$0xff]
      %v1746 = vld [vmem:[%s3 + $0x2f0] sm:$0xff]
      %v1747 = vld [vmem:[%s3 + $0x2f8] sm:$0xff]
      %v1748 = vld [vmem:[%s3 + $0x300] sm:$0xff]
      %v1749 = vld [vmem:[%s3 + $0x308] sm:$0xff]
      %v1750 = vld [vmem:[%s3 + $0x310] sm:$0xff]
      %v1751 = vld [vmem:[%s3 + $0x318] sm:$0xff]
      %v1752 = vld [vmem:[%s3 + $0x320] sm:$0xff]
      %v1753 = vld [vmem:[%s3 + $0x328] sm:$0xff]
      %v1754 = vld [vmem:[%s3 + $0x330] sm:$0xff]
      %v1755 = vld [vmem:[%s3 + $0x338] sm:$0xff]
      %v1756 = vld [vmem:[%s3 + $0x340] sm:$0xff]
      %v1757 = vld [vmem:[%s3 + $0x348] sm:$0xff]
      %v1758 = vld [vmem:[%s3 + $0x350] sm:$0xff]
      %v1759 = vld [vmem:[%s3 + $0x358] sm:$0xff]
      %v1760 = vld [vmem:[%s3 + $0x360] sm:$0xff]
      %v1761 = vld [vmem:[%s3 + $0x368] sm:$0xff]
      %v1762 = vld [vmem:[%s3 + $0x370] sm:$0xff]
      %v1763 = vld [vmem:[%s3 + $0x378] sm:$0xff]
      %v1764 = vld [vmem:[%s3 + $0x380] sm:$0xff]
      %v1765 = vld [vmem:[%s3 + $0x388] sm:$0xff]
      %v1766 = vld [vmem:[%s3 + $0x390] sm:$0xff]
      %v1767 = vld [vmem:[%s3 + $0x398] sm:$0xff]
      %v1768 = vld [vmem:[%s3 + $0x3a0] sm:$0xff]
      %v1769 = vld [vmem:[%s3 + $0x3a8] sm:$0xff]
      %v1770 = vld [vmem:[%s3 + $0x3b0] sm:$0xff]
      %v1771 = vld [vmem:[%s3 + $0x3b8] sm:$0xff]
      %v1772 = vld [vmem:[%s3 + $0x3c0] sm:$0xff]
      %v1773 = vld [vmem:[%s3 + $0x3c8] sm:$0xff]
      %v1774 = vld [vmem:[%s3 + $0x3d0] sm:$0xff]
      %v1775 = vld [vmem:[%s3 + $0x3d8] sm:$0xff]
      %v1776 = vld [vmem:[%s3 + $0x3e0] sm:$0xff]
      %v1777 = vld [vmem:[%s3 + $0x3e8] sm:$0xff]
      %v1778 = vld [vmem:[%s3 + $0x3f0] sm:$0xff]
      %v1779 = vld [vmem:[%s3 + $0x3f8] sm:$0xff]
      %v1780 = vld [vmem:[%s4] sm:$0x3]
      %v1782 = vperm.slane %v1780, 0
      %v1783 = vperm.slane %v1780, 1
      %v1914 = vunpack.c.l.b16 %v1652
      %v1915 = vunpack.c.h.b16 %v1652
      %v1916 = vunpack.c.l.b16 %v1653
      %v1917 = vunpack.c.h.b16 %v1653
      %v1918 = vunpack.c.l.b16 %v1654
      %v1919 = vunpack.c.h.b16 %v1654
      %v1920 = vunpack.c.l.b16 %v1655
      %v1921 = vunpack.c.h.b16 %v1655
      %v1922 = vunpack.c.l.b16 %v1656
      %v1923 = vunpack.c.h.b16 %v1656
      %v1924 = vunpack.c.l.b16 %v1657
      %v1925 = vunpack.c.h.b16 %v1657
      %v1926 = vunpack.c.l.b16 %v1658
      %v1927 = vunpack.c.h.b16 %v1658
      %v1928 = vunpack.c.l.b16 %v1659
      %v1929 = vunpack.c.h.b16 %v1659
      %v1930 = vunpack.c.l.b16 %v1660
      %v1931 = vunpack.c.h.b16 %v1660
      %v1932 = vunpack.c.l.b16 %v1661
      %v1933 = vunpack.c.h.b16 %v1661
      %v1934 = vunpack.c.l.b16 %v1662
      %v1935 = vunpack.c.h.b16 %v1662
      %v1936 = vunpack.c.l.b16 %v1663
      %v1937 = vunpack.c.h.b16 %v1663
      %v1938 = vunpack.c.l.b16 %v1664
      %v1939 = vunpack.c.h.b16 %v1664
      %v1940 = vunpack.c.l.b16 %v1665
      %v1941 = vunpack.c.h.b16 %v1665
      %v1942 = vunpack.c.l.b16 %v1666
      %v1943 = vunpack.c.h.b16 %v1666
      %v1944 = vunpack.c.l.b16 %v1667
      %v1945 = vunpack.c.h.b16 %v1667
      %v1946 = vunpack.c.l.b16 %v1668
      %v1947 = vunpack.c.h.b16 %v1668
      %v1948 = vunpack.c.l.b16 %v1669
      %v1949 = vunpack.c.h.b16 %v1669
      %v1950 = vunpack.c.l.b16 %v1670
      %v1951 = vunpack.c.h.b16 %v1670
      %v1952 = vunpack.c.l.b16 %v1671
      %v1953 = vunpack.c.h.b16 %v1671
      %v1954 = vunpack.c.l.b16 %v1672
      %v1955 = vunpack.c.h.b16 %v1672
      %v1956 = vunpack.c.l.b16 %v1673
      %v1957 = vunpack.c.h.b16 %v1673
      %v1958 = vunpack.c.l.b16 %v1674
      %v1959 = vunpack.c.h.b16 %v1674
      %v1960 = vunpack.c.l.b16 %v1675
      %v1961 = vunpack.c.h.b16 %v1675
      %v1962 = vunpack.c.l.b16 %v1676
      %v1963 = vunpack.c.h.b16 %v1676
      %v1964 = vunpack.c.l.b16 %v1677
      %v1965 = vunpack.c.h.b16 %v1677
      %v1966 = vunpack.c.l.b16 %v1678
      %v1967 = vunpack.c.h.b16 %v1678
      %v1968 = vunpack.c.l.b16 %v1679
      %v1969 = vunpack.c.h.b16 %v1679
      %v1970 = vunpack.c.l.b16 %v1680
      %v1971 = vunpack.c.h.b16 %v1680
      %v1972 = vunpack.c.l.b16 %v1681
      %v1973 = vunpack.c.h.b16 %v1681
      %v1974 = vunpack.c.l.b16 %v1682
      %v1975 = vunpack.c.h.b16 %v1682
      %v1976 = vunpack.c.l.b16 %v1683
      %v1977 = vunpack.c.h.b16 %v1683
      %v1978 = vunpack.c.l.b16 %v1684
      %v1979 = vunpack.c.h.b16 %v1684
      %v1980 = vunpack.c.l.b16 %v1685
      %v1981 = vunpack.c.h.b16 %v1685
      %v1982 = vunpack.c.l.b16 %v1686
      %v1983 = vunpack.c.h.b16 %v1686
      %v1984 = vunpack.c.l.b16 %v1687
      %v1985 = vunpack.c.h.b16 %v1687
      %v1986 = vunpack.c.l.b16 %v1688
      %v1987 = vunpack.c.h.b16 %v1688
      %v1988 = vunpack.c.l.b16 %v1689
      %v1989 = vunpack.c.h.b16 %v1689
      %v1990 = vunpack.c.l.b16 %v1690
      %v1991 = vunpack.c.h.b16 %v1690
      %v1992 = vunpack.c.l.b16 %v1691
      %v1993 = vunpack.c.h.b16 %v1691
      %v1994 = vunpack.c.l.b16 %v1692
      %v1995 = vunpack.c.h.b16 %v1692
      %v1996 = vunpack.c.l.b16 %v1693
      %v1997 = vunpack.c.h.b16 %v1693
      %v1998 = vunpack.c.l.b16 %v1694
      %v1999 = vunpack.c.h.b16 %v1694
      %v2000 = vunpack.c.l.b16 %v1695
      %v2001 = vunpack.c.h.b16 %v1695
      %v2002 = vunpack.c.l.b16 %v1696
      %v2003 = vunpack.c.h.b16 %v1696
      %v2004 = vunpack.c.l.b16 %v1697
      %v2005 = vunpack.c.h.b16 %v1697
      %v2006 = vunpack.c.l.b16 %v1698
      %v2007 = vunpack.c.h.b16 %v1698
      %v2008 = vunpack.c.l.b16 %v1699
      %v2009 = vunpack.c.h.b16 %v1699
      %v2010 = vunpack.c.l.b16 %v1700
      %v2011 = vunpack.c.h.b16 %v1700
      %v2012 = vunpack.c.l.b16 %v1701
      %v2013 = vunpack.c.h.b16 %v1701
      %v2014 = vunpack.c.l.b16 %v1702
      %v2015 = vunpack.c.h.b16 %v1702
      %v2016 = vunpack.c.l.b16 %v1703
      %v2017 = vunpack.c.h.b16 %v1703
      %v2018 = vunpack.c.l.b16 %v1704
      %v2019 = vunpack.c.h.b16 %v1704
      %v2020 = vunpack.c.l.b16 %v1705
      %v2021 = vunpack.c.h.b16 %v1705
      %v2022 = vunpack.c.l.b16 %v1706
      %v2023 = vunpack.c.h.b16 %v1706
      %v2024 = vunpack.c.l.b16 %v1707
      %v2025 = vunpack.c.h.b16 %v1707
      %v2026 = vunpack.c.l.b16 %v1708
      %v2027 = vunpack.c.h.b16 %v1708
      %v2028 = vunpack.c.l.b16 %v1709
      %v2029 = vunpack.c.h.b16 %v1709
      %v2030 = vunpack.c.l.b16 %v1710
      %v2031 = vunpack.c.h.b16 %v1710
      %v2032 = vunpack.c.l.b16 %v1711
      %v2033 = vunpack.c.h.b16 %v1711
      %v2034 = vunpack.c.l.b16 %v1712
      %v2035 = vunpack.c.h.b16 %v1712
      %v2036 = vunpack.c.l.b16 %v1713
      %v2037 = vunpack.c.h.b16 %v1713
      %v2038 = vunpack.c.l.b16 %v1714
      %v2039 = vunpack.c.h.b16 %v1714
      %v2040 = vunpack.c.l.b16 %v1715
      %v2041 = vunpack.c.h.b16 %v1715
      %v2042 = vunpack.c.l.b16 %v1716
      %v2043 = vunpack.c.h.b16 %v1716
      %v2044 = vunpack.c.l.b16 %v1717
      %v2045 = vunpack.c.h.b16 %v1717
      %v2046 = vunpack.c.l.b16 %v1718
      %v2047 = vunpack.c.h.b16 %v1718
      %v2048 = vunpack.c.l.b16 %v1719
      %v2049 = vunpack.c.h.b16 %v1719
      %v2050 = vunpack.c.l.b16 %v1720
      %v2051 = vunpack.c.h.b16 %v1720
      %v2052 = vunpack.c.l.b16 %v1721
      %v2053 = vunpack.c.h.b16 %v1721
      %v2054 = vunpack.c.l.b16 %v1722
      %v2055 = vunpack.c.h.b16 %v1722
      %v2056 = vunpack.c.l.b16 %v1723
      %v2057 = vunpack.c.h.b16 %v1723
      %v2058 = vunpack.c.l.b16 %v1724
      %v2059 = vunpack.c.h.b16 %v1724
      %v2060 = vunpack.c.l.b16 %v1725
      %v2061 = vunpack.c.h.b16 %v1725
      %v2062 = vunpack.c.l.b16 %v1726
      %v2063 = vunpack.c.h.b16 %v1726
      %v2064 = vunpack.c.l.b16 %v1727
      %v2065 = vunpack.c.h.b16 %v1727
      %v2066 = vunpack.c.l.b16 %v1728
      %v2067 = vunpack.c.h.b16 %v1728
      %v2068 = vunpack.c.l.b16 %v1729
      %v2069 = vunpack.c.h.b16 %v1729
      %v2070 = vunpack.c.l.b16 %v1730
      %v2071 = vunpack.c.h.b16 %v1730
      %v2072 = vunpack.c.l.b16 %v1731
      %v2073 = vunpack.c.h.b16 %v1731
      %v2074 = vunpack.c.l.b16 %v1732
      %v2075 = vunpack.c.h.b16 %v1732
      %v2076 = vunpack.c.l.b16 %v1733
      %v2077 = vunpack.c.h.b16 %v1733
      %v2078 = vunpack.c.l.b16 %v1734
      %v2079 = vunpack.c.h.b16 %v1734
      %v2080 = vunpack.c.l.b16 %v1735
      %v2081 = vunpack.c.h.b16 %v1735
      %v2082 = vunpack.c.l.b16 %v1736
      %v2083 = vunpack.c.h.b16 %v1736
      %v2084 = vunpack.c.l.b16 %v1737
      %v2085 = vunpack.c.h.b16 %v1737
      %v2086 = vunpack.c.l.b16 %v1738
      %v2087 = vunpack.c.h.b16 %v1738
      %v2088 = vunpack.c.l.b16 %v1739
      %v2089 = vunpack.c.h.b16 %v1739
      %v2090 = vunpack.c.l.b16 %v1740
      %v2091 = vunpack.c.h.b16 %v1740
      %v2092 = vunpack.c.l.b16 %v1741
      %v2093 = vunpack.c.h.b16 %v1741
      %v2094 = vunpack.c.l.b16 %v1742
      %v2095 = vunpack.c.h.b16 %v1742
      %v2096 = vunpack.c.l.b16 %v1743
      %v2097 = vunpack.c.h.b16 %v1743
      %v2098 = vunpack.c.l.b16 %v1744
      %v2099 = vunpack.c.h.b16 %v1744
      %v2100 = vunpack.c.l.b16 %v1745
      %v2101 = vunpack.c.h.b16 %v1745
      %v2102 = vunpack.c.l.b16 %v1746
      %v2103 = vunpack.c.h.b16 %v1746
      %v2104 = vunpack.c.l.b16 %v1747
      %v2105 = vunpack.c.h.b16 %v1747
      %v2106 = vunpack.c.l.b16 %v1748
      %v2107 = vunpack.c.h.b16 %v1748
      %v2108 = vunpack.c.l.b16 %v1749
      %v2109 = vunpack.c.h.b16 %v1749
      %v2110 = vunpack.c.l.b16 %v1750
      %v2111 = vunpack.c.h.b16 %v1750
      %v2112 = vunpack.c.l.b16 %v1751
      %v2113 = vunpack.c.h.b16 %v1751
      %v2114 = vunpack.c.l.b16 %v1752
      %v2115 = vunpack.c.h.b16 %v1752
      %v2116 = vunpack.c.l.b16 %v1753
      %v2117 = vunpack.c.h.b16 %v1753
      %v2118 = vunpack.c.l.b16 %v1754
      %v2119 = vunpack.c.h.b16 %v1754
      %v2120 = vunpack.c.l.b16 %v1755
      %v2121 = vunpack.c.h.b16 %v1755
      %v2122 = vunpack.c.l.b16 %v1756
      %v2123 = vunpack.c.h.b16 %v1756
      %v2124 = vunpack.c.l.b16 %v1757
      %v2125 = vunpack.c.h.b16 %v1757
      %v2126 = vunpack.c.l.b16 %v1758
      %v2127 = vunpack.c.h.b16 %v1758
      %v2128 = vunpack.c.l.b16 %v1759
      %v2129 = vunpack.c.h.b16 %v1759
      %v2130 = vunpack.c.l.b16 %v1760
      %v2131 = vunpack.c.h.b16 %v1760
      %v2132 = vunpack.c.l.b16 %v1761
      %v2133 = vunpack.c.h.b16 %v1761
      %v2134 = vunpack.c.l.b16 %v1762
      %v2135 = vunpack.c.h.b16 %v1762
      %v2136 = vunpack.c.l.b16 %v1763
      %v2137 = vunpack.c.h.b16 %v1763
      %v2138 = vunpack.c.l.b16 %v1764
      %v2139 = vunpack.c.h.b16 %v1764
      %v2140 = vunpack.c.l.b16 %v1765
      %v2141 = vunpack.c.h.b16 %v1765
      %v2142 = vunpack.c.l.b16 %v1766
      %v2143 = vunpack.c.h.b16 %v1766
      %v2144 = vunpack.c.l.b16 %v1767
      %v2145 = vunpack.c.h.b16 %v1767
      %v2146 = vunpack.c.l.b16 %v1768
      %v2147 = vunpack.c.h.b16 %v1768
      %v2148 = vunpack.c.l.b16 %v1769
      %v2149 = vunpack.c.h.b16 %v1769
      %v2150 = vunpack.c.l.b16 %v1770
      %v2151 = vunpack.c.h.b16 %v1770
      %v2152 = vunpack.c.l.b16 %v1771
      %v2153 = vunpack.c.h.b16 %v1771
      %v2154 = vunpack.c.l.b16 %v1772
      %v2155 = vunpack.c.h.b16 %v1772
      %v2156 = vunpack.c.l.b16 %v1773
      %v2157 = vunpack.c.h.b16 %v1773
      %v2158 = vunpack.c.l.b16 %v1774
      %v2159 = vunpack.c.h.b16 %v1774
      %v2160 = vunpack.c.l.b16 %v1775
      %v2161 = vunpack.c.h.b16 %v1775
      %v2162 = vunpack.c.l.b16 %v1776
      %v2163 = vunpack.c.h.b16 %v1776
      %v2164 = vunpack.c.l.b16 %v1777
      %v2165 = vunpack.c.h.b16 %v1777
      %v2166 = vunpack.c.l.b16 %v1778
      %v2167 = vunpack.c.h.b16 %v1778
      %v2168 = vunpack.c.l.b16 %v1779
      %v2169 = vunpack.c.h.b16 %v1779
      %v2170 = vpack.c.b16 %v1916, %v1914
      %v2171 = vpack.c.b16 %v1917, %v1915
      %v2172 = vpack.c.b16 %v1920, %v1918
      %v2173 = vpack.c.b16 %v1921, %v1919
      %v2174 = vpack.c.b16 %v1924, %v1922
      %v2175 = vpack.c.b16 %v1925, %v1923
      %v2176 = vpack.c.b16 %v1928, %v1926
      %v2177 = vpack.c.b16 %v1929, %v1927
      %v2178 = vpack.c.b16 %v1932, %v1930
      %v2179 = vpack.c.b16 %v1933, %v1931
      %v2180 = vpack.c.b16 %v1936, %v1934
      %v2181 = vpack.c.b16 %v1937, %v1935
      %v2182 = vpack.c.b16 %v1940, %v1938
      %v2183 = vpack.c.b16 %v1941, %v1939
      %v2184 = vpack.c.b16 %v1944, %v1942
      %v2185 = vpack.c.b16 %v1945, %v1943
      %v2186 = vpack.c.b16 %v1948, %v1946
      %v2187 = vpack.c.b16 %v1949, %v1947
      %v2188 = vpack.c.b16 %v1952, %v1950
      %v2189 = vpack.c.b16 %v1953, %v1951
      %v2190 = vpack.c.b16 %v1956, %v1954
      %v2191 = vpack.c.b16 %v1957, %v1955
      %v2192 = vpack.c.b16 %v1960, %v1958
      %v2193 = vpack.c.b16 %v1961, %v1959
      %v2194 = vpack.c.b16 %v1964, %v1962
      %v2195 = vpack.c.b16 %v1965, %v1963
      %v2196 = vpack.c.b16 %v1968, %v1966
      %v2197 = vpack.c.b16 %v1969, %v1967
      %v2198 = vpack.c.b16 %v1972, %v1970
      %v2199 = vpack.c.b16 %v1973, %v1971
      %v2200 = vpack.c.b16 %v1976, %v1974
      %v2201 = vpack.c.b16 %v1977, %v1975
      %v2202 = vpack.c.b16 %v1980, %v1978
      %v2203 = vpack.c.b16 %v1981, %v1979
      %v2204 = vpack.c.b16 %v1984, %v1982
      %v2205 = vpack.c.b16 %v1985, %v1983
      %v2206 = vpack.c.b16 %v1988, %v1986
      %v2207 = vpack.c.b16 %v1989, %v1987
      %v2208 = vpack.c.b16 %v1992, %v1990
      %v2209 = vpack.c.b16 %v1993, %v1991
      %v2210 = vpack.c.b16 %v1996, %v1994
      %v2211 = vpack.c.b16 %v1997, %v1995
      %v2212 = vpack.c.b16 %v2000, %v1998
      %v2213 = vpack.c.b16 %v2001, %v1999
      %v2214 = vpack.c.b16 %v2004, %v2002
      %v2215 = vpack.c.b16 %v2005, %v2003
      %v2216 = vpack.c.b16 %v2008, %v2006
      %v2217 = vpack.c.b16 %v2009, %v2007
      %v2218 = vpack.c.b16 %v2012, %v2010
      %v2219 = vpack.c.b16 %v2013, %v2011
      %v2220 = vpack.c.b16 %v2016, %v2014
      %v2221 = vpack.c.b16 %v2017, %v2015
      %v2222 = vpack.c.b16 %v2020, %v2018
      %v2223 = vpack.c.b16 %v2021, %v2019
      %v2224 = vpack.c.b16 %v2024, %v2022
      %v2225 = vpack.c.b16 %v2025, %v2023
      %v2226 = vpack.c.b16 %v2028, %v2026
      %v2227 = vpack.c.b16 %v2029, %v2027
      %v2228 = vpack.c.b16 %v2032, %v2030
      %v2229 = vpack.c.b16 %v2033, %v2031
      %v2230 = vpack.c.b16 %v2036, %v2034
      %v2231 = vpack.c.b16 %v2037, %v2035
      %v2232 = vpack.c.b16 %v2040, %v2038
      %v2233 = vpack.c.b16 %v2041, %v2039
      %v2234 = vpack.c.b16 %v2044, %v2042
      %v2235 = vpack.c.b16 %v2045, %v2043
      %v2236 = vpack.c.b16 %v2048, %v2046
      %v2237 = vpack.c.b16 %v2049, %v2047
      %v2238 = vpack.c.b16 %v2052, %v2050
      %v2239 = vpack.c.b16 %v2053, %v2051
      %v2240 = vpack.c.b16 %v2056, %v2054
      %v2241 = vpack.c.b16 %v2057, %v2055
      %v2242 = vpack.c.b16 %v2060, %v2058
      %v2243 = vpack.c.b16 %v2061, %v2059
      %v2244 = vpack.c.b16 %v2064, %v2062
      %v2245 = vpack.c.b16 %v2065, %v2063
      %v2246 = vpack.c.b16 %v2068, %v2066
      %v2247 = vpack.c.b16 %v2069, %v2067
      %v2248 = vpack.c.b16 %v2072, %v2070
      %v2249 = vpack.c.b16 %v2073, %v2071
      %v2250 = vpack.c.b16 %v2076, %v2074
      %v2251 = vpack.c.b16 %v2077, %v2075
      %v2252 = vpack.c.b16 %v2080, %v2078
      %v2253 = vpack.c.b16 %v2081, %v2079
      %v2254 = vpack.c.b16 %v2084, %v2082
      %v2255 = vpack.c.b16 %v2085, %v2083
      %v2256 = vpack.c.b16 %v2088, %v2086
      %v2257 = vpack.c.b16 %v2089, %v2087
      %v2258 = vpack.c.b16 %v2092, %v2090
      %v2259 = vpack.c.b16 %v2093, %v2091
      %v2260 = vpack.c.b16 %v2096, %v2094
      %v2261 = vpack.c.b16 %v2097, %v2095
      %v2262 = vpack.c.b16 %v2100, %v2098
      %v2263 = vpack.c.b16 %v2101, %v2099
      %v2264 = vpack.c.b16 %v2104, %v2102
      %v2265 = vpack.c.b16 %v2105, %v2103
      %v2266 = vpack.c.b16 %v2108, %v2106
      %v2267 = vpack.c.b16 %v2109, %v2107
      %v2268 = vpack.c.b16 %v2112, %v2110
      %v2269 = vpack.c.b16 %v2113, %v2111
      %v2270 = vpack.c.b16 %v2116, %v2114
      %v2271 = vpack.c.b16 %v2117, %v2115
      %v2272 = vpack.c.b16 %v2120, %v2118
      %v2273 = vpack.c.b16 %v2121, %v2119
      %v2274 = vpack.c.b16 %v2124, %v2122
      %v2275 = vpack.c.b16 %v2125, %v2123
      %v2276 = vpack.c.b16 %v2128, %v2126
      %v2277 = vpack.c.b16 %v2129, %v2127
      %v2278 = vpack.c.b16 %v2132, %v2130
      %v2279 = vpack.c.b16 %v2133, %v2131
      %v2280 = vpack.c.b16 %v2136, %v2134
      %v2281 = vpack.c.b16 %v2137, %v2135
      %v2282 = vpack.c.b16 %v2140, %v2138
      %v2283 = vpack.c.b16 %v2141, %v2139
      %v2284 = vpack.c.b16 %v2144, %v2142
      %v2285 = vpack.c.b16 %v2145, %v2143
      %v2286 = vpack.c.b16 %v2148, %v2146
      %v2287 = vpack.c.b16 %v2149, %v2147
      %v2288 = vpack.c.b16 %v2152, %v2150
      %v2289 = vpack.c.b16 %v2153, %v2151
      %v2290 = vpack.c.b16 %v2156, %v2154
      %v2291 = vpack.c.b16 %v2157, %v2155
      %v2292 = vpack.c.b16 %v2160, %v2158
      %v2293 = vpack.c.b16 %v2161, %v2159
      %v2294 = vpack.c.b16 %v2164, %v2162
      %v2295 = vpack.c.b16 %v2165, %v2163
      %v2296 = vpack.c.b16 %v2168, %v2166
      %v2297 = vpack.c.b16 %v2169, %v2167
      %2426 = vmatpush.bf16.msra.mxu0 %v2184
      %2427 = vmatpush.bf16.msra.mxu0 %v2182
      %2428 = vmatpush.bf16.msra.mxu0 %v2180
      %2429 = vmatpush.bf16.msra.mxu0 %v2178
      %2430 = vmatpush.bf16.msra.mxu0 %v2176
      %2431 = vmatpush.bf16.msra.mxu0 %v2174
      %2432 = vmatpush.bf16.msra.mxu0 %v2172
      %2433 = vmatpush.bf16.msra.mxu0 %v2170
      %2434 = vmatmul.bf16.gmra.mxu0 %v1644
      %v2435 = vpop.f32.mrf.mxu0
      %v2436 = vadd.f32 %v1782, %v2435
      %v2437 = vpop.f32.mrf.mxu0
      %2438 = vdwg.mxu0
      %2439 = vmatpush.bf16.msra.mxu0 %v2200
      %2440 = vmatpush.bf16.msra.mxu0 %v2198
      %2441 = vmatpush.bf16.msra.mxu0 %v2196
      %2442 = vmatpush.bf16.msra.mxu0 %v2194
      %2443 = vmatpush.bf16.msra.mxu0 %v2192
      %2444 = vmatpush.bf16.msra.mxu0 %v2190
      %2445 = vmatpush.bf16.msra.mxu0 %v2188
      %2446 = vmatpush.bf16.msra.mxu0 %v2186
      %2447 = vmatmul.bf16.gmra.mxu0 %v1645
      %v2448 = vpop.f32.mrf.mxu0
      %v2449 = vadd.f32 %v2436, %v2448
      %v2450 = vpop.f32.mrf.mxu0
      %2451 = vdwg.mxu0
      %2452 = vmatpush.bf16.msra.mxu0 %v2216
      %2453 = vmatpush.bf16.msra.mxu0 %v2214
      %2454 = vmatpush.bf16.msra.mxu0 %v2212
      %2455 = vmatpush.bf16.msra.mxu0 %v2210
      %2456 = vmatpush.bf16.msra.mxu0 %v2208
      %2457 = vmatpush.bf16.msra.mxu0 %v2206
      %2458 = vmatpush.bf16.msra.mxu0 %v2204
      %2459 = vmatpush.bf16.msra.mxu0 %v2202
      %2460 = vmatmul.bf16.gmra.mxu0 %v1646
      %v2461 = vpop.f32.mrf.mxu0
      %v2462 = vadd.f32 %v2449, %v2461
      %v2463 = vpop.f32.mrf.mxu0
      %2464 = vdwg.mxu0
      %2465 = vmatpush.bf16.msra.mxu0 %v2232
      %2466 = vmatpush.bf16.msra.mxu0 %v2230
      %2467 = vmatpush.bf16.msra.mxu0 %v2228
      %2468 = vmatpush.bf16.msra.mxu0 %v2226
      %2469 = vmatpush.bf16.msra.mxu0 %v2224
      %2470 = vmatpush.bf16.msra.mxu0 %v2222
      %2471 = vmatpush.bf16.msra.mxu0 %v2220
      %2472 = vmatpush.bf16.msra.mxu0 %v2218
      %2473 = vmatmul.bf16.gmra.mxu0 %v1647
      %v2474 = vpop.f32.mrf.mxu0
      %v2475 = vadd.f32 %v2462, %v2474
      %v2476 = vpop.f32.mrf.mxu0
      %2477 = vdwg.mxu0
      %2478 = vmatpush.bf16.msra.mxu0 %v2248
      %2479 = vmatpush.bf16.msra.mxu0 %v2246
      %2480 = vmatpush.bf16.msra.mxu0 %v2244
      %2481 = vmatpush.bf16.msra.mxu0 %v2242
      %2482 = vmatpush.bf16.msra.mxu0 %v2240
      %2483 = vmatpush.bf16.msra.mxu0 %v2238
      %2484 = vmatpush.bf16.msra.mxu0 %v2236
      %2485 = vmatpush.bf16.msra.mxu0 %v2234
      %2486 = vmatmul.bf16.gmra.mxu0 %v1648
      %v2487 = vpop.f32.mrf.mxu0
      %v2488 = vadd.f32 %v2475, %v2487
      %v2489 = vpop.f32.mrf.mxu0
      %2490 = vdwg.mxu0
      %2491 = vmatpush.bf16.msra.mxu0 %v2264
      %2492 = vmatpush.bf16.msra.mxu0 %v2262
      %2493 = vmatpush.bf16.msra.mxu0 %v2260
      %2494 = vmatpush.bf16.msra.mxu0 %v2258
      %2495 = vmatpush.bf16.msra.mxu0 %v2256
      %2496 = vmatpush.bf16.msra.mxu0 %v2254
      %2497 = vmatpush.bf16.msra.mxu0 %v2252
      %2498 = vmatpush.bf16.msra.mxu0 %v2250
      %2499 = vmatmul.bf16.gmra.mxu0 %v1649
      %v2500 = vpop.f32.mrf.mxu0
      %v2501 = vadd.f32 %v2488, %v2500
      %v2502 = vpop.f32.mrf.mxu0
      %2503 = vdwg.mxu0
      %2504 = vmatpush.bf16.msra.mxu0 %v2280
      %2505 = vmatpush.bf16.msra.mxu0 %v2278
      %2506 = vmatpush.bf16.msra.mxu0 %v2276
      %2507 = vmatpush.bf16.msra.mxu0 %v2274
      %2508 = vmatpush.bf16.msra.mxu0 %v2272
      %2509 = vmatpush.bf16.msra.mxu0 %v2270
      %2510 = vmatpush.bf16.msra.mxu0 %v2268
      %2511 = vmatpush.bf16.msra.mxu0 %v2266
      %2512 = vmatmul.bf16.gmra.mxu0 %v1650
      %v2513 = vpop.f32.mrf.mxu0
      %v2514 = vadd.f32 %v2501, %v2513
      %v2515 = vpop.f32.mrf.mxu0
      %2516 = vdwg.mxu0
      %2517 = vmatpush.bf16.msra.mxu0 %v2296
      %2518 = vmatpush.bf16.msra.mxu0 %v2294
      %2519 = vmatpush.bf16.msra.mxu0 %v2292
      %2520 = vmatpush.bf16.msra.mxu0 %v2290
      %2521 = vmatpush.bf16.msra.mxu0 %v2288
      %2522 = vmatpush.bf16.msra.mxu0 %v2286
      %2523 = vmatpush.bf16.msra.mxu0 %v2284
      %2524 = vmatpush.bf16.msra.mxu0 %v2282
      %2525 = vmatmul.bf16.gmra.mxu0 %v1651
      %v2526 = vpop.f32.mrf.mxu0
      %v2527 = vadd.f32 %v2514, %v2526
      %v2528 = vpop.f32.mrf.mxu0
      %2529 = vdwg.mxu0
      %2530 = vmatpush.bf16.msra.mxu0 %v2185
      %2531 = vmatpush.bf16.msra.mxu0 %v2183
      %2532 = vmatpush.bf16.msra.mxu0 %v2181
      %2533 = vmatpush.bf16.msra.mxu0 %v2179
      %2534 = vmatpush.bf16.msra.mxu0 %v2177
      %2535 = vmatpush.bf16.msra.mxu0 %v2175
      %2536 = vmatpush.bf16.msra.mxu0 %v2173
      %2537 = vmatpush.bf16.msra.mxu0 %v2171
      %2538 = vmatmul.bf16.gmra.mxu0 %v1644
      %v2539 = vpop.f32.mrf.mxu0
      %v2540 = vadd.f32 %v1783, %v2539
      %v2541 = vpop.f32.mrf.mxu0
      %2542 = vdwg.mxu0
      %2543 = vmatpush.bf16.msra.mxu0 %v2201
      %2544 = vmatpush.bf16.msra.mxu0 %v2199
      %2545 = vmatpush.bf16.msra.mxu0 %v2197
      %2546 = vmatpush.bf16.msra.mxu0 %v2195
      %2547 = vmatpush.bf16.msra.mxu0 %v2193
      %2548 = vmatpush.bf16.msra.mxu0 %v2191
      %2549 = vmatpush.bf16.msra.mxu0 %v2189
      %2550 = vmatpush.bf16.msra.mxu0 %v2187
      %2551 = vmatmul.bf16.gmra.mxu0 %v1645
      %v2552 = vpop.f32.mrf.mxu0
      %v2553 = vadd.f32 %v2540, %v2552
      %v2554 = vpop.f32.mrf.mxu0
      %2555 = vdwg.mxu0
      %2556 = vmatpush.bf16.msra.mxu0 %v2217
      %2557 = vmatpush.bf16.msra.mxu0 %v2215
      %2558 = vmatpush.bf16.msra.mxu0 %v2213
      %2559 = vmatpush.bf16.msra.mxu0 %v2211
      %2560 = vmatpush.bf16.msra.mxu0 %v2209
      %2561 = vmatpush.bf16.msra.mxu0 %v2207
      %2562 = vmatpush.bf16.msra.mxu0 %v2205
      %2563 = vmatpush.bf16.msra.mxu0 %v2203
      %2564 = vmatmul.bf16.gmra.mxu0 %v1646
      %v2565 = vpop.f32.mrf.mxu0
      %v2566 = vadd.f32 %v2553, %v2565
      %v2567 = vpop.f32.mrf.mxu0
      %2568 = vdwg.mxu0
      %2569 = vmatpush.bf16.msra.mxu0 %v2233
      %2570 = vmatpush.bf16.msra.mxu0 %v2231
      %2571 = vmatpush.bf16.msra.mxu0 %v2229
      %2572 = vmatpush.bf16.msra.mxu0 %v2227
      %2573 = vmatpush.bf16.msra.mxu0 %v2225
      %2574 = vmatpush.bf16.msra.mxu0 %v2223
      %2575 = vmatpush.bf16.msra.mxu0 %v2221
      %2576 = vmatpush.bf16.msra.mxu0 %v2219
      %2577 = vmatmul.bf16.gmra.mxu0 %v1647
      %v2578 = vpop.f32.mrf.mxu0
      %v2579 = vadd.f32 %v2566, %v2578
      %v2580 = vpop.f32.mrf.mxu0
      %2581 = vdwg.mxu0
      %2582 = vmatpush.bf16.msra.mxu0 %v2249
      %2583 = vmatpush.bf16.msra.mxu0 %v2247
      %2584 = vmatpush.bf16.msra.mxu0 %v2245
      %2585 = vmatpush.bf16.msra.mxu0 %v2243
      %2586 = vmatpush.bf16.msra.mxu0 %v2241
      %2587 = vmatpush.bf16.msra.mxu0 %v2239
      %2588 = vmatpush.bf16.msra.mxu0 %v2237
      %2589 = vmatpush.bf16.msra.mxu0 %v2235
      %2590 = vmatmul.bf16.gmra.mxu0 %v1648
      %v2591 = vpop.f32.mrf.mxu0
      %v2592 = vadd.f32 %v2579, %v2591
      %v2593 = vpop.f32.mrf.mxu0
      %2594 = vdwg.mxu0
      %2595 = vmatpush.bf16.msra.mxu0 %v2265
      %2596 = vmatpush.bf16.msra.mxu0 %v2263
      %2597 = vmatpush.bf16.msra.mxu0 %v2261
      %2598 = vmatpush.bf16.msra.mxu0 %v2259
      %2599 = vmatpush.bf16.msra.mxu0 %v2257
      %2600 = vmatpush.bf16.msra.mxu0 %v2255
      %2601 = vmatpush.bf16.msra.mxu0 %v2253
      %2602 = vmatpush.bf16.msra.mxu0 %v2251
      %2603 = vmatmul.bf16.gmra.mxu0 %v1649
      %v2604 = vpop.f32.mrf.mxu0
      %v2605 = vadd.f32 %v2592, %v2604
      %v2606 = vpop.f32.mrf.mxu0
      %2607 = vdwg.mxu0
      %2608 = vmatpush.bf16.msra.mxu0 %v2281
      %2609 = vmatpush.bf16.msra.mxu0 %v2279
      %2610 = vmatpush.bf16.msra.mxu0 %v2277
      %2611 = vmatpush.bf16.msra.mxu0 %v2275
      %2612 = vmatpush.bf16.msra.mxu0 %v2273
      %2613 = vmatpush.bf16.msra.mxu0 %v2271
      %2614 = vmatpush.bf16.msra.mxu0 %v2269
      %2615 = vmatpush.bf16.msra.mxu0 %v2267
      %2616 = vmatmul.bf16.gmra.mxu0 %v1650
      %v2617 = vpop.f32.mrf.mxu0
      %v2618 = vadd.f32 %v2605, %v2617
      %v2619 = vpop.f32.mrf.mxu0
      %2620 = vdwg.mxu0
      %2621 = vmatpush.bf16.msra.mxu0 %v2297
      %2622 = vmatpush.bf16.msra.mxu0 %v2295
      %2623 = vmatpush.bf16.msra.mxu0 %v2293
      %2624 = vmatpush.bf16.msra.mxu0 %v2291
      %2625 = vmatpush.bf16.msra.mxu0 %v2289
      %2626 = vmatpush.bf16.msra.mxu0 %v2287
      %2627 = vmatpush.bf16.msra.mxu0 %v2285
      %2628 = vmatpush.bf16.msra.mxu0 %v2283
      %2629 = vmatmul.bf16.gmra.mxu0 %v1651
      %v2630 = vpop.f32.mrf.mxu0
      %v2631 = vadd.f32 %v2618, %v2630
      %v2632 = vpop.f32.mrf.mxu0
      %2633 = vdwg.mxu0
      %v2634 = vmax.f32 %v2527, 0.0
      %v2635 = vmax.f32 %v2631, 0.0
      %v2636 = vpack.c.bf16 %v2634, %v2634
      %v2637 = vpack.c.bf16 %v2635, %v2635
      %v2638 = vld [vmem:[%s5] sm:$0xf]
      %v2639 = vld [vmem:[%s5 + $0x4] sm:$0xf]
      %v2640 = vld [vmem:[%s5 + $0x8] sm:$0xf]
      %v2641 = vld [vmem:[%s5 + $0xc] sm:$0xf]
      %v2642 = vld [vmem:[%s5 + $0x10] sm:$0xf]
      %v2643 = vld [vmem:[%s5 + $0x14] sm:$0xf]
      %v2644 = vld [vmem:[%s5 + $0x18] sm:$0xf]
      %v2645 = vld [vmem:[%s5 + $0x1c] sm:$0xf]
      %v2646 = vld [vmem:[%s5 + $0x20] sm:$0xf]
      %v2647 = vld [vmem:[%s5 + $0x24] sm:$0xf]
      %v2648 = vld [vmem:[%s5 + $0x28] sm:$0xf]
      %v2649 = vld [vmem:[%s5 + $0x2c] sm:$0xf]
      %v2650 = vld [vmem:[%s5 + $0x30] sm:$0xf]
      %v2651 = vld [vmem:[%s5 + $0x34] sm:$0xf]
      %v2652 = vld [vmem:[%s5 + $0x38] sm:$0xf]
      %v2653 = vld [vmem:[%s5 + $0x3c] sm:$0xf]
      %v2654 = vld [vmem:[%s5 + $0x40] sm:$0xf]
      %v2655 = vld [vmem:[%s5 + $0x44] sm:$0xf]
      %v2656 = vld [vmem:[%s5 + $0x48] sm:$0xf]
      %v2657 = vld [vmem:[%s5 + $0x4c] sm:$0xf]
      %v2658 = vld [vmem:[%s5 + $0x50] sm:$0xf]
      %v2659 = vld [vmem:[%s5 + $0x54] sm:$0xf]
      %v2660 = vld [vmem:[%s5 + $0x58] sm:$0xf]
      %v2661 = vld [vmem:[%s5 + $0x5c] sm:$0xf]
      %v2662 = vld [vmem:[%s5 + $0x60] sm:$0xf]
      %v2663 = vld [vmem:[%s5 + $0x64] sm:$0xf]
      %v2664 = vld [vmem:[%s5 + $0x68] sm:$0xf]
      %v2665 = vld [vmem:[%s5 + $0x6c] sm:$0xf]
      %v2666 = vld [vmem:[%s5 + $0x70] sm:$0xf]
      %v2667 = vld [vmem:[%s5 + $0x74] sm:$0xf]
      %v2668 = vld [vmem:[%s5 + $0x78] sm:$0xf]
      %v2669 = vld [vmem:[%s5 + $0x7c] sm:$0xf]
      %v2670 = vld [vmem:[%s6] sm:$0x1]
      %v2672 = vperm.slane %v2670, 0
      %v2706 = vunpack.c.l.b16 %v2638
      %v2707 = vunpack.c.l.b16 %v2639
      %v2708 = vunpack.c.l.b16 %v2640
      %v2709 = vunpack.c.l.b16 %v2641
      %v2710 = vunpack.c.l.b16 %v2642
      %v2711 = vunpack.c.l.b16 %v2643
      %v2712 = vunpack.c.l.b16 %v2644
      %v2713 = vunpack.c.l.b16 %v2645
      %v2714 = vunpack.c.l.b16 %v2646
      %v2715 = vunpack.c.l.b16 %v2647
      %v2716 = vunpack.c.l.b16 %v2648
      %v2717 = vunpack.c.l.b16 %v2649
      %v2718 = vunpack.c.l.b16 %v2650
      %v2719 = vunpack.c.l.b16 %v2651
      %v2720 = vunpack.c.l.b16 %v2652
      %v2721 = vunpack.c.l.b16 %v2653
      %v2722 = vunpack.c.l.b16 %v2654
      %v2723 = vunpack.c.l.b16 %v2655
      %v2724 = vunpack.c.l.b16 %v2656
      %v2725 = vunpack.c.l.b16 %v2657
      %v2726 = vunpack.c.l.b16 %v2658
      %v2727 = vunpack.c.l.b16 %v2659
      %v2728 = vunpack.c.l.b16 %v2660
      %v2729 = vunpack.c.l.b16 %v2661
      %v2730 = vunpack.c.l.b16 %v2662
      %v2731 = vunpack.c.l.b16 %v2663
      %v2732 = vunpack.c.l.b16 %v2664
      %v2733 = vunpack.c.l.b16 %v2665
      %v2734 = vunpack.c.l.b16 %v2666
      %v2735 = vunpack.c.l.b16 %v2667
      %v2736 = vunpack.c.l.b16 %v2668
      %v2737 = vunpack.c.l.b16 %v2669
      %v2738 = vpack.c.b16 %v2707, %v2706
      %v2739 = vpack.c.b16 %v2709, %v2708
      %v2740 = vpack.c.b16 %v2711, %v2710
      %v2741 = vpack.c.b16 %v2713, %v2712
      %v2742 = vpack.c.b16 %v2715, %v2714
      %v2743 = vpack.c.b16 %v2717, %v2716
      %v2744 = vpack.c.b16 %v2719, %v2718
      %v2745 = vpack.c.b16 %v2721, %v2720
      %v2746 = vpack.c.b16 %v2723, %v2722
      %v2747 = vpack.c.b16 %v2725, %v2724
      %v2748 = vpack.c.b16 %v2727, %v2726
      %v2749 = vpack.c.b16 %v2729, %v2728
      %v2750 = vpack.c.b16 %v2731, %v2730
      %v2751 = vpack.c.b16 %v2733, %v2732
      %v2752 = vpack.c.b16 %v2735, %v2734
      %v2753 = vpack.c.b16 %v2737, %v2736
      %2770 = vmatpush.bf16.msra.mxu0 %v2745
      %2771 = vmatpush.bf16.msra.mxu0 %v2744
      %2772 = vmatpush.bf16.msra.mxu0 %v2743
      %2773 = vmatpush.bf16.msra.mxu0 %v2742
      %2774 = vmatpush.bf16.msra.mxu0 %v2741
      %2775 = vmatpush.bf16.msra.mxu0 %v2740
      %2776 = vmatpush.bf16.msra.mxu0 %v2739
      %2777 = vmatpush.bf16.msra.mxu0 %v2738
      %2778 = vmatmul.bf16.gmra.mxu0 %v2636
      %v2779 = vpop.f32.mrf.mxu0
      %v2780 = vadd.f32 %v2672, %v2779
      %v2781 = vpop.f32.mrf.mxu0
      %2782 = vdwg.mxu0
      %2783 = vmatpush.bf16.msra.mxu0 %v2753
      %2784 = vmatpush.bf16.msra.mxu0 %v2752
      %2785 = vmatpush.bf16.msra.mxu0 %v2751
      %2786 = vmatpush.bf16.msra.mxu0 %v2750
      %2787 = vmatpush.bf16.msra.mxu0 %v2749
      %2788 = vmatpush.bf16.msra.mxu0 %v2748
      %2789 = vmatpush.bf16.msra.mxu0 %v2747
      %2790 = vmatpush.bf16.msra.mxu0 %v2746
      %2791 = vmatmul.bf16.gmra.mxu0 %v2637
      %v2792 = vpop.f32.mrf.mxu0
      %v2793 = vadd.f32 %v2780, %v2792
      %v2794 = vpop.f32.mrf.mxu0
      %2795 = vdwg.mxu0
      %2796 = vst [vmem:[%s281] sm:$0xff] %v2793
      %p2797 = scmp.lt.s32.totalorder %s18, 1
      %s2798 = scalar_select %p2797, %s18, 1
      %s2799 = smul.addr %s2798, 8
      %s2800 = scalar_lea.vmem %s7, %s2799
      // Predicated region
      $region49: #{efficientnet_b4_transfer_forward.3} parent=47 // pred_check
        %p2801 = pneg %p188
      $region50: #{efficientnet_b4_transfer_forward.3} parent=47 // pred_check_branch
        %2803 = sbr.rel (%p2801) target = $region52
      $region51: #{efficientnet_b4_transfer_forward.3} parent=47 // pred_region
        _
      $region52: #{efficientnet_b4_transfer_forward.3} parent=47 // pred_fallthru
        _
    $region48: #{efficientnet_b4_transfer_forward.3} parent=5 // pred_fallthru
      _
    %p2804 = scmp.le.s32.totalorder 2, %s13
    // Predicated region
    $region53: #{efficientnet_b4_transfer_forward.3} parent=5 // pred_check
      %p2805 = pneg %p2804
    $region54: #{efficientnet_b4_transfer_forward.3} parent=5 // pred_check_branch
      %2807 = sbr.rel (%p2805) target = $region56
    $region55: #{efficientnet_b4_transfer_forward.3} parent=5 // pred_region
      %s2808 = ssub.s32 %s13, 2
      // Predicated region
      $region57: #{efficientnet_b4_transfer_forward.3} parent=55 // pred_check
        %p2809 = pneg %p194
      $region58: #{efficientnet_b4_transfer_forward.3} parent=55 // pred_check_branch
        %2811 = sbr.rel (%p2809) target = $region60
      $region59: #{efficientnet_b4_transfer_forward.3} parent=55 // pred_region
        %p2812 = scmp.lt.s32.totalorder %s19, 1
        %s2813 = scalar_select %p2812, %s19, 1
        %s2814 = smul.addr %s2813, 8
        %s2815 = scalar_lea.vmem %s7, %s2814
      $region60: #{efficientnet_b4_transfer_forward.3} parent=55 // pred_fallthru
        _
    $region56: #{efficientnet_b4_transfer_forward.3} parent=5 // pred_fallthru
      _
  $region6: #{efficientnet_b4_transfer_forward.3} parent=0 // loop_footer
    %s17 = sadd.s32 1, %s13
  $region7: #{efficientnet_b4_transfer_forward.3} parent=0 // loop_footer_branch
    %12 = sbr.rel target = $region3
  $region8: #{efficientnet_b4_transfer_forward.3} parent=0 // loop_exit
    _

</llo_original>
